<compile_context>
chip_gen: v7x
topology: tpu7x:2x2x1
jax: 0.10.0
libtpu: 0.0.40
codegen_flags: <defaults>
</compile_context>

<pallas_src>
import functools

import jax
import jax.numpy as jnp
from jax.experimental import pallas as pl
from jax.experimental.pallas import tpu as pltpu

LANE = 128
_VMEM_LIMIT = 32 * 1024 * 1024      # scoped VMEM limit, safe on v5e/v6e/v7x
_MAX_LANE_TILE = 8 * LANE           # up to 1024-lane output tiles
_MAX_K_TILE = 2048


def _round_up(v, m):
    return (v + m - 1) // m * m


# ----------------------------- Pallas kernels -----------------------------

def _conv_kernel(w_ref, p_ref, b_ref, *rest, nk, apply_act, compute_stats,
                 slope, hw_valid, lane_tile):
    """One grid step of the channel-major conv matmul.

    w_ref : (COsub, TK)   bf16   conv weights, K order = (ci, kh, kw)
    p_ref : (1, TK, LT)   bf16   im2col patches of one sample / HW tile
    b_ref : (COsub, 1)    f32    bias
    rest  : o_ref (1, COsub, LT)
            [, sum_ref (1,COsub,1), ssq_ref (1,COsub,1)]   if compute_stats
            [, acc_ref (COsub, LT) f32 scratch]            if nk > 1
    """
    multi_k = nk > 1
    idx = 0
    o_ref = rest[idx]; idx += 1
    if compute_stats:
        sum_ref = rest[idx]
        ssq_ref = rest[idx + 1]
        idx += 2
    if multi_k:
        acc_ref = rest[idx]

    def _finalize(y):
        # y: (COsub, LT) f32, bias already added.
        if compute_stats:
            h = pl.program_id(1)
            # Padded lanes beyond the real H*W hold the bias value; mask them
            # out of the InstanceNorm statistics.
            col = jax.lax.broadcasted_iota(jnp.int32, y.shape, 1) + h * lane_tile
            ym = jnp.where(col < hw_valid, y, 0.0)

            @pl.when(h == 0)
            def _():
                sum_ref[...] = jnp.zeros_like(sum_ref)
                ssq_ref[...] = jnp.zeros_like(ssq_ref)

            sum_ref[...] += jnp.sum(ym, axis=-1, keepdims=True)[None]
            ssq_ref[...] += jnp.sum(ym * ym, axis=-1, keepdims=True)[None]

        out = y
        if apply_act:
            out = jnp.maximum(out, slope * out)          # LeakyReLU(slope)
        o_ref[0] = out.astype(o_ref.dtype)

    if not multi_k:
        # Single K tile (every layer of this model): no accumulator round-trip.
        y = jnp.dot(w_ref[...], p_ref[0],
                    preferred_element_type=jnp.float32) + b_ref[...]
        _finalize(y)
    else:
        k = pl.program_id(2)

        @pl.when(k == 0)
        def _():
            # Bias folded into the accumulator init.
            acc_ref[...] = jnp.zeros_like(acc_ref) + b_ref[...]

        acc_ref[...] += jnp.dot(w_ref[...], p_ref[0],
                                preferred_element_type=jnp.float32)

        @pl.when(k == nk - 1)
        def _():
            _finalize(acc_ref[...])


def _in_apply_kernel(x_ref, mean_ref, rstd_ref, o_ref, *, slope, act):
    # x: (1, COsub, LT) bf16   mean/rstd: (1, COsub, 1) f32
    y = (x_ref[...].astype(jnp.float32) - mean_ref[...]) * rstd_ref[...]
    if act:
        y = jnp.maximum(y, slope * y)
    o_ref[...] = y.astype(o_ref.dtype)


# ------------------------------ wrappers ----------------------------------

def _im2col_nchw(x, k, stride, pad, lane_tile):
    """x: (N, Cin, H, W) -> patches (N, Cin*k*k, HWp) bf16.

    K order is (ci, kh, kw), matching w.reshape(Cout, Cin*k*k).
    # TODO(synk): fuse this into the conv kernel (strided window loads) so the
    # k*k patch slab never hits HBM.
    """
    x = x.astype(jnp.bfloat16)                     # bf16 BEFORE pad/stack glue
    x = jnp.pad(x, ((0, 0), (0, 0), (pad, pad), (pad, pad)))
    N, C, H, W = x.shape
    Ho = (H - k) // stride + 1
    Wo = (W - k) // stride + 1
    slices = []
    for kh in range(k):
        for kw in range(k):
            slices.append(x[:, :, kh:kh + stride * Ho:stride,
                               kw:kw + stride * Wo:stride])
    p = jnp.stack(slices, axis=2)                  # (N, C, k*k, Ho, Wo)
    p = p.reshape(N, C * k * k, Ho * Wo)
    HWp = _round_up(Ho * Wo, lane_tile)
    p = jnp.pad(p, ((0, 0), (0, 0), (0, HWp - Ho * Wo)))
    return p, Ho, Wo, HWp


def _instance_norm_apply_pallas(y, mean, rstd, *, slope, lane_tile, act,
                                out_dtype):
    N, COsub, HWp = y.shape
    nhw = HWp // lane_tile
    kernel = functools.partial(_in_apply_kernel, slope=slope, act=act)
    return pl.pallas_call(
        kernel,
        out_shape=jax.ShapeDtypeStruct((N, COsub, HWp), out_dtype),
        grid=(N, nhw),
        in_specs=[pl.BlockSpec((1, COsub, lane_tile), lambda n, h: (n, 0, h)),
                  pl.BlockSpec((1, COsub, 1), lambda n, h: (n, 0, 0)),
                  pl.BlockSpec((1, COsub, 1), lambda n, h: (n, 0, 0))],
        out_specs=pl.BlockSpec((1, COsub, lane_tile), lambda n, h: (n, 0, h)),
        compiler_params=pltpu.CompilerParams(
            dimension_semantics=("parallel", "parallel"),
            vmem_limit_bytes=_VMEM_LIMIT),
    )(y, mean, rstd)


def conv_block_pallas(x, w, b, *, stride, pad, norm, act, out_dtype,
                      eps=1e-5, slope=0.2):
    """Conv2d (PyTorch OIHW weights) [+ InstanceNorm] [+ LeakyReLU(0.2)].

    x: (N, Cin, H, W); returns (N, Cout, Ho, Wo) in out_dtype.
    """
    N, Cin, H, W = x.shape
    Cout, Cin_w, kH, kW = w.shape
    assert Cin_w == Cin and kH == kW
    ksz = kH

    Ho = (H + 2 * pad - ksz) // stride + 1
    Wo = (W + 2 * pad - ksz) // stride + 1
    HWo = Ho * Wo
    LT = LANE * min((HWo + LANE - 1) // LANE, _MAX_LANE_TILE // LANE)

    patches, Ho, Wo, HWp = _im2col_nchw(x, ksz, stride, pad, LT)
    nhw = HWp // LT

    K = Cin * ksz * ksz
    COsub = _round_up(Cout, 8)
    if K <= _MAX_K_TILE:
        TK, Kp = K, K                               # single K tile
    else:
        Kp = _round_up(K, LANE)
        TK = next(c for c in (2048, 1024, 512, 256, 128) if Kp % c == 0)
    nk = Kp // TK

    if Kp != K:
        patches = jnp.pad(patches, ((0, 0), (0, Kp - K), (0, 0)))
    w2 = w.reshape(Cout, K).astype(jnp.bfloat16)
    w2 = jnp.pad(w2, ((0, COsub - Cout), (0, Kp - K)))
    b2 = jnp.pad(b.astype(jnp.float32), (0, COsub - Cout)).reshape(COsub, 1)

    kernel = functools.partial(
        _conv_kernel, nk=nk, apply_act=(act and not norm), compute_stats=norm,
        slope=slope, hw_valid=HWo, lane_tile=LT)

    conv_dtype = jnp.bfloat16 if norm else out_dtype
    out_shapes = [jax.ShapeDtypeStruct((N, COsub, HWp), conv_dtype)]
    out_specs = [pl.BlockSpec((1, COsub, LT), lambda n, h, kk: (n, 0, h))]
    if norm:
        out_shapes += [jax.ShapeDtypeStruct((N, COsub, 1), jnp.float32)] * 2
        out_specs += [pl.BlockSpec((1, COsub, 1), lambda n, h, kk: (n, 0, 0))] * 2
    scratch = [] if nk == 1 else [pltpu.VMEM((COsub, LT), jnp.float32)]

    # N is always "parallel" (keeps both v7x TensorCores busy for batch >= 2);
    # the HW axis carries the resident stats accumulator when norm=True.
    sem = ("parallel", "arbitrary" if norm else "parallel", "arbitrary")

    res = pl.pallas_call(
        kernel,
        out_shape=tuple(out_shapes) if norm else out_shapes[0],
        grid=(N, nhw, nk),
        in_specs=[
            pl.BlockSpec((COsub, TK), lambda n, h, kk: (0, kk)),
            pl.BlockSpec((1, TK, LT), lambda n, h, kk: (n, kk, h)),
            pl.BlockSpec((COsub, 1), lambda n, h, kk: (0, 0)),
        ],
        out_specs=tuple(out_specs) if norm else out_specs[0],
        scratch_shapes=scratch,
        compiler_params=pltpu.CompilerParams(
            dimension_semantics=sem, vmem_limit_bytes=_VMEM_LIMIT),
    )(w2, patches, b2)

    if norm:
        y, s, ssq = res
        mean = s / HWo                                   # (N, COsub, 1) f32
        var = jnp.maximum(ssq / HWo - mean * mean, 0.0)  # biased var (IN2d)
        rstd = jax.lax.rsqrt(var + eps)
        y = _instance_norm_apply_pallas(y, mean, rstd, slope=slope,
                                        lane_tile=LT, act=act,
                                        out_dtype=out_dtype)
    else:
        y = res

    return y[:, :Cout, :HWo].reshape(N, Cout, Ho, Wo)


# --------------------------- model definition ------------------------------

def init_discriminator_params(key, input_nc, ndf):
    # conv weights ~ N(0, 0.02) (mirrors utils.init_weights); biases keep a
    # small uniform init so the bias path of the kernel is exercised.
    shapes = [
        (ndf, input_nc, 4, 4),          # conv1, stride 2, pad 1
        (ndf * 2, ndf, 4, 4),           # conv2, stride 2, pad 1
        (ndf * 4, ndf * 2, 4, 4),       # conv3, stride 2, pad 1
        (1, ndf * 4, 4, 4),             # conv4, stride 1, pad 1
    ]
    params = []
    for s in shapes:
        key, kw_, kb_ = jax.random.split(key, 3)
        wgt = 0.02 * jax.random.normal(kw_, s, dtype=jnp.float32)
        bound = 1.0 / float(s[1] * s[2] * s[3]) ** 0.5
        bias = jax.random.uniform(kb_, (s[0],), jnp.float32, -bound, bound)
        params.append((wgt, bias))
    return params


def discriminator_forward(x_nchw, params):
    # x_nchw: (N, C, H, W) -> (N, 1, H', W'), matching the PyTorch forward.
    (w1, b1), (w2, b2), (w3, b3), (w4, b4) = params
    h = conv_block_pallas(x_nchw, w1, b1, stride=2, pad=1, norm=False,
                          act=True, out_dtype=jnp.bfloat16)
    h = conv_block_pallas(h, w2, b2, stride=2, pad=1, norm=True,
                          act=True, out_dtype=jnp.bfloat16)
    h = conv_block_pallas(h, w3, b3, stride=2, pad=1, norm=True,
                          act=True, out_dtype=jnp.bfloat16)
    h = conv_block_pallas(h, w4, b4, stride=1, pad=1, norm=False,
                          act=False, out_dtype=jnp.float32)
    return h


# --------------------------- pure-JAX reference -----------------------------

def _reference_forward(x, params, eps=1e-5, slope=0.2):
    """Independent lax.conv reference mirroring the kernel's precision choices
    (bf16 MXU inputs, f32 accumulation/stats, bf16 inter-layer activations)."""
    def block(x, w, b, stride, pad, norm, act, out_dtype):
        y = jax.lax.conv_general_dilated(
            x.astype(jnp.bfloat16), w.astype(jnp.bfloat16),
            window_strides=(stride, stride),
            padding=[(pad, pad), (pad, pad)],
            dimension_numbers=("NCHW", "OIHW", "NCHW"),
            preferred_element_type=jnp.float32)
        y = y + b.reshape(1, -1, 1, 1).astype(jnp.float32)
        if norm:
            mean = jnp.mean(y, axis=(2, 3), keepdims=True)
            var = jnp.maximum(
                jnp.mean(y * y, axis=(2, 3), keepdims=True) - mean * mean, 0.0)
            rstd = jax.lax.rsqrt(var + eps)
            yb = y.astype(jnp.bfloat16).astype(jnp.float32)  # bf16 conv-out store
            y = (yb - mean) * rstd
        if act:
            y = jnp.maximum(y, slope * y)
        return y.astype(out_dtype)

    (w1, b1), (w2, b2), (w3, b3), (w4, b4) = params
    h = block(x, w1, b1, 2, 1, False, True, jnp.bfloat16)
    h = block(h, w2, b2, 2, 1, True, True, jnp.bfloat16)
    h = block(h, w3, b3, 2, 1, True, True, jnp.bfloat16)
    h = block(h, w4, b4, 1, 1, False, False, jnp.float32)
    return h


if __name__ == "__main__":
    key = jax.random.PRNGKey(0)
    input_nc, ndf = 4, 8
    k_x, k_p = jax.random.split(key)

    x = jax.random.normal(k_x, (2, input_nc, 16, 16), dtype=jnp.float32)  # NCHW
    params = init_discriminator_params(k_p, input_nc, ndf)

    out = jax.block_until_ready(jax.jit(discriminator_forward)(x, params))

    # 16 -> 8 -> 4 -> 2 (stride-2 convs), then k=4/p=1/s=1 -> 1
    assert out.shape == (2, 1, 1, 1), out.shape
    assert bool(jnp.all(jnp.isfinite(out)))

    ref = jax.block_until_ready(jax.jit(_reference_forward)(x, params))
    assert bool(jnp.allclose(out, ref, atol=2e-2, rtol=2e-2)), (
        "mismatch vs reference", out, ref)

    print("KERNEL_OK")
</pallas_src>

<mosaic_0001>
module attributes {stable_mosaic.version = 11 : i64} {
  func.func @_conv_kernel(%arg0: i32, %arg1: i32, %arg2: i32, %arg3: memref<8x64xbf16, #tpu.memory_space<vmem>>, %arg4: memref<1x64x128xbf16, #tpu.memory_space<vmem>>, %arg5: memref<8x1xf32, #tpu.memory_space<vmem>>, %arg6: memref<1x8x128xbf16, #tpu.memory_space<vmem>>) attributes {dimension_semantics = [#tpu.dimension_semantics<parallel>, #tpu.dimension_semantics<parallel>, #tpu.dimension_semantics<arbitrary>], iteration_bounds = array<i64: 2, 1, 1>, scalar_prefetch = 0 : i64, scratch_operands = 0 : i64, tpu.core_type = #tpu.core_type<tc>, window_params = [{transform_indices = @transform_0, window_bounds = array<i64: 8, 64>}, {transform_indices = @transform_1, window_bounds = array<i64: 1, 64, 128>}, {pipeline_mode = #tpu.pipeline_mode<synchronous>, transform_indices = @transform_2, window_bounds = array<i64: 8, 1>}, {transform_indices = @transform_3, window_bounds = array<i64: 1, 8, 128>}]} {
    %c0 = arith.constant 0 : index
    %c0_0 = arith.constant 0 : index
    %0 = vector.load %arg3[%c0, %c0_0] : memref<8x64xbf16, #tpu.memory_space<vmem>>, vector<8x64xbf16>
    %c0_1 = arith.constant 0 : index
    %c0_2 = arith.constant 0 : index
    %c0_3 = arith.constant 0 : index
    %1 = vector.load %arg4[%c0_1, %c0_2, %c0_3] : memref<1x64x128xbf16, #tpu.memory_space<vmem>>, vector<1x64x128xbf16>
    %2 = vector.shape_cast %1 : vector<1x64x128xbf16> to vector<64x128xbf16>
    %cst = arith.constant dense<0.000000e+00> : vector<8x128xf32>
    %3 = tpu.matmul %0, %2, %cst {dimension_numbers = #tpu.dot_dimension_numbers<[1], [0], [0], [1], [0, 0, 1, 1], [], []>} : vector<8x64xbf16>, vector<64x128xbf16>, vector<8x128xf32> -> vector<8x128xf32>
    %c0_4 = arith.constant 0 : index
    %c0_5 = arith.constant 0 : index
    %4 = vector.load %arg5[%c0_4, %c0_5] : memref<8x1xf32, #tpu.memory_space<vmem>>, vector<8x1xf32>
    %5 = vector.broadcast %4 : vector<8x1xf32> to vector<8x128xf32>
    %6 = arith.addf %3, %5 : vector<8x128xf32>
    %cst_6 = arith.constant 2.000000e-01 : f32
    %7 = vector.broadcast %cst_6 : f32 to vector<8x128xf32>
    %8 = arith.mulf %7, %6 : vector<8x128xf32>
    %9 = arith.maximumf %6, %8 : vector<8x128xf32>
    %10 = arith.truncf %9 : vector<8x128xf32> to vector<8x128xbf16>
    %c0_7 = arith.constant 0 : index
    %c0_8 = arith.constant 0 : index
    %c0_9 = arith.constant 0 : index
    %11 = vector.load %arg6[%c0_7, %c0_8, %c0_9] : memref<1x8x128xbf16, #tpu.memory_space<vmem>>, vector<1x8x128xbf16>
    %12 = vector.shape_cast %11 : vector<1x8x128xbf16> to vector<8x128xbf16>
    %13 = vector.shape_cast %10 : vector<8x128xbf16> to vector<1x8x128xbf16>
    tpu.vector_store %arg6[%c0_7, %c0_8, %c0_9], %13 {strides = array<i32>} : memref<1x8x128xbf16, #tpu.memory_space<vmem>>, vector<1x8x128xbf16>,
    return
  }
  func.func @transform_0(%arg0: i32, %arg1: i32, %arg2: i32) -> (i32, i32) {
    %c0_i32 = arith.constant 0 : i32
    %c0_i32_0 = arith.constant 0 : i32
    return %c0_i32, %arg2 : i32, i32
  }
  func.func @transform_1(%arg0: i32, %arg1: i32, %arg2: i32) -> (i32, i32, i32) {
    %c0_i32 = arith.constant 0 : i32
    return %arg0, %arg2, %arg1 : i32, i32, i32
  }
  func.func @transform_2(%arg0: i32, %arg1: i32, %arg2: i32) -> (i32, i32) {
    %c0_i32 = arith.constant 0 : i32
    %c0_i32_0 = arith.constant 0 : i32
    %c0_i32_1 = arith.constant 0 : i32
    return %c0_i32, %c0_i32_0 : i32, i32
  }
  func.func @transform_3(%arg0: i32, %arg1: i32, %arg2: i32) -> (i32, i32, i32) {
    %c0_i32 = arith.constant 0 : i32
    %c0_i32_0 = arith.constant 0 : i32
    return %arg0, %c0_i32, %arg1 : i32, i32, i32
  }
}

module attributes {stable_mosaic.version = 11 : i64} {
  func.func @_conv_kernel(%arg0: i32, %arg1: i32, %arg2: i32, %arg3: memref<16x128xbf16, #tpu.memory_space<vmem>>, %arg4: memref<1x128x128xbf16, #tpu.memory_space<vmem>>, %arg5: memref<16x1xf32, #tpu.memory_space<vmem>>, %arg6: memref<1x16x128xbf16, #tpu.memory_space<vmem>>, %arg7: memref<1x16x1xf32, #tpu.memory_space<vmem>>, %arg8: memref<1x16x1xf32, #tpu.memory_space<vmem>>) attributes {dimension_semantics = [#tpu.dimension_semantics<parallel>, #tpu.dimension_semantics<arbitrary>, #tpu.dimension_semantics<arbitrary>], iteration_bounds = array<i64: 2, 1, 1>, scalar_prefetch = 0 : i64, scratch_operands = 0 : i64, tpu.core_type = #tpu.core_type<tc>, window_params = [{transform_indices = @transform_0, window_bounds = array<i64: 16, 128>}, {transform_indices = @transform_1, window_bounds = array<i64: 1, 128, 128>}, {pipeline_mode = #tpu.pipeline_mode<synchronous>, transform_indices = @transform_2, window_bounds = array<i64: 16, 1>}, {transform_indices = @transform_3, window_bounds = array<i64: 1, 16, 128>}, {transform_indices = @transform_4, window_bounds = array<i64: 1, 16, 1>}, {transform_indices = @transform_5, window_bounds = array<i64: 1, 16, 1>}]} {
    %c0 = arith.constant 0 : index
    %c0_0 = arith.constant 0 : index
    %0 = vector.load %arg3[%c0, %c0_0] : memref<16x128xbf16, #tpu.memory_space<vmem>>, vector<16x128xbf16>
    %c0_1 = arith.constant 0 : index
    %c0_2 = arith.constant 0 : index
    %c0_3 = arith.constant 0 : index
    %1 = vector.load %arg4[%c0_1, %c0_2, %c0_3] : memref<1x128x128xbf16, #tpu.memory_space<vmem>>, vector<1x128x128xbf16>
    %2 = vector.shape_cast %1 : vector<1x128x128xbf16> to vector<128x128xbf16>
    %cst = arith.constant dense<0.000000e+00> : vector<16x128xf32>
    %3 = tpu.matmul %0, %2, %cst {dimension_numbers = #tpu.dot_dimension_numbers<[1], [0], [0], [1], [0, 0, 1, 1], [], []>} : vector<16x128xbf16>, vector<128x128xbf16>, vector<16x128xf32> -> vector<16x128xf32>
    %c0_4 = arith.constant 0 : index
    %c0_5 = arith.constant 0 : index
    %4 = vector.load %arg5[%c0_4, %c0_5] : memref<16x1xf32, #tpu.memory_space<vmem>>, vector<16x1xf32>
    %5 = vector.broadcast %4 : vector<16x1xf32> to vector<16x128xf32>
    %6 = arith.addf %3, %5 : vector<16x128xf32>
    %7 = tpu.iota {dimensions = array<i32: 1>} : vector<16x128xi32>
    %c128_i32 = arith.constant 128 : i32
    %8 = arith.muli %arg1, %c128_i32 : i32
    %9 = vector.broadcast %8 : i32 to vector<16x128xi32>
    %10 = arith.addi %7, %9 : vector<16x128xi32>
    %c16_i32 = arith.constant 16 : i32
    %11 = vector.broadcast %c16_i32 : i32 to vector<16x128xi32>
    %12 = arith.cmpi slt, %10, %11 : vector<16x128xi32>
    %cst_6 = arith.constant 0.000000e+00 : f32
    %13 = vector.broadcast %cst_6 : f32 to vector<16x128xf32>
    %14 = arith.select %12, %6, %13 : vector<16x128xi1>, vector<16x128xf32>
    %c0_i32 = arith.constant 0 : i32
    %15 = arith.cmpi eq, %arg1, %c0_i32 : i32
    %16 = arith.extui %15 : i1 to i32
    %c0_i32_7 = arith.constant 0 : i32
    %17 = arith.cmpi ne, %16, %c0_i32_7 : i32
    scf.if %17 {
      %cst_25 = arith.constant 0.000000e+00 : f32
      %35 = vector.broadcast %cst_25 : f32 to vector<1x16x1xf32>
      %c0_26 = arith.constant 0 : index
      %c0_27 = arith.constant 0 : index
      %c0_28 = arith.constant 0 : index
      %36 = vector.load %arg7[%c0_26, %c0_27, %c0_28] : memref<1x16x1xf32, #tpu.memory_space<vmem>>, vector<1x16x1xf32>
      tpu.vector_store %arg7[%c0_26, %c0_27, %c0_28], %35 {strides = array<i32>} : memref<1x16x1xf32, #tpu.memory_space<vmem>>, vector<1x16x1xf32>,
      %cst_29 = arith.constant 0.000000e+00 : f32
      %37 = vector.broadcast %cst_29 : f32 to vector<1x16x1xf32>
      %c0_30 = arith.constant 0 : index
      %c0_31 = arith.constant 0 : index
      %c0_32 = arith.constant 0 : index
      %38 = vector.load %arg8[%c0_30, %c0_31, %c0_32] : memref<1x16x1xf32, #tpu.memory_space<vmem>>, vector<1x16x1xf32>
      tpu.vector_store %arg8[%c0_30, %c0_31, %c0_32], %37 {strides = array<i32>} : memref<1x16x1xf32, #tpu.memory_space<vmem>>, vector<1x16x1xf32>,
    } else {
    }
    %c0_8 = arith.constant 0 : index
    %c0_9 = arith.constant 0 : index
    %c0_10 = arith.constant 0 : index
    %18 = vector.load %arg7[%c0_8, %c0_9, %c0_10] : memref<1x16x1xf32, #tpu.memory_space<vmem>>, vector<1x16x1xf32>
    %cst_11 = arith.constant dense<0.000000e+00> : vector<16xf32>
    %19 = vector.multi_reduction <add>, %14, %cst_11 [1] : vector<16x128xf32> to vector<16xf32>
    %20 = vector.shape_cast %19 : vector<16xf32> to vector<16x1xf32>
    %21 = vector.shape_cast %20 : vector<16x1xf32> to vector<1x16x1xf32>
    %22 = arith.addf %18, %21 : vector<1x16x1xf32>
    %c0_12 = arith.constant 0 : index
    %c0_13 = arith.constant 0 : index
    %c0_14 = arith.constant 0 : index
    %23 = vector.load %arg7[%c0_12, %c0_13, %c0_14] : memref<1x16x1xf32, #tpu.memory_space<vmem>>, vector<1x16x1xf32>
    tpu.vector_store %arg7[%c0_12, %c0_13, %c0_14], %22 {strides = array<i32>} : memref<1x16x1xf32, #tpu.memory_space<vmem>>, vector<1x16x1xf32>,
    %c0_15 = arith.constant 0 : index
    %c0_16 = arith.constant 0 : index
    %c0_17 = arith.constant 0 : index
    %24 = vector.load %arg8[%c0_15, %c0_16, %c0_17] : memref<1x16x1xf32, #tpu.memory_space<vmem>>, vector<1x16x1xf32>
    %25 = arith.mulf %14, %14 : vector<16x128xf32>
    %cst_18 = arith.constant dense<0.000000e+00> : vector<16xf32>
    %26 = vector.multi_reduction <add>, %25, %cst_18 [1] : vector<16x128xf32> to vector<16xf32>
    %27 = vector.shape_cast %26 : vector<16xf32> to vector<16x1xf32>
    %28 = vector.shape_cast %27 : vector<16x1xf32> to vector<1x16x1xf32>
    %29 = arith.addf %24, %28 : vector<1x16x1xf32>
    %c0_19 = arith.constant 0 : index
    %c0_20 = arith.constant 0 : index
    %c0_21 = arith.constant 0 : index
    %30 = vector.load %arg8[%c0_19, %c0_20, %c0_21] : memref<1x16x1xf32, #tpu.memory_space<vmem>>, vector<1x16x1xf32>
    tpu.vector_store %arg8[%c0_19, %c0_20, %c0_21], %29 {strides = array<i32>} : memref<1x16x1xf32, #tpu.memory_space<vmem>>, vector<1x16x1xf32>,
    %31 = arith.truncf %6 : vector<16x128xf32> to vector<16x128xbf16>
    %c0_22 = arith.constant 0 : index
    %c0_23 = arith.constant 0 : index
    %c0_24 = arith.constant 0 : index
    %32 = vector.load %arg6[%c0_22, %c0_23, %c0_24] : memref<1x16x128xbf16, #tpu.memory_space<vmem>>, vector<1x16x128xbf16>
    %33 = vector.shape_cast %32 : vector<1x16x128xbf16> to vector<16x128xbf16>
    %34 = vector.shape_cast %31 : vector<16x128xbf16> to vector<1x16x128xbf16>
    tpu.vector_store %arg6[%c0_22, %c0_23, %c0_24], %34 {strides = array<i32>} : memref<1x16x128xbf16, #tpu.memory_space<vmem>>, vector<1x16x128xbf16>,
    return
  }
  func.func @transform_0(%arg0: i32, %arg1: i32, %arg2: i32) -> (i32, i32) {
    %c0_i32 = arith.constant 0 : i32
    %c0_i32_0 = arith.constant 0 : i32
    return %c0_i32, %arg2 : i32, i32
  }
  func.func @transform_1(%arg0: i32, %arg1: i32, %arg2: i32) -> (i32, i32, i32) {
    %c0_i32 = arith.constant 0 : i32
    return %arg0, %arg2, %arg1 : i32, i32, i32
  }
  func.func @transform_2(%arg0: i32, %arg1: i32, %arg2: i32) -> (i32, i32) {
    %c0_i32 = arith.constant 0 : i32
    %c0_i32_0 = arith.constant 0 : i32
    %c0_i32_1 = arith.constant 0 : i32
    return %c0_i32, %c0_i32_0 : i32, i32
  }
  func.func @transform_3(%arg0: i32, %arg1: i32, %arg2: i32) -> (i32, i32, i32) {
    %c0_i32 = arith.constant 0 : i32
    %c0_i32_0 = arith.constant 0 : i32
    return %arg0, %c0_i32, %arg1 : i32, i32, i32
  }
  func.func @transform_4(%arg0: i32, %arg1: i32, %arg2: i32) -> (i32, i32, i32) {
    %c0_i32 = arith.constant 0 : i32
    %c0_i32_0 = arith.constant 0 : i32
    %c0_i32_1 = arith.constant 0 : i32
    return %arg0, %c0_i32, %c0_i32_0 : i32, i32, i32
  }
  func.func @transform_5(%arg0: i32, %arg1: i32, %arg2: i32) -> (i32, i32, i32) {
    %c0_i32 = arith.constant 0 : i32
    %c0_i32_0 = arith.constant 0 : i32
    %c0_i32_1 = arith.constant 0 : i32
    return %arg0, %c0_i32, %c0_i32_0 : i32, i32, i32
  }
}

module attributes {stable_mosaic.version = 11 : i64} {
  func.func @_in_apply_kernel(%arg0: i32, %arg1: i32, %arg2: memref<1x16x128xbf16, #tpu.memory_space<vmem>>, %arg3: memref<1x16x1xf32, #tpu.memory_space<vmem>>, %arg4: memref<1x16x1xf32, #tpu.memory_space<vmem>>, %arg5: memref<1x16x128xbf16, #tpu.memory_space<vmem>>) attributes {dimension_semantics = [#tpu.dimension_semantics<parallel>, #tpu.dimension_semantics<parallel>], iteration_bounds = array<i64: 2, 1>, scalar_prefetch = 0 : i64, scratch_operands = 0 : i64, tpu.core_type = #tpu.core_type<tc>, window_params = [{transform_indices = @transform_0, window_bounds = array<i64: 1, 16, 128>}, {transform_indices = @transform_1, window_bounds = array<i64: 1, 16, 1>}, {transform_indices = @transform_2, window_bounds = array<i64: 1, 16, 1>}, {transform_indices = @transform_3, window_bounds = array<i64: 1, 16, 128>}]} {
    %c0 = arith.constant 0 : index
    %c0_0 = arith.constant 0 : index
    %c0_1 = arith.constant 0 : index
    %0 = vector.load %arg2[%c0, %c0_0, %c0_1] : memref<1x16x128xbf16, #tpu.memory_space<vmem>>, vector<1x16x128xbf16>
    %1 = arith.extf %0 : vector<1x16x128xbf16> to vector<1x16x128xf32>
    %c0_2 = arith.constant 0 : index
    %c0_3 = arith.constant 0 : index
    %c0_4 = arith.constant 0 : index
    %2 = vector.load %arg3[%c0_2, %c0_3, %c0_4] : memref<1x16x1xf32, #tpu.memory_space<vmem>>, vector<1x16x1xf32>
    %3 = vector.broadcast %2 : vector<1x16x1xf32> to vector<1x16x128xf32>
    %4 = arith.subf %1, %3 : vector<1x16x128xf32>
    %c0_5 = arith.constant 0 : index
    %c0_6 = arith.constant 0 : index
    %c0_7 = arith.constant 0 : index
    %5 = vector.load %arg4[%c0_5, %c0_6, %c0_7] : memref<1x16x1xf32, #tpu.memory_space<vmem>>, vector<1x16x1xf32>
    %6 = vector.broadcast %5 : vector<1x16x1xf32> to vector<1x16x128xf32>
    %7 = arith.mulf %4, %6 : vector<1x16x128xf32>
    %cst = arith.constant 2.000000e-01 : f32
    %8 = vector.broadcast %cst : f32 to vector<1x16x128xf32>
    %9 = arith.mulf %8, %7 : vector<1x16x128xf32>
    %10 = arith.maximumf %7, %9 : vector<1x16x128xf32>
    %11 = arith.truncf %10 : vector<1x16x128xf32> to vector<1x16x128xbf16>
    %c0_8 = arith.constant 0 : index
    %c0_9 = arith.constant 0 : index
    %c0_10 = arith.constant 0 : index
    %12 = vector.load %arg5[%c0_8, %c0_9, %c0_10] : memref<1x16x128xbf16, #tpu.memory_space<vmem>>, vector<1x16x128xbf16>
    tpu.vector_store %arg5[%c0_8, %c0_9, %c0_10], %11 {strides = array<i32>} : memref<1x16x128xbf16, #tpu.memory_space<vmem>>, vector<1x16x128xbf16>,
    return
  }
  func.func @transform_0(%arg0: i32, %arg1: i32) -> (i32, i32, i32) {
    %c0_i32 = arith.constant 0 : i32
    %c0_i32_0 = arith.constant 0 : i32
    return %arg0, %c0_i32, %arg1 : i32, i32, i32
  }
  func.func @transform_1(%arg0: i32, %arg1: i32) -> (i32, i32, i32) {
    %c0_i32 = arith.constant 0 : i32
    %c0_i32_0 = arith.constant 0 : i32
    %c0_i32_1 = arith.constant 0 : i32
    return %arg0, %c0_i32, %c0_i32_0 : i32, i32, i32
  }
  func.func @transform_2(%arg0: i32, %arg1: i32) -> (i32, i32, i32) {
    %c0_i32 = arith.constant 0 : i32
    %c0_i32_0 = arith.constant 0 : i32
    %c0_i32_1 = arith.constant 0 : i32
    return %arg0, %c0_i32, %c0_i32_0 : i32, i32, i32
  }
  func.func @transform_3(%arg0: i32, %arg1: i32) -> (i32, i32, i32) {
    %c0_i32 = arith.constant 0 : i32
    %c0_i32_0 = arith.constant 0 : i32
    return %arg0, %c0_i32, %arg1 : i32, i32, i32
  }
}

module attributes {stable_mosaic.version = 11 : i64} {
  func.func @_in_apply_kernel(%arg0: i32, %arg1: i32, %arg2: memref<1x32x128xbf16, #tpu.memory_space<vmem>>, %arg3: memref<1x32x1xf32, #tpu.memory_space<vmem>>, %arg4: memref<1x32x1xf32, #tpu.memory_space<vmem>>, %arg5: memref<1x32x128xbf16, #tpu.memory_space<vmem>>) attributes {dimension_semantics = [#tpu.dimension_semantics<parallel>, #tpu.dimension_semantics<parallel>], iteration_bounds = array<i64: 2, 1>, scalar_prefetch = 0 : i64, scratch_operands = 0 : i64, tpu.core_type = #tpu.core_type<tc>, window_params = [{transform_indices = @transform_0, window_bounds = array<i64: 1, 32, 128>}, {transform_indices = @transform_1, window_bounds = array<i64: 1, 32, 1>}, {transform_indices = @transform_2, window_bounds = array<i64: 1, 32, 1>}, {transform_indices = @transform_3, window_bounds = array<i64: 1, 32, 128>}]} {
    %c0 = arith.constant 0 : index
    %c0_0 = arith.constant 0 : index
    %c0_1 = arith.constant 0 : index
    %0 = vector.load %arg2[%c0, %c0_0, %c0_1] : memref<1x32x128xbf16, #tpu.memory_space<vmem>>, vector<1x32x128xbf16>
    %1 = arith.extf %0 : vector<1x32x128xbf16> to vector<1x32x128xf32>
    %c0_2 = arith.constant 0 : index
    %c0_3 = arith.constant 0 : index
    %c0_4 = arith.constant 0 : index
    %2 = vector.load %arg3[%c0_2, %c0_3, %c0_4] : memref<1x32x1xf32, #tpu.memory_space<vmem>>, vector<1x32x1xf32>
    %3 = vector.broadcast %2 : vector<1x32x1xf32> to vector<1x32x128xf32>
    %4 = arith.subf %1, %3 : vector<1x32x128xf32>
    %c0_5 = arith.constant 0 : index
    %c0_6 = arith.constant 0 : index
    %c0_7 = arith.constant 0 : index
    %5 = vector.load %arg4[%c0_5, %c0_6, %c0_7] : memref<1x32x1xf32, #tpu.memory_space<vmem>>, vector<1x32x1xf32>
    %6 = vector.broadcast %5 : vector<1x32x1xf32> to vector<1x32x128xf32>
    %7 = arith.mulf %4, %6 : vector<1x32x128xf32>
    %cst = arith.constant 2.000000e-01 : f32
    %8 = vector.broadcast %cst : f32 to vector<1x32x128xf32>
    %9 = arith.mulf %8, %7 : vector<1x32x128xf32>
    %10 = arith.maximumf %7, %9 : vector<1x32x128xf32>
    %11 = arith.truncf %10 : vector<1x32x128xf32> to vector<1x32x128xbf16>
    %c0_8 = arith.constant 0 : index
    %c0_9 = arith.constant 0 : index
    %c0_10 = arith.constant 0 : index
    %12 = vector.load %arg5[%c0_8, %c0_9, %c0_10] : memref<1x32x128xbf16, #tpu.memory_space<vmem>>, vector<1x32x128xbf16>
    tpu.vector_store %arg5[%c0_8, %c0_9, %c0_10], %11 {strides = array<i32>} : memref<1x32x128xbf16, #tpu.memory_space<vmem>>, vector<1x32x128xbf16>,
    return
  }
  func.func @transform_0(%arg0: i32, %arg1: i32) -> (i32, i32, i32) {
    %c0_i32 = arith.constant 0 : i32
    %c0_i32_0 = arith.constant 0 : i32
    return %arg0, %c0_i32, %arg1 : i32, i32, i32
  }
  func.func @transform_1(%arg0: i32, %arg1: i32) -> (i32, i32, i32) {
    %c0_i32 = arith.constant 0 : i32
    %c0_i32_0 = arith.constant 0 : i32
    %c0_i32_1 = arith.constant 0 : i32
    return %arg0, %c0_i32, %c0_i32_0 : i32, i32, i32
  }
  func.func @transform_2(%arg0: i32, %arg1: i32) -> (i32, i32, i32) {
    %c0_i32 = arith.constant 0 : i32
    %c0_i32_0 = arith.constant 0 : i32
    %c0_i32_1 = arith.constant 0 : i32
    return %arg0, %c0_i32, %c0_i32_0 : i32, i32, i32
  }
  func.func @transform_3(%arg0: i32, %arg1: i32) -> (i32, i32, i32) {
    %c0_i32 = arith.constant 0 : i32
    %c0_i32_0 = arith.constant 0 : i32
    return %arg0, %c0_i32, %arg1 : i32, i32, i32
  }
}

module attributes {stable_mosaic.version = 11 : i64} {
  func.func @_conv_kernel(%arg0: i32, %arg1: i32, %arg2: i32, %arg3: memref<32x256xbf16, #tpu.memory_space<vmem>>, %arg4: memref<1x256x128xbf16, #tpu.memory_space<vmem>>, %arg5: memref<32x1xf32, #tpu.memory_space<vmem>>, %arg6: memref<1x32x128xbf16, #tpu.memory_space<vmem>>, %arg7: memref<1x32x1xf32, #tpu.memory_space<vmem>>, %arg8: memref<1x32x1xf32, #tpu.memory_space<vmem>>) attributes {dimension_semantics = [#tpu.dimension_semantics<parallel>, #tpu.dimension_semantics<arbitrary>, #tpu.dimension_semantics<arbitrary>], iteration_bounds = array<i64: 2, 1, 1>, scalar_prefetch = 0 : i64, scratch_operands = 0 : i64, tpu.core_type = #tpu.core_type<tc>, window_params = [{transform_indices = @transform_0, window_bounds = array<i64: 32, 256>}, {transform_indices = @transform_1, window_bounds = array<i64: 1, 256, 128>}, {pipeline_mode = #tpu.pipeline_mode<synchronous>, transform_indices = @transform_2, window_bounds = array<i64: 32, 1>}, {transform_indices = @transform_3, window_bounds = array<i64: 1, 32, 128>}, {transform_indices = @transform_4, window_bounds = array<i64: 1, 32, 1>}, {transform_indices = @transform_5, window_bounds = array<i64: 1, 32, 1>}]} {
    %c0 = arith.constant 0 : index
    %c0_0 = arith.constant 0 : index
    %0 = vector.load %arg3[%c0, %c0_0] : memref<32x256xbf16, #tpu.memory_space<vmem>>, vector<32x256xbf16>
    %c0_1 = arith.constant 0 : index
    %c0_2 = arith.constant 0 : index
    %c0_3 = arith.constant 0 : index
    %1 = vector.load %arg4[%c0_1, %c0_2, %c0_3] : memref<1x256x128xbf16, #tpu.memory_space<vmem>>, vector<1x256x128xbf16>
    %2 = vector.shape_cast %1 : vector<1x256x128xbf16> to vector<256x128xbf16>
    %cst = arith.constant dense<0.000000e+00> : vector<32x128xf32>
    %3 = tpu.matmul %0, %2, %cst {dimension_numbers = #tpu.dot_dimension_numbers<[1], [0], [0], [1], [0, 0, 1, 1], [], []>} : vector<32x256xbf16>, vector<256x128xbf16>, vector<32x128xf32> -> vector<32x128xf32>
    %c0_4 = arith.constant 0 : index
    %c0_5 = arith.constant 0 : index
    %4 = vector.load %arg5[%c0_4, %c0_5] : memref<32x1xf32, #tpu.memory_space<vmem>>, vector<32x1xf32>
    %5 = vector.broadcast %4 : vector<32x1xf32> to vector<32x128xf32>
    %6 = arith.addf %3, %5 : vector<32x128xf32>
    %7 = tpu.iota {dimensions = array<i32: 1>} : vector<32x128xi32>
    %c128_i32 = arith.constant 128 : i32
    %8 = arith.muli %arg1, %c128_i32 : i32
    %9 = vector.broadcast %8 : i32 to vector<32x128xi32>
    %10 = arith.addi %7, %9 : vector<32x128xi32>
    %c4_i32 = arith.constant 4 : i32
    %11 = vector.broadcast %c4_i32 : i32 to vector<32x128xi32>
    %12 = arith.cmpi slt, %10, %11 : vector<32x128xi32>
    %cst_6 = arith.constant 0.000000e+00 : f32
    %13 = vector.broadcast %cst_6 : f32 to vector<32x128xf32>
    %14 = arith.select %12, %6, %13 : vector<32x128xi1>, vector<32x128xf32>
    %c0_i32 = arith.constant 0 : i32
    %15 = arith.cmpi eq, %arg1, %c0_i32 : i32
    %16 = arith.extui %15 : i1 to i32
    %c0_i32_7 = arith.constant 0 : i32
    %17 = arith.cmpi ne, %16, %c0_i32_7 : i32
    scf.if %17 {
      %cst_25 = arith.constant 0.000000e+00 : f32
      %35 = vector.broadcast %cst_25 : f32 to vector<1x32x1xf32>
      %c0_26 = arith.constant 0 : index
      %c0_27 = arith.constant 0 : index
      %c0_28 = arith.constant 0 : index
      %36 = vector.load %arg7[%c0_26, %c0_27, %c0_28] : memref<1x32x1xf32, #tpu.memory_space<vmem>>, vector<1x32x1xf32>
      tpu.vector_store %arg7[%c0_26, %c0_27, %c0_28], %35 {strides = array<i32>} : memref<1x32x1xf32, #tpu.memory_space<vmem>>, vector<1x32x1xf32>,
      %cst_29 = arith.constant 0.000000e+00 : f32
      %37 = vector.broadcast %cst_29 : f32 to vector<1x32x1xf32>
      %c0_30 = arith.constant 0 : index
      %c0_31 = arith.constant 0 : index
      %c0_32 = arith.constant 0 : index
      %38 = vector.load %arg8[%c0_30, %c0_31, %c0_32] : memref<1x32x1xf32, #tpu.memory_space<vmem>>, vector<1x32x1xf32>
      tpu.vector_store %arg8[%c0_30, %c0_31, %c0_32], %37 {strides = array<i32>} : memref<1x32x1xf32, #tpu.memory_space<vmem>>, vector<1x32x1xf32>,
    } else {
    }
    %c0_8 = arith.constant 0 : index
    %c0_9 = arith.constant 0 : index
    %c0_10 = arith.constant 0 : index
    %18 = vector.load %arg7[%c0_8, %c0_9, %c0_10] : memref<1x32x1xf32, #tpu.memory_space<vmem>>, vector<1x32x1xf32>
    %cst_11 = arith.constant dense<0.000000e+00> : vector<32xf32>
    %19 = vector.multi_reduction <add>, %14, %cst_11 [1] : vector<32x128xf32> to vector<32xf32>
    %20 = vector.shape_cast %19 : vector<32xf32> to vector<32x1xf32>
    %21 = vector.shape_cast %20 : vector<32x1xf32> to vector<1x32x1xf32>
    %22 = arith.addf %18, %21 : vector<1x32x1xf32>
    %c0_12 = arith.constant 0 : index
    %c0_13 = arith.constant 0 : index
    %c0_14 = arith.constant 0 : index
    %23 = vector.load %arg7[%c0_12, %c0_13, %c0_14] : memref<1x32x1xf32, #tpu.memory_space<vmem>>, vector<1x32x1xf32>
    tpu.vector_store %arg7[%c0_12, %c0_13, %c0_14], %22 {strides = array<i32>} : memref<1x32x1xf32, #tpu.memory_space<vmem>>, vector<1x32x1xf32>,
    %c0_15 = arith.constant 0 : index
    %c0_16 = arith.constant 0 : index
    %c0_17 = arith.constant 0 : index
    %24 = vector.load %arg8[%c0_15, %c0_16, %c0_17] : memref<1x32x1xf32, #tpu.memory_space<vmem>>, vector<1x32x1xf32>
    %25 = arith.mulf %14, %14 : vector<32x128xf32>
    %cst_18 = arith.constant dense<0.000000e+00> : vector<32xf32>
    %26 = vector.multi_reduction <add>, %25, %cst_18 [1] : vector<32x128xf32> to vector<32xf32>
    %27 = vector.shape_cast %26 : vector<32xf32> to vector<32x1xf32>
    %28 = vector.shape_cast %27 : vector<32x1xf32> to vector<1x32x1xf32>
    %29 = arith.addf %24, %28 : vector<1x32x1xf32>
    %c0_19 = arith.constant 0 : index
    %c0_20 = arith.constant 0 : index
    %c0_21 = arith.constant 0 : index
    %30 = vector.load %arg8[%c0_19, %c0_20, %c0_21] : memref<1x32x1xf32, #tpu.memory_space<vmem>>, vector<1x32x1xf32>
    tpu.vector_store %arg8[%c0_19, %c0_20, %c0_21], %29 {strides = array<i32>} : memref<1x32x1xf32, #tpu.memory_space<vmem>>, vector<1x32x1xf32>,
    %31 = arith.truncf %6 : vector<32x128xf32> to vector<32x128xbf16>
    %c0_22 = arith.constant 0 : index
    %c0_23 = arith.constant 0 : index
    %c0_24 = arith.constant 0 : index
    %32 = vector.load %arg6[%c0_22, %c0_23, %c0_24] : memref<1x32x128xbf16, #tpu.memory_space<vmem>>, vector<1x32x128xbf16>
    %33 = vector.shape_cast %32 : vector<1x32x128xbf16> to vector<32x128xbf16>
    %34 = vector.shape_cast %31 : vector<32x128xbf16> to vector<1x32x128xbf16>
    tpu.vector_store %arg6[%c0_22, %c0_23, %c0_24], %34 {strides = array<i32>} : memref<1x32x128xbf16, #tpu.memory_space<vmem>>, vector<1x32x128xbf16>,
    return
  }
  func.func @transform_0(%arg0: i32, %arg1: i32, %arg2: i32) -> (i32, i32) {
    %c0_i32 = arith.constant 0 : i32
    %c0_i32_0 = arith.constant 0 : i32
    return %c0_i32, %arg2 : i32, i32
  }
  func.func @transform_1(%arg0: i32, %arg1: i32, %arg2: i32) -> (i32, i32, i32) {
    %c0_i32 = arith.constant 0 : i32
    return %arg0, %arg2, %arg1 : i32, i32, i32
  }
  func.func @transform_2(%arg0: i32, %arg1: i32, %arg2: i32) -> (i32, i32) {
    %c0_i32 = arith.constant 0 : i32
    %c0_i32_0 = arith.constant 0 : i32
    %c0_i32_1 = arith.constant 0 : i32
    return %c0_i32, %c0_i32_0 : i32, i32
  }
  func.func @transform_3(%arg0: i32, %arg1: i32, %arg2: i32) -> (i32, i32, i32) {
    %c0_i32 = arith.constant 0 : i32
    %c0_i32_0 = arith.constant 0 : i32
    return %arg0, %c0_i32, %arg1 : i32, i32, i32
  }
  func.func @transform_4(%arg0: i32, %arg1: i32, %arg2: i32) -> (i32, i32, i32) {
    %c0_i32 = arith.constant 0 : i32
    %c0_i32_0 = arith.constant 0 : i32
    %c0_i32_1 = arith.constant 0 : i32
    return %arg0, %c0_i32, %c0_i32_0 : i32, i32, i32
  }
  func.func @transform_5(%arg0: i32, %arg1: i32, %arg2: i32) -> (i32, i32, i32) {
    %c0_i32 = arith.constant 0 : i32
    %c0_i32_0 = arith.constant 0 : i32
    %c0_i32_1 = arith.constant 0 : i32
    return %arg0, %c0_i32, %c0_i32_0 : i32, i32, i32
  }
}

module attributes {stable_mosaic.version = 11 : i64} {
  func.func @_conv_kernel(%arg0: i32, %arg1: i32, %arg2: i32, %arg3: memref<8x512xbf16, #tpu.memory_space<vmem>>, %arg4: memref<1x512x128xbf16, #tpu.memory_space<vmem>>, %arg5: memref<8x1xf32, #tpu.memory_space<vmem>>, %arg6: memref<1x8x128xf32, #tpu.memory_space<vmem>>) attributes {dimension_semantics = [#tpu.dimension_semantics<parallel>, #tpu.dimension_semantics<parallel>, #tpu.dimension_semantics<arbitrary>], iteration_bounds = array<i64: 2, 1, 1>, scalar_prefetch = 0 : i64, scratch_operands = 0 : i64, tpu.core_type = #tpu.core_type<tc>, window_params = [{transform_indices = @transform_0, window_bounds = array<i64: 8, 512>}, {transform_indices = @transform_1, window_bounds = array<i64: 1, 512, 128>}, {pipeline_mode = #tpu.pipeline_mode<synchronous>, transform_indices = @transform_2, window_bounds = array<i64: 8, 1>}, {transform_indices = @transform_3, window_bounds = array<i64: 1, 8, 128>}]} {
    %c0 = arith.constant 0 : index
    %c0_0 = arith.constant 0 : index
    %0 = vector.load %arg3[%c0, %c0_0] : memref<8x512xbf16, #tpu.memory_space<vmem>>, vector<8x512xbf16>
    %c0_1 = arith.constant 0 : index
    %c0_2 = arith.constant 0 : index
    %c0_3 = arith.constant 0 : index
    %1 = vector.load %arg4[%c0_1, %c0_2, %c0_3] : memref<1x512x128xbf16, #tpu.memory_space<vmem>>, vector<1x512x128xbf16>
    %2 = vector.shape_cast %1 : vector<1x512x128xbf16> to vector<512x128xbf16>
    %cst = arith.constant dense<0.000000e+00> : vector<8x128xf32>
    %3 = tpu.matmul %0, %2, %cst {dimension_numbers = #tpu.dot_dimension_numbers<[1], [0], [0], [1], [0, 0, 1, 1], [], []>} : vector<8x512xbf16>, vector<512x128xbf16>, vector<8x128xf32> -> vector<8x128xf32>
    %c0_4 = arith.constant 0 : index
    %c0_5 = arith.constant 0 : index
    %4 = vector.load %arg5[%c0_4, %c0_5] : memref<8x1xf32, #tpu.memory_space<vmem>>, vector<8x1xf32>
    %5 = vector.broadcast %4 : vector<8x1xf32> to vector<8x128xf32>
    %6 = arith.addf %3, %5 : vector<8x128xf32>
    %c0_6 = arith.constant 0 : index
    %c0_7 = arith.constant 0 : index
    %c0_8 = arith.constant 0 : index
    %7 = vector.load %arg6[%c0_6, %c0_7, %c0_8] : memref<1x8x128xf32, #tpu.memory_space<vmem>>, vector<1x8x128xf32>
    %8 = vector.shape_cast %7 : vector<1x8x128xf32> to vector<8x128xf32>
    %9 = vector.shape_cast %6 : vector<8x128xf32> to vector<1x8x128xf32>
    tpu.vector_store %arg6[%c0_6, %c0_7, %c0_8], %9 {strides = array<i32>} : memref<1x8x128xf32, #tpu.memory_space<vmem>>, vector<1x8x128xf32>,
    return
  }
  func.func @transform_0(%arg0: i32, %arg1: i32, %arg2: i32) -> (i32, i32) {
    %c0_i32 = arith.constant 0 : i32
    %c0_i32_0 = arith.constant 0 : i32
    return %c0_i32, %arg2 : i32, i32
  }
  func.func @transform_1(%arg0: i32, %arg1: i32, %arg2: i32) -> (i32, i32, i32) {
    %c0_i32 = arith.constant 0 : i32
    return %arg0, %arg2, %arg1 : i32, i32, i32
  }
  func.func @transform_2(%arg0: i32, %arg1: i32, %arg2: i32) -> (i32, i32) {
    %c0_i32 = arith.constant 0 : i32
    %c0_i32_0 = arith.constant 0 : i32
    %c0_i32_1 = arith.constant 0 : i32
    return %c0_i32, %c0_i32_0 : i32, i32
  }
  func.func @transform_3(%arg0: i32, %arg1: i32, %arg2: i32) -> (i32, i32, i32) {
    %c0_i32 = arith.constant 0 : i32
    %c0_i32_0 = arith.constant 0 : i32
    return %arg0, %c0_i32, %arg1 : i32, i32, i32
  }
}

</mosaic_0001>

<llo_original>
// kernel: discriminator_forward.6
$region0: #{discriminator_forward.6}
  #allocation0 [shape = 'u32[]', space=smem, size = 0x4, offset = 0x4, fixed_abs, tag = 'smem constant byte address 0x4 - core index']
  #allocation1 [shape = 'u32[144,128]{1,0:T(1,128)}', space=vmem, size = 0x12000, scoped, tag = 'internal scratch']
  %s0 = inlined_call_operand.vmem [shape: bf16[8,64], index: 0, kind: input, shape index: {}]
  %s1 = inlined_call_operand.vmem [shape: bf16[2,64,128], index: 1, kind: input, shape index: {}]
  %s2 = inlined_call_operand.vmem [shape: f32[8,1], index: 2, kind: input, shape index: {}]
  %s3 = inlined_call_operand.vmem [shape: bf16[2,8,128], index: 3, kind: output, shape index: {}]
  %s4 = sld [smem:[#allocation0]]
  $region45: #{discriminator_forward.6} parent=0
    _
  %s6 = ssub.s32 1, %s4
  %s7 = scalar_select 0, %s6, %s4
  loop: start=0, step=1, limit=4
  $region2: #{discriminator_forward.6} parent=0 // loop_pre_header
    _
  $region3: #{discriminator_forward.6} parent=0 // loop_header
    %s9 = sphi 0, %s13
    %p10 = scmp.ge.s32.totalorder %s9, 4
    %s16 = sphi 0, %s35
    %s17 = sphi 0, %s31
    %s18 = sphi 0, %s27
    %s19 = sphi 0, %s16
    %s20 = sphi 0, %s17
    %s21 = sphi 0, %s18
    %s22 = sphi 0, %s19
    %s23 = sphi 0, %s20
    %s24 = sphi 0, %s21
    %s38 = sphi 0, %s40
    %s41 = sphi 0, %s38
    %s42 = sphi 0, %s41
    %s58 = sphi 0, %s42
    %s68 = sphi 0, %s70
    %s71 = sphi 0, %s68
    %s72 = sphi 0, %s71
    %s88 = sphi 0, %s72
    %s92 = sphi 0, %s92
    %s94 = sphi 0, %s92
    %s95 = sphi 0, %s94
    %s109 = sphi 0, %s95
    %s117 = sphi 0, %s119
    %s120 = sphi 0, %s117
    %s121 = sphi 0, %s120
    %s137 = sphi 0, %s121
  $region4: #{discriminator_forward.6} parent=0 // loop_header_branch
    %12 = sbr.rel (%p10) target = $region8
  $region5: #{discriminator_forward.6} parent=0 // loop_body
    %s14 = ssub.s32 %s9, 1
    %s15 = ssub.s32 %s9, 2
    %s25 = sadd.s32 1, %s18
    %p26 = scmp.ge.s32.totalorder %s25, 1
    %s27 = scalar_select %p26, 0, %s25
    %s28 = sadd.s32 1, %s17
    %s29 = scalar_select %p26, %s28, %s17
    %p30 = scmp.ge.s32.totalorder %s29, 1
    %s31 = scalar_select %p30, 0, %s29
    %s32 = sadd.s32 1, %s16
    %s33 = scalar_select %p30, %s32, %s16
    %p34 = scmp.ge.s32.totalorder %s33, 2
    %s35 = scalar_select %p34, 0, %s33
    %s36 = ssub.s32 %s18, %s27
    %p37 = scmp.eq.s32.totalorder %s36, 0
    %s39 = sadd.s32 %s38, 1
    %s40 = scalar_select %p37, %s38, %s39
    %p43 = pneg %p37
    %p44 = scmp.eq.s32.totalorder %s9, 1
    %p45 = por %p43, %p44
    %p46 = scmp.ne.s32.totalorder %s38, %s41
    %p47 = scmp.eq.s32.totalorder %s9, 0
    %p48 = por %p46, %p47
    %p49 = scmp.ne.s32.totalorder %s38, %s41
    %p50 = scmp.eq.s32.totalorder %s14, 1
    %p51 = por %p49, %p50
    %p52 = scmp.ne.s32.totalorder %s41, %s42
    %p53 = scmp.eq.s32.totalorder %s14, 0
    %p54 = por %p52, %p53
    %p55 = scmp.ne.s32.totalorder %s41, %s42
    %p56 = scmp.eq.s32.totalorder %s15, 1
    %p57 = por %p55, %p56
    %p59 = scmp.ne.s32.totalorder %s42, %s58
    %p60 = scmp.eq.s32.totalorder %s15, 0
    %p61 = por %p59, %p60
    %s62 = ssub.s32 %s16, %s35
    %s63 = ssub.s32 %s18, %s27
    %s64 = sor.u32 %s62, %s63
    %s65 = ssub.s32 %s17, %s31
    %s66 = sor.u32 %s64, %s65
    %p67 = scmp.eq.s32.totalorder %s66, 0
    %s69 = sadd.s32 %s68, 1
    %s70 = scalar_select %p67, %s68, %s69
    %p73 = pneg %p67
    %p74 = scmp.eq.s32.totalorder %s9, 1
    %p75 = por %p73, %p74
    %p76 = scmp.ne.s32.totalorder %s68, %s71
    %p77 = scmp.eq.s32.totalorder %s9, 0
    %p78 = por %p76, %p77
    %p79 = scmp.ne.s32.totalorder %s68, %s71
    %p80 = scmp.eq.s32.totalorder %s14, 1
    %p81 = por %p79, %p80
    %p82 = scmp.ne.s32.totalorder %s71, %s72
    %p83 = scmp.eq.s32.totalorder %s14, 0
    %p84 = por %p82, %p83
    %p85 = scmp.ne.s32.totalorder %s71, %s72
    %p86 = scmp.eq.s32.totalorder %s15, 1
    %p87 = por %p85, %p86
    %p89 = scmp.ne.s32.totalorder %s72, %s88
    %p90 = scmp.eq.s32.totalorder %s15, 0
    %p91 = por %p89, %p90
    %s93 = sadd.s32 %s92, 1
    %p96 = scmp.eq.s32.totalorder %s9, 1
    %p97 = scmp.ne.s32.totalorder %s92, %s94
    %p98 = scmp.eq.s32.totalorder %s9, 0
    %p99 = por %p97, %p98
    %p100 = scmp.ne.s32.totalorder %s92, %s94
    %p101 = scmp.eq.s32.totalorder %s14, 1
    %p102 = por %p100, %p101
    %p103 = scmp.ne.s32.totalorder %s94, %s95
    %p104 = scmp.eq.s32.totalorder %s14, 0
    %p105 = por %p103, %p104
    %p106 = scmp.ne.s32.totalorder %s94, %s95
    %p107 = scmp.eq.s32.totalorder %s15, 1
    %p108 = por %p106, %p107
    %p110 = scmp.ne.s32.totalorder %s95, %s109
    %p111 = scmp.eq.s32.totalorder %s15, 0
    %p112 = por %p110, %p111
    %s113 = ssub.s32 %s16, %s35
    %s114 = ssub.s32 %s17, %s31
    %s115 = sor.u32 %s113, %s114
    %p116 = scmp.eq.s32.totalorder %s115, 0
    %s118 = sadd.s32 %s117, 1
    %s119 = scalar_select %p116, %s117, %s118
    %p122 = pneg %p116
    %p123 = scmp.eq.s32.totalorder %s9, 1
    %p124 = por %p122, %p123
    %p125 = scmp.ne.s32.totalorder %s117, %s120
    %p126 = scmp.eq.s32.totalorder %s9, 0
    %p127 = por %p125, %p126
    %p128 = scmp.ne.s32.totalorder %s117, %s120
    %p129 = scmp.eq.s32.totalorder %s14, 1
    %p130 = por %p128, %p129
    %p131 = scmp.ne.s32.totalorder %s120, %s121
    %p132 = scmp.eq.s32.totalorder %s14, 0
    %p133 = por %p131, %p132
    %p134 = scmp.ne.s32.totalorder %s120, %s121
    %p135 = scmp.eq.s32.totalorder %s15, 1
    %p136 = por %p134, %p135
    %p138 = scmp.ne.s32.totalorder %s121, %s137
    %p139 = scmp.eq.s32.totalorder %s15, 0
    %p140 = por %p138, %p139
    %p141 = scmp.le.s32.totalorder 1, %s9
    %p142 = scmp.lt.s32.totalorder %s9, 3
    %p143 = pnand %p141, %p142
    %p144 = pneg %p143
    // Predicated region
    $region9: #{discriminator_forward.6} parent=5 // pred_check
      _
    $region10: #{discriminator_forward.6} parent=5 // pred_check_branch
      %146 = sbr.rel (%p143) target = $region12
    $region11: #{discriminator_forward.6} parent=5 // pred_region
      %s147 = ssub.s32 %s9, 1
      // Predicated region
      $region13: #{discriminator_forward.6} parent=11 // pred_check
        %p148 = pneg %p54
      $region14: #{discriminator_forward.6} parent=11 // pred_check_branch
        %150 = sbr.rel (%p148) target = $region16
      $region15: #{discriminator_forward.6} parent=11 // pred_region
        %p151 = scmp.lt.s32.totalorder %s21, 0
        %s152 = scalar_select %p151, %s21, 0
        %s153 = smul.addr %s152, 4
        %s154 = scalar_lea.vmem %s0, %s153
      $region16: #{discriminator_forward.6} parent=11 // pred_fallthru
        _
      // Predicated region
      $region17: #{discriminator_forward.6} parent=11 // pred_check
        %p155 = pneg %p105
      $region18: #{discriminator_forward.6} parent=11 // pred_check_branch
        %157 = sbr.rel (%p155) target = $region20
      $region19: #{discriminator_forward.6} parent=11 // pred_region
        _
      $region20: #{discriminator_forward.6} parent=11 // pred_fallthru
        _
    $region12: #{discriminator_forward.6} parent=5 // pred_fallthru
      _
    %p158 = scmp.lt.s32.totalorder %s9, 2
    // Predicated region
    $region21: #{discriminator_forward.6} parent=5 // pred_check
      %p159 = pneg %p158
    $region22: #{discriminator_forward.6} parent=5 // pred_check_branch
      %161 = sbr.rel (%p159) target = $region24
    $region23: #{discriminator_forward.6} parent=5 // pred_region
      // Predicated region
      $region25: #{discriminator_forward.6} parent=23 // pred_check
        %p162 = pneg %p78
      $region26: #{discriminator_forward.6} parent=23 // pred_check_branch
        %164 = sbr.rel (%p162) target = $region28
      $region27: #{discriminator_forward.6} parent=23 // pred_region
        %s165 = smul.u32 8, %s18
        %p166 = scmp.lt.s32.totalorder %s16, 1
        %s167 = scalar_select %p166, %s16, 1
        %p168 = scmp.lt.s32.totalorder %s165, 7
        %s169 = scalar_select %p168, %s165, 7
        %p170 = scmp.lt.s32.totalorder %s17, 0
        %s171 = scalar_select %p170, %s17, 0
        %s172 = sadd.s32 %s171, %s169
        %s173 = smul.addr %s167, 8
        %s174 = sadd.s32 %s172, %s173
        %s175 = smul.addr %s174, 4
        %s176 = scalar_lea.vmem %s1, %s175
        %s177 = smul.u32 8, %s18
      $region28: #{discriminator_forward.6} parent=23 // pred_fallthru
        _
    $region24: #{discriminator_forward.6} parent=5 // pred_fallthru
      _
    %p178 = scmp.le.s32.totalorder 1, %s9
    %p179 = scmp.lt.s32.totalorder %s9, 3
    %p180 = pnand %p178, %p179
    %p181 = pneg %p180
    // Predicated region
    $region29: #{discriminator_forward.6} parent=5 // pred_check
      _
    $region30: #{discriminator_forward.6} parent=5 // pred_check_branch
      %183 = sbr.rel (%p180) target = $region32
    $region31: #{discriminator_forward.6} parent=5 // pred_region
      %s184 = ssub.s32 %s9, 1
      %p185 = scmp.lt.s32.totalorder %s21, 0
      %s186 = scalar_select %p185, %s21, 0
      %s187 = smul.addr %s186, 4
      %s188 = scalar_lea.vmem %s0, %s187
      %p189 = pneg %p54
      %p190 = pneg %p51
      %s191 = smul.u32 8, %s21
      %p192 = scmp.lt.s32.totalorder %s19, 1
      %s193 = scalar_select %p192, %s19, 1
      %p194 = scmp.lt.s32.totalorder %s191, 7
      %s195 = scalar_select %p194, %s191, 7
      %p196 = scmp.lt.s32.totalorder %s20, 0
      %s197 = scalar_select %p196, %s20, 0
      %s198 = sadd.s32 %s197, %s195
      %s199 = smul.addr %s193, 8
      %s200 = sadd.s32 %s198, %s199
      %s201 = smul.addr %s200, 4
      %s202 = scalar_lea.vmem %s1, %s201
      %p203 = pneg %p84
      %p204 = pneg %p81
      %p205 = pneg %p105
      %p206 = pneg %p102
      %p207 = pneg %p133
      %p208 = pneg %p130
      %p209 = scmp.lt.s32.totalorder %s19, 1
      %s210 = scalar_select %p209, %s19, 1
      %p211 = scmp.lt.s32.totalorder %s20, 0
      %s212 = scalar_select %p211, %s20, 0
      %s213 = sadd.s32 %s212, %s210
      %s214 = smul.addr %s213, 4
      %s215 = scalar_lea.vmem %s3, %s214
      %p216 = scmp.lt.s32.totalorder %s21, 0
      %s217 = scalar_select %p216, %s21, 0
      %s218 = smul.addr %s217, 4
      %s219 = scalar_lea.vmem %s0, %s218
      %s220 = smul.u32 8, %s21
      %p221 = scmp.lt.s32.totalorder %s19, 1
      %s222 = scalar_select %p221, %s19, 1
      %p223 = scmp.lt.s32.totalorder %s220, 7
      %s224 = scalar_select %p223, %s220, 7
      %p225 = scmp.lt.s32.totalorder %s20, 0
      %s226 = scalar_select %p225, %s20, 0
      %s227 = sadd.s32 %s226, %s224
      %s228 = smul.addr %s222, 8
      %s229 = sadd.s32 %s227, %s228
      %s230 = smul.addr %s229, 4
      %s231 = scalar_lea.vmem %s1, %s230
      %s232 = smul.u32 8, %s21
      %p233 = scmp.lt.s32.totalorder %s19, 1
      %s234 = scalar_select %p233, %s19, 1
      %p235 = scmp.lt.s32.totalorder %s20, 0
      %s236 = scalar_select %p235, %s20, 0
      %s237 = sadd.s32 %s236, %s234
      %s238 = smul.addr %s237, 4
      %s239 = scalar_lea.vmem %s3, %s238
      %v241 = vld [vmem:[%s219] sm:$0xf]
      %v242 = vld [vmem:[%s231] sm:$0xf]
      %v243 = vld [vmem:[%s231 + $0x4] sm:$0xf]
      %v244 = vld [vmem:[%s231 + $0x8] sm:$0xf]
      %v245 = vld [vmem:[%s231 + $0xc] sm:$0xf]
      %v246 = vld [vmem:[%s231 + $0x10] sm:$0xf]
      %v247 = vld [vmem:[%s231 + $0x14] sm:$0xf]
      %v248 = vld [vmem:[%s231 + $0x18] sm:$0xf]
      %v249 = vld [vmem:[%s231 + $0x1c] sm:$0xf]
      %v250 = vld [vmem:[%s2] sm:$0xff]
      %252 = vset.pattern.permute.xlu0 0
      %253 = vperm.xlu0 %252, %v250
      %v254 = vpop.permute.xlu0 %253
      %v264 = vunpack.c.l.b16 %v242
      %v265 = vunpack.c.l.b16 %v243
      %v266 = vunpack.c.l.b16 %v244
      %v267 = vunpack.c.l.b16 %v245
      %v268 = vunpack.c.l.b16 %v246
      %v269 = vunpack.c.l.b16 %v247
      %v270 = vunpack.c.l.b16 %v248
      %v271 = vunpack.c.l.b16 %v249
      %v272 = vpack.c.b16 %v265, %v264
      %v273 = vpack.c.b16 %v267, %v266
      %v274 = vpack.c.b16 %v269, %v268
      %v275 = vpack.c.b16 %v271, %v270
      %vm280 = vcmask 523264
      %v282 = vsel %vm280, %v241, 0
      %284 = vmatprep.subr.bf16.mxu0 0
      %285 = vmatpush1.bf16.msra.mxu0 %v272
      %286 = vmatprep.subr.bf16.mxu0 0
      %287 = vmatpush1.bf16.msra.mxu0 %v273
      %288 = vmatprep.subr.bf16.mxu0 0
      %289 = vmatpush1.bf16.msra.mxu0 %v274
      %290 = vmatprep.subr.bf16.mxu0 0
      %291 = vmatpush1.bf16.msra.mxu0 %v275
      %292 = vmatprep.subr.bf16.mxu0 0
      %293 = vmatpush1.bf16.msra.mxu0 0
      %294 = vmatprep.subr.bf16.mxu0 0
      %295 = vmatpush1.bf16.msra.mxu0 0
      %296 = vmatprep.subr.bf16.mxu0 0
      %297 = vmatpush1.bf16.msra.mxu0 0
      %298 = vmatprep.subr.bf16.mxu0 0
      %299 = vmatpush1.bf16.msra.mxu0 0
      %300 = vmatprep.subr.bf16.mxu0 0
      %301 = vmatpush1.bf16.msra.mxu0 0
      %302 = vmatprep.subr.bf16.mxu0 0
      %303 = vmatpush1.bf16.msra.mxu0 0
      %304 = vmatprep.subr.bf16.mxu0 0
      %305 = vmatpush1.bf16.msra.mxu0 0
      %306 = vmatprep.subr.bf16.mxu0 0
      %307 = vmatpush1.bf16.msra.mxu0 0
      %308 = vmatprep.subr.bf16.mxu0 0
      %309 = vmatpush1.bf16.msra.mxu0 0
      %310 = vmatprep.subr.bf16.mxu0 0
      %311 = vmatpush1.bf16.msra.mxu0 0
      %312 = vmatprep.subr.bf16.mxu0 0
      %313 = vmatpush1.bf16.msra.mxu0 0
      %314 = vmatprep.subr.bf16.mxu0 0
      %315 = vmatpush1.bf16.msra.mxu0 0
      %316 = vmatprep.mubr.bf16.mxu0 0
      %317 = vmatmul.mubr.bf16.gmra.mrb[0].mxu0 %v282
      %v318 = vpop.f32.mrb[0].mxu0
      %v319 = vadd.f32 %v254, %v318
      %v320 = vpop.f32.mrb[0].mxu0
      %v321 = vpop.f32.mrb[0].mxu0
      %v322 = vpop.f32.mrb[0].mxu0
      %323 = vdwg.mxu0
      %v324 = vmul.f32 %v319, 0.2
      %v325 = vmax.f32 %v319, %v324
      %v326 = vpack.c.bf16 %v325, %v325
      %327 = vst [vmem:[%s239] sm:$0xf] %v326
      %p328 = scmp.lt.s32.totalorder %s19, 1
      %s329 = scalar_select %p328, %s19, 1
      %p330 = scmp.lt.s32.totalorder %s20, 0
      %s331 = scalar_select %p330, %s20, 0
      %s332 = sadd.s32 %s331, %s329
      %s333 = smul.addr %s332, 4
      %s334 = scalar_lea.vmem %s3, %s333
      // Predicated region
      $region33: #{discriminator_forward.6} parent=31 // pred_check
        %p335 = pneg %p130
      $region34: #{discriminator_forward.6} parent=31 // pred_check_branch
        %337 = sbr.rel (%p335) target = $region36
      $region35: #{discriminator_forward.6} parent=31 // pred_region
        _
      $region36: #{discriminator_forward.6} parent=31 // pred_fallthru
        _
    $region32: #{discriminator_forward.6} parent=5 // pred_fallthru
      _
    %p338 = scmp.le.s32.totalorder 2, %s9
    // Predicated region
    $region37: #{discriminator_forward.6} parent=5 // pred_check
      %p339 = pneg %p338
    $region38: #{discriminator_forward.6} parent=5 // pred_check_branch
      %341 = sbr.rel (%p339) target = $region40
    $region39: #{discriminator_forward.6} parent=5 // pred_region
      %s342 = ssub.s32 %s9, 2
      // Predicated region
      $region41: #{discriminator_forward.6} parent=39 // pred_check
        %p343 = pneg %p136
      $region42: #{discriminator_forward.6} parent=39 // pred_check_branch
        %345 = sbr.rel (%p343) target = $region44
      $region43: #{discriminator_forward.6} parent=39 // pred_region
        %p346 = scmp.lt.s32.totalorder %s22, 1
        %s347 = scalar_select %p346, %s22, 1
        %p348 = scmp.lt.s32.totalorder %s23, 0
        %s349 = scalar_select %p348, %s23, 0
        %s350 = sadd.s32 %s349, %s347
        %s351 = smul.addr %s350, 4
        %s352 = scalar_lea.vmem %s3, %s351
      $region44: #{discriminator_forward.6} parent=39 // pred_fallthru
        _
    $region40: #{discriminator_forward.6} parent=5 // pred_fallthru
      _
  $region6: #{discriminator_forward.6} parent=0 // loop_footer
    %s13 = sadd.s32 1, %s9
  $region7: #{discriminator_forward.6} parent=0 // loop_footer_branch
    %8 = sbr.rel target = $region3
  $region8: #{discriminator_forward.6} parent=0 // loop_exit
    _

// kernel: discriminator_forward.7
$region0: #{discriminator_forward.7}
  #allocation0 [shape = 'u32[]', space=smem, size = 0x4, offset = 0x4, fixed_abs, tag = 'smem constant byte address 0x4 - core index']
  #allocation1 [shape = 'u32[144,128]{1,0:T(1,128)}', space=vmem, size = 0x12000, scoped, tag = 'internal scratch']
  %s0 = inlined_call_operand.vmem [shape: bf16[16,128], index: 0, kind: input, shape index: {}]
  %s1 = inlined_call_operand.vmem [shape: bf16[2,128,128], index: 1, kind: input, shape index: {}]
  %s2 = inlined_call_operand.vmem [shape: f32[16,1], index: 2, kind: input, shape index: {}]
  %s3 = inlined_call_operand.vmem [shape: bf16[2,16,128], index: 3, kind: output, shape index: {0}]
  %s4 = inlined_call_operand.vmem [shape: f32[2,16,1], index: 4, kind: output, shape index: {1}]
  %s5 = inlined_call_operand.vmem [shape: f32[2,16,1], index: 5, kind: output, shape index: {2}]
  %6 = xla_tuple %s3, %s4, %s5
  %s7 = sld [smem:[#allocation0]]
  $region65: #{discriminator_forward.7} parent=0
    _
  %s9 = ssub.s32 1, %s7
  %s10 = scalar_select 0, %s9, %s7
  loop: start=0, step=1, limit=4
  $region2: #{discriminator_forward.7} parent=0 // loop_pre_header
    _
  $region3: #{discriminator_forward.7} parent=0 // loop_header
    %s12 = sphi 0, %s16
    %p13 = scmp.ge.s32.totalorder %s12, 4
    %s19 = sphi 0, %s38
    %s20 = sphi 0, %s34
    %s21 = sphi 0, %s30
    %s22 = sphi 0, %s19
    %s23 = sphi 0, %s20
    %s24 = sphi 0, %s21
    %s25 = sphi 0, %s22
    %s26 = sphi 0, %s23
    %s27 = sphi 0, %s24
    %s41 = sphi 0, %s43
    %s44 = sphi 0, %s41
    %s45 = sphi 0, %s44
    %s61 = sphi 0, %s45
    %s71 = sphi 0, %s73
    %s74 = sphi 0, %s71
    %s75 = sphi 0, %s74
    %s91 = sphi 0, %s75
    %s95 = sphi 0, %s95
    %s97 = sphi 0, %s95
    %s98 = sphi 0, %s97
    %s112 = sphi 0, %s98
    %s120 = sphi 0, %s122
    %s123 = sphi 0, %s120
    %s124 = sphi 0, %s123
    %s140 = sphi 0, %s124
    %s146 = sphi 0, %s148
    %s149 = sphi 0, %s146
    %s150 = sphi 0, %s149
    %s166 = sphi 0, %s150
    %s172 = sphi 0, %s174
    %s175 = sphi 0, %s172
    %s176 = sphi 0, %s175
    %s192 = sphi 0, %s176
  $region4: #{discriminator_forward.7} parent=0 // loop_header_branch
    %15 = sbr.rel (%p13) target = $region8
  $region5: #{discriminator_forward.7} parent=0 // loop_body
    %s17 = ssub.s32 %s12, 1
    %s18 = ssub.s32 %s12, 2
    %s28 = sadd.s32 1, %s21
    %p29 = scmp.ge.s32.totalorder %s28, 1
    %s30 = scalar_select %p29, 0, %s28
    %s31 = sadd.s32 1, %s20
    %s32 = scalar_select %p29, %s31, %s20
    %p33 = scmp.ge.s32.totalorder %s32, 1
    %s34 = scalar_select %p33, 0, %s32
    %s35 = sadd.s32 1, %s19
    %s36 = scalar_select %p33, %s35, %s19
    %p37 = scmp.ge.s32.totalorder %s36, 2
    %s38 = scalar_select %p37, 0, %s36
    %s39 = ssub.s32 %s21, %s30
    %p40 = scmp.eq.s32.totalorder %s39, 0
    %s42 = sadd.s32 %s41, 1
    %s43 = scalar_select %p40, %s41, %s42
    %p46 = pneg %p40
    %p47 = scmp.eq.s32.totalorder %s12, 1
    %p48 = por %p46, %p47
    %p49 = scmp.ne.s32.totalorder %s41, %s44
    %p50 = scmp.eq.s32.totalorder %s12, 0
    %p51 = por %p49, %p50
    %p52 = scmp.ne.s32.totalorder %s41, %s44
    %p53 = scmp.eq.s32.totalorder %s17, 1
    %p54 = por %p52, %p53
    %p55 = scmp.ne.s32.totalorder %s44, %s45
    %p56 = scmp.eq.s32.totalorder %s17, 0
    %p57 = por %p55, %p56
    %p58 = scmp.ne.s32.totalorder %s44, %s45
    %p59 = scmp.eq.s32.totalorder %s18, 1
    %p60 = por %p58, %p59
    %p62 = scmp.ne.s32.totalorder %s45, %s61
    %p63 = scmp.eq.s32.totalorder %s18, 0
    %p64 = por %p62, %p63
    %s65 = ssub.s32 %s19, %s38
    %s66 = ssub.s32 %s21, %s30
    %s67 = sor.u32 %s65, %s66
    %s68 = ssub.s32 %s20, %s34
    %s69 = sor.u32 %s67, %s68
    %p70 = scmp.eq.s32.totalorder %s69, 0
    %s72 = sadd.s32 %s71, 1
    %s73 = scalar_select %p70, %s71, %s72
    %p76 = pneg %p70
    %p77 = scmp.eq.s32.totalorder %s12, 1
    %p78 = por %p76, %p77
    %p79 = scmp.ne.s32.totalorder %s71, %s74
    %p80 = scmp.eq.s32.totalorder %s12, 0
    %p81 = por %p79, %p80
    %p82 = scmp.ne.s32.totalorder %s71, %s74
    %p83 = scmp.eq.s32.totalorder %s17, 1
    %p84 = por %p82, %p83
    %p85 = scmp.ne.s32.totalorder %s74, %s75
    %p86 = scmp.eq.s32.totalorder %s17, 0
    %p87 = por %p85, %p86
    %p88 = scmp.ne.s32.totalorder %s74, %s75
    %p89 = scmp.eq.s32.totalorder %s18, 1
    %p90 = por %p88, %p89
    %p92 = scmp.ne.s32.totalorder %s75, %s91
    %p93 = scmp.eq.s32.totalorder %s18, 0
    %p94 = por %p92, %p93
    %s96 = sadd.s32 %s95, 1
    %p99 = scmp.eq.s32.totalorder %s12, 1
    %p100 = scmp.ne.s32.totalorder %s95, %s97
    %p101 = scmp.eq.s32.totalorder %s12, 0
    %p102 = por %p100, %p101
    %p103 = scmp.ne.s32.totalorder %s95, %s97
    %p104 = scmp.eq.s32.totalorder %s17, 1
    %p105 = por %p103, %p104
    %p106 = scmp.ne.s32.totalorder %s97, %s98
    %p107 = scmp.eq.s32.totalorder %s17, 0
    %p108 = por %p106, %p107
    %p109 = scmp.ne.s32.totalorder %s97, %s98
    %p110 = scmp.eq.s32.totalorder %s18, 1
    %p111 = por %p109, %p110
    %p113 = scmp.ne.s32.totalorder %s98, %s112
    %p114 = scmp.eq.s32.totalorder %s18, 0
    %p115 = por %p113, %p114
    %s116 = ssub.s32 %s19, %s38
    %s117 = ssub.s32 %s20, %s34
    %s118 = sor.u32 %s116, %s117
    %p119 = scmp.eq.s32.totalorder %s118, 0
    %s121 = sadd.s32 %s120, 1
    %s122 = scalar_select %p119, %s120, %s121
    %p125 = pneg %p119
    %p126 = scmp.eq.s32.totalorder %s12, 1
    %p127 = por %p125, %p126
    %p128 = scmp.ne.s32.totalorder %s120, %s123
    %p129 = scmp.eq.s32.totalorder %s12, 0
    %p130 = por %p128, %p129
    %p131 = scmp.ne.s32.totalorder %s120, %s123
    %p132 = scmp.eq.s32.totalorder %s17, 1
    %p133 = por %p131, %p132
    %p134 = scmp.ne.s32.totalorder %s123, %s124
    %p135 = scmp.eq.s32.totalorder %s17, 0
    %p136 = por %p134, %p135
    %p137 = scmp.ne.s32.totalorder %s123, %s124
    %p138 = scmp.eq.s32.totalorder %s18, 1
    %p139 = por %p137, %p138
    %p141 = scmp.ne.s32.totalorder %s124, %s140
    %p142 = scmp.eq.s32.totalorder %s18, 0
    %p143 = por %p141, %p142
    %s144 = ssub.s32 %s19, %s38
    %p145 = scmp.eq.s32.totalorder %s144, 0
    %s147 = sadd.s32 %s146, 1
    %s148 = scalar_select %p145, %s146, %s147
    %p151 = pneg %p145
    %p152 = scmp.eq.s32.totalorder %s12, 1
    %p153 = por %p151, %p152
    %p154 = scmp.ne.s32.totalorder %s146, %s149
    %p155 = scmp.eq.s32.totalorder %s12, 0
    %p156 = por %p154, %p155
    %p157 = scmp.ne.s32.totalorder %s146, %s149
    %p158 = scmp.eq.s32.totalorder %s17, 1
    %p159 = por %p157, %p158
    %p160 = scmp.ne.s32.totalorder %s149, %s150
    %p161 = scmp.eq.s32.totalorder %s17, 0
    %p162 = por %p160, %p161
    %p163 = scmp.ne.s32.totalorder %s149, %s150
    %p164 = scmp.eq.s32.totalorder %s18, 1
    %p165 = por %p163, %p164
    %p167 = scmp.ne.s32.totalorder %s150, %s166
    %p168 = scmp.eq.s32.totalorder %s18, 0
    %p169 = por %p167, %p168
    %s170 = ssub.s32 %s19, %s38
    %p171 = scmp.eq.s32.totalorder %s170, 0
    %s173 = sadd.s32 %s172, 1
    %s174 = scalar_select %p171, %s172, %s173
    %p177 = pneg %p171
    %p178 = scmp.eq.s32.totalorder %s12, 1
    %p179 = por %p177, %p178
    %p180 = scmp.ne.s32.totalorder %s172, %s175
    %p181 = scmp.eq.s32.totalorder %s12, 0
    %p182 = por %p180, %p181
    %p183 = scmp.ne.s32.totalorder %s172, %s175
    %p184 = scmp.eq.s32.totalorder %s17, 1
    %p185 = por %p183, %p184
    %p186 = scmp.ne.s32.totalorder %s175, %s176
    %p187 = scmp.eq.s32.totalorder %s17, 0
    %p188 = por %p186, %p187
    %p189 = scmp.ne.s32.totalorder %s175, %s176
    %p190 = scmp.eq.s32.totalorder %s18, 1
    %p191 = por %p189, %p190
    %p193 = scmp.ne.s32.totalorder %s176, %s192
    %p194 = scmp.eq.s32.totalorder %s18, 0
    %p195 = por %p193, %p194
    %p196 = scmp.le.s32.totalorder 1, %s12
    %p197 = scmp.lt.s32.totalorder %s12, 3
    %p198 = pnand %p196, %p197
    %p199 = pneg %p198
    // Predicated region
    $region9: #{discriminator_forward.7} parent=5 // pred_check
      _
    $region10: #{discriminator_forward.7} parent=5 // pred_check_branch
      %201 = sbr.rel (%p198) target = $region12
    $region11: #{discriminator_forward.7} parent=5 // pred_region
      %s202 = ssub.s32 %s12, 1
      // Predicated region
      $region13: #{discriminator_forward.7} parent=11 // pred_check
        %p203 = pneg %p57
      $region14: #{discriminator_forward.7} parent=11 // pred_check_branch
        %205 = sbr.rel (%p203) target = $region16
      $region15: #{discriminator_forward.7} parent=11 // pred_region
        %p206 = scmp.lt.s32.totalorder %s24, 0
        %s207 = scalar_select %p206, %s24, 0
        %s208 = smul.addr %s207, 4
        %s209 = scalar_lea.vmem %s0, %s208
      $region16: #{discriminator_forward.7} parent=11 // pred_fallthru
        _
      // Predicated region
      $region17: #{discriminator_forward.7} parent=11 // pred_check
        %p210 = pneg %p108
      $region18: #{discriminator_forward.7} parent=11 // pred_check_branch
        %212 = sbr.rel (%p210) target = $region20
      $region19: #{discriminator_forward.7} parent=11 // pred_region
        _
      $region20: #{discriminator_forward.7} parent=11 // pred_fallthru
        _
    $region12: #{discriminator_forward.7} parent=5 // pred_fallthru
      _
    %p213 = scmp.lt.s32.totalorder %s12, 2
    // Predicated region
    $region21: #{discriminator_forward.7} parent=5 // pred_check
      %p214 = pneg %p213
    $region22: #{discriminator_forward.7} parent=5 // pred_check_branch
      %216 = sbr.rel (%p214) target = $region24
    $region23: #{discriminator_forward.7} parent=5 // pred_region
      // Predicated region
      $region25: #{discriminator_forward.7} parent=23 // pred_check
        %p217 = pneg %p81
      $region26: #{discriminator_forward.7} parent=23 // pred_check_branch
        %219 = sbr.rel (%p217) target = $region28
      $region27: #{discriminator_forward.7} parent=23 // pred_region
        %s220 = smul.u32 16, %s21
        %p221 = scmp.lt.s32.totalorder %s19, 1
        %s222 = scalar_select %p221, %s19, 1
        %p223 = scmp.lt.s32.totalorder %s220, 15
        %s224 = scalar_select %p223, %s220, 15
        %p225 = scmp.lt.s32.totalorder %s20, 0
        %s226 = scalar_select %p225, %s20, 0
        %s227 = sadd.s32 %s226, %s224
        %s228 = smul.addr %s222, 16
        %s229 = sadd.s32 %s227, %s228
        %s230 = smul.addr %s229, 4
        %s231 = scalar_lea.vmem %s1, %s230
        %s232 = smul.u32 16, %s21
      $region28: #{discriminator_forward.7} parent=23 // pred_fallthru
        _
    $region24: #{discriminator_forward.7} parent=5 // pred_fallthru
      _
    %p233 = scmp.le.s32.totalorder 1, %s12
    %p234 = scmp.lt.s32.totalorder %s12, 3
    %p235 = pnand %p233, %p234
    %p236 = pneg %p235
    // Predicated region
    $region29: #{discriminator_forward.7} parent=5 // pred_check
      _
    $region30: #{discriminator_forward.7} parent=5 // pred_check_branch
      %238 = sbr.rel (%p235) target = $region32
    $region31: #{discriminator_forward.7} parent=5 // pred_region
      %s239 = ssub.s32 %s12, 1
      %p240 = scmp.lt.s32.totalorder %s24, 0
      %s241 = scalar_select %p240, %s24, 0
      %s242 = smul.addr %s241, 4
      %s243 = scalar_lea.vmem %s0, %s242
      %p244 = pneg %p57
      %p245 = pneg %p54
      %s246 = smul.u32 16, %s24
      %p247 = scmp.lt.s32.totalorder %s22, 1
      %s248 = scalar_select %p247, %s22, 1
      %p249 = scmp.lt.s32.totalorder %s246, 15
      %s250 = scalar_select %p249, %s246, 15
      %p251 = scmp.lt.s32.totalorder %s23, 0
      %s252 = scalar_select %p251, %s23, 0
      %s253 = sadd.s32 %s252, %s250
      %s254 = smul.addr %s248, 16
      %s255 = sadd.s32 %s253, %s254
      %s256 = smul.addr %s255, 4
      %s257 = scalar_lea.vmem %s1, %s256
      %p258 = pneg %p87
      %p259 = pneg %p84
      %p260 = pneg %p108
      %p261 = pneg %p105
      %p262 = pneg %p136
      %p263 = pneg %p133
      %p264 = scmp.lt.s32.totalorder %s22, 1
      %s265 = scalar_select %p264, %s22, 1
      %p266 = scmp.lt.s32.totalorder %s23, 0
      %s267 = scalar_select %p266, %s23, 0
      %s268 = smul.addr %s265, 2
      %s269 = sadd.s32 %s267, %s268
      %s270 = smul.addr %s269, 4
      %s271 = scalar_lea.vmem %s3, %s270
      %p272 = pneg %p162
      %p273 = pneg %p159
      %p274 = scmp.lt.s32.totalorder %s22, 1
      %s275 = scalar_select %p274, %s22, 1
      %s276 = smul.addr %s275, 2
      %s277 = smul.addr %s276, 8
      %s278 = scalar_lea.vmem %s4, %s277
      %p279 = pneg %p188
      %p280 = pneg %p185
      %p281 = scmp.lt.s32.totalorder %s22, 1
      %s282 = scalar_select %p281, %s22, 1
      %s283 = smul.addr %s282, 2
      %s284 = smul.addr %s283, 8
      %s285 = scalar_lea.vmem %s5, %s284
      %p286 = scmp.lt.s32.totalorder %s24, 0
      %s287 = scalar_select %p286, %s24, 0
      %s288 = smul.addr %s287, 4
      %s289 = scalar_lea.vmem %s0, %s288
      %s290 = smul.u32 16, %s24
      %p291 = scmp.lt.s32.totalorder %s22, 1
      %s292 = scalar_select %p291, %s22, 1
      %p293 = scmp.lt.s32.totalorder %s290, 15
      %s294 = scalar_select %p293, %s290, 15
      %p295 = scmp.lt.s32.totalorder %s23, 0
      %s296 = scalar_select %p295, %s23, 0
      %s297 = sadd.s32 %s296, %s294
      %s298 = smul.addr %s292, 16
      %s299 = sadd.s32 %s297, %s298
      %s300 = smul.addr %s299, 4
      %s301 = scalar_lea.vmem %s1, %s300
      %s302 = smul.u32 16, %s24
      %p303 = scmp.lt.s32.totalorder %s22, 1
      %s304 = scalar_select %p303, %s22, 1
      %p305 = scmp.lt.s32.totalorder %s23, 0
      %s306 = scalar_select %p305, %s23, 0
      %s307 = smul.addr %s304, 2
      %s308 = sadd.s32 %s306, %s307
      %s309 = smul.addr %s308, 4
      %s310 = scalar_lea.vmem %s3, %s309
      %p311 = scmp.lt.s32.totalorder %s22, 1
      %s312 = scalar_select %p311, %s22, 1
      %s313 = smul.addr %s312, 2
      %s314 = smul.addr %s313, 8
      %s315 = scalar_lea.vmem %s4, %s314
      %p316 = scmp.lt.s32.totalorder %s22, 1
      %s317 = scalar_select %p316, %s22, 1
      %s318 = smul.addr %s317, 2
      %s319 = smul.addr %s318, 8
      %s320 = scalar_lea.vmem %s5, %s319
      %v322 = vld [vmem:[%s289] sm:$0xf]
      %v323 = vld [vmem:[%s289 + $0x4] sm:$0xf]
      %v324 = vld [vmem:[%s301] sm:$0xf]
      %v325 = vld [vmem:[%s301 + $0x4] sm:$0xf]
      %v326 = vld [vmem:[%s301 + $0x8] sm:$0xf]
      %v327 = vld [vmem:[%s301 + $0xc] sm:$0xf]
      %v328 = vld [vmem:[%s301 + $0x10] sm:$0xf]
      %v329 = vld [vmem:[%s301 + $0x14] sm:$0xf]
      %v330 = vld [vmem:[%s301 + $0x18] sm:$0xf]
      %v331 = vld [vmem:[%s301 + $0x1c] sm:$0xf]
      %v332 = vld [vmem:[%s301 + $0x20] sm:$0xf]
      %v333 = vld [vmem:[%s301 + $0x24] sm:$0xf]
      %v334 = vld [vmem:[%s301 + $0x28] sm:$0xf]
      %v335 = vld [vmem:[%s301 + $0x2c] sm:$0xf]
      %v336 = vld [vmem:[%s301 + $0x30] sm:$0xf]
      %v337 = vld [vmem:[%s301 + $0x34] sm:$0xf]
      %v338 = vld [vmem:[%s301 + $0x38] sm:$0xf]
      %v339 = vld [vmem:[%s301 + $0x3c] sm:$0xf]
      %v340 = vld [vmem:[%s2] sm:$0xff]
      %v341 = vld [vmem:[%s2 + $0x8] sm:$0xff]
      %343 = vset.pattern.permute.xlu0 0
      %344 = vperm.xlu0 %343, %v340
      %v345 = vpop.permute.xlu0 %344
      %348 = vset.pattern.permute.xlu0 0
      %349 = vperm.xlu0 %348, %v341
      %v350 = vpop.permute.xlu0 %349
      %v354 = vunpack.c.l.b16 %v322
      %v355 = vunpack.c.l.b16 %v323
      %v356 = vpack.c.b16 %v355, %v354
      %v374 = vunpack.c.l.b16 %v324
      %v375 = vunpack.c.l.b16 %v325
      %v376 = vunpack.c.l.b16 %v326
      %v377 = vunpack.c.l.b16 %v327
      %v378 = vunpack.c.l.b16 %v328
      %v379 = vunpack.c.l.b16 %v329
      %v380 = vunpack.c.l.b16 %v330
      %v381 = vunpack.c.l.b16 %v331
      %v382 = vunpack.c.l.b16 %v332
      %v383 = vunpack.c.l.b16 %v333
      %v384 = vunpack.c.l.b16 %v334
      %v385 = vunpack.c.l.b16 %v335
      %v386 = vunpack.c.l.b16 %v336
      %v387 = vunpack.c.l.b16 %v337
      %v388 = vunpack.c.l.b16 %v338
      %v389 = vunpack.c.l.b16 %v339
      %v390 = vpack.c.b16 %v375, %v374
      %v391 = vpack.c.b16 %v377, %v376
      %v392 = vpack.c.b16 %v379, %v378
      %v393 = vpack.c.b16 %v381, %v380
      %v394 = vpack.c.b16 %v383, %v382
      %v395 = vpack.c.b16 %v385, %v384
      %v396 = vpack.c.b16 %v387, %v386
      %v397 = vpack.c.b16 %v389, %v388
      %406 = vmatprep.subr.bf16.mxu0 0
      %407 = vmatpush1.bf16.msra.mxu0 %v390
      %408 = vmatprep.subr.bf16.mxu0 0
      %409 = vmatpush1.bf16.msra.mxu0 %v391
      %410 = vmatprep.subr.bf16.mxu0 0
      %411 = vmatpush1.bf16.msra.mxu0 %v392
      %412 = vmatprep.subr.bf16.mxu0 0
      %413 = vmatpush1.bf16.msra.mxu0 %v393
      %414 = vmatprep.subr.bf16.mxu0 0
      %415 = vmatpush1.bf16.msra.mxu0 %v394
      %416 = vmatprep.subr.bf16.mxu0 0
      %417 = vmatpush1.bf16.msra.mxu0 %v395
      %418 = vmatprep.subr.bf16.mxu0 0
      %419 = vmatpush1.bf16.msra.mxu0 %v396
      %420 = vmatprep.subr.bf16.mxu0 0
      %421 = vmatpush1.bf16.msra.mxu0 %v397
      %422 = vmatprep.subr.bf16.mxu0 0
      %423 = vmatpush1.bf16.msra.mxu0 0
      %424 = vmatprep.subr.bf16.mxu0 0
      %425 = vmatpush1.bf16.msra.mxu0 0
      %426 = vmatprep.subr.bf16.mxu0 0
      %427 = vmatpush1.bf16.msra.mxu0 0
      %428 = vmatprep.subr.bf16.mxu0 0
      %429 = vmatpush1.bf16.msra.mxu0 0
      %430 = vmatprep.subr.bf16.mxu0 0
      %431 = vmatpush1.bf16.msra.mxu0 0
      %432 = vmatprep.subr.bf16.mxu0 0
      %433 = vmatpush1.bf16.msra.mxu0 0
      %434 = vmatprep.subr.bf16.mxu0 0
      %435 = vmatpush1.bf16.msra.mxu0 0
      %436 = vmatprep.subr.bf16.mxu0 0
      %437 = vmatpush1.bf16.msra.mxu0 0
      %438 = vmatprep.mubr.bf16.mxu0 0
      %439 = vmatmul.mubr.bf16.gmra.mrb[0].mxu0 %v356
      %v440 = vpop.f32.mrb[0].mxu0
      %v441 = vadd.f32 %v345, %v440
      %v442 = vpop.f32.mrb[0].mxu0
      %v443 = vpop.f32.mrb[0].mxu0
      %v444 = vadd.f32 %v350, %v443
      %v445 = vpop.f32.mrb[0].mxu0
      %446 = vdwg.mxu0
      %v447 = vlaneseq
      %v448 = vand.u32 %v447, 127
      %s449 = smul.u32 %s23, 128
      %v450 = vstv %s449
      %v451 = vadd.s32 %v448, %v450
      %vm452 = vcmp.lt.s32.totalorder %v451, 16
      %v453 = vsel %vm452, %v441, 0.0
      %v454 = vsel %vm452, %v444, 0.0
      %p455 = scmp.eq.s32.totalorder %s23, 0
      // Predicated region
      $region33: #{discriminator_forward.7} parent=31 // pred_check
        %p456 = pneg %p455
      $region34: #{discriminator_forward.7} parent=31 // pred_check_branch
        %458 = sbr.rel (%p456) target = $region36
      $region35: #{discriminator_forward.7} parent=31 // pred_region
        %vm459 = vcmask 7168
        %460 = vst.msk [vmem:[%s315] sm:$0xff] %vm459, 0.0
        %461 = vst.msk [vmem:[%s315 + $0x8] sm:$0xff] %vm459, 0.0
        %462 = vst.msk [vmem:[%s320] sm:$0xff] %vm459, 0.0
        %463 = vst.msk [vmem:[%s320 + $0x8] sm:$0xff] %vm459, 0.0
      $region36: #{discriminator_forward.7} parent=31 // pred_fallthru
        _
      %v464 = vld [vmem:[%s315] sm:$0xff]
      %v465 = vld [vmem:[%s315 + $0x8] sm:$0xff]
      %466 = vadd.xlane.f32.xlu0 %v453
      %v467 = vpop.xlane.xlu0 %466
      %468 = vadd.xlane.f32.xlu0 %v454
      %v469 = vpop.xlane.xlu0 %468
      %v470 = vadd.f32 %v464, %v467
      %v471 = vadd.f32 %v465, %v469
      %vm472 = vcmask 7168
      %473 = vst.msk [vmem:[%s315] sm:$0xff] %vm472, %v470
      %474 = vst.msk [vmem:[%s315 + $0x8] sm:$0xff] %vm472, %v471
      %v475 = vld [vmem:[%s320] sm:$0xff]
      %v476 = vld [vmem:[%s320 + $0x8] sm:$0xff]
      %v477 = vmul.f32 %v453, %v453
      %v478 = vmul.f32 %v454, %v454
      %479 = vadd.xlane.f32.xlu0 %v477
      %v480 = vpop.xlane.xlu0 %479
      %481 = vadd.xlane.f32.xlu0 %v478
      %v482 = vpop.xlane.xlu0 %481
      %v483 = vadd.f32 %v475, %v480
      %v484 = vadd.f32 %v476, %v482
      %485 = vst.msk [vmem:[%s320] sm:$0xff] %vm472, %v483
      %486 = vst.msk [vmem:[%s320 + $0x8] sm:$0xff] %vm472, %v484
      %v487 = vpack.c.bf16 %v444, %v441
      %v489 = vunpack.c.l.b16 %v487
      %v490 = vunpack.c.h.b16 %v487
      %v491 = vpack.c.b16 %v489, %v489
      %v492 = vpack.c.b16 %v490, %v490
      %495 = vst [vmem:[%s310] sm:$0xf] %v491
      %496 = vst [vmem:[%s310 + $0x4] sm:$0xf] %v492
      %p497 = scmp.lt.s32.totalorder %s22, 1
      %s498 = scalar_select %p497, %s22, 1
      %p499 = scmp.lt.s32.totalorder %s23, 0
      %s500 = scalar_select %p499, %s23, 0
      %s501 = smul.addr %s498, 2
      %s502 = sadd.s32 %s500, %s501
      %s503 = smul.addr %s502, 4
      %s504 = scalar_lea.vmem %s3, %s503
      %p505 = scmp.lt.s32.totalorder %s22, 1
      %s506 = scalar_select %p505, %s22, 1
      %s507 = smul.addr %s506, 2
      %s508 = smul.addr %s507, 8
      %s509 = scalar_lea.vmem %s4, %s508
      %p510 = scmp.lt.s32.totalorder %s22, 1
      %s511 = scalar_select %p510, %s22, 1
      %s512 = smul.addr %s511, 2
      %s513 = smul.addr %s512, 8
      %s514 = scalar_lea.vmem %s5, %s513
      // Predicated region
      $region37: #{discriminator_forward.7} parent=31 // pred_check
        %p515 = pneg %p133
      $region38: #{discriminator_forward.7} parent=31 // pred_check_branch
        %517 = sbr.rel (%p515) target = $region40
      $region39: #{discriminator_forward.7} parent=31 // pred_region
        _
      $region40: #{discriminator_forward.7} parent=31 // pred_fallthru
        _
      // Predicated region
      $region41: #{discriminator_forward.7} parent=31 // pred_check
        %p518 = pneg %p159
      $region42: #{discriminator_forward.7} parent=31 // pred_check_branch
        %520 = sbr.rel (%p518) target = $region44
      $region43: #{discriminator_forward.7} parent=31 // pred_region
        _
      $region44: #{discriminator_forward.7} parent=31 // pred_fallthru
        _
      // Predicated region
      $region45: #{discriminator_forward.7} parent=31 // pred_check
        %p521 = pneg %p185
      $region46: #{discriminator_forward.7} parent=31 // pred_check_branch
        %523 = sbr.rel (%p521) target = $region48
      $region47: #{discriminator_forward.7} parent=31 // pred_region
        _
      $region48: #{discriminator_forward.7} parent=31 // pred_fallthru
        _
    $region32: #{discriminator_forward.7} parent=5 // pred_fallthru
      _
    %p524 = scmp.le.s32.totalorder 2, %s12
    // Predicated region
    $region49: #{discriminator_forward.7} parent=5 // pred_check
      %p525 = pneg %p524
    $region50: #{discriminator_forward.7} parent=5 // pred_check_branch
      %527 = sbr.rel (%p525) target = $region52
    $region51: #{discriminator_forward.7} parent=5 // pred_region
      %s528 = ssub.s32 %s12, 2
      // Predicated region
      $region53: #{discriminator_forward.7} parent=51 // pred_check
        %p529 = pneg %p139
      $region54: #{discriminator_forward.7} parent=51 // pred_check_branch
        %531 = sbr.rel (%p529) target = $region56
      $region55: #{discriminator_forward.7} parent=51 // pred_region
        %p532 = scmp.lt.s32.totalorder %s25, 1
        %s533 = scalar_select %p532, %s25, 1
        %p534 = scmp.lt.s32.totalorder %s26, 0
        %s535 = scalar_select %p534, %s26, 0
        %s536 = smul.addr %s533, 2
        %s537 = sadd.s32 %s535, %s536
        %s538 = smul.addr %s537, 4
        %s539 = scalar_lea.vmem %s3, %s538
      $region56: #{discriminator_forward.7} parent=51 // pred_fallthru
        _
      // Predicated region
      $region57: #{discriminator_forward.7} parent=51 // pred_check
        %p540 = pneg %p165
      $region58: #{discriminator_forward.7} parent=51 // pred_check_branch
        %542 = sbr.rel (%p540) target = $region60
      $region59: #{discriminator_forward.7} parent=51 // pred_region
        %p543 = scmp.lt.s32.totalorder %s25, 1
        %s544 = scalar_select %p543, %s25, 1
        %s545 = smul.addr %s544, 2
        %s546 = smul.addr %s545, 8
        %s547 = scalar_lea.vmem %s4, %s546
      $region60: #{discriminator_forward.7} parent=51 // pred_fallthru
        _
      // Predicated region
      $region61: #{discriminator_forward.7} parent=51 // pred_check
        %p548 = pneg %p191
      $region62: #{discriminator_forward.7} parent=51 // pred_check_branch
        %550 = sbr.rel (%p548) target = $region64
      $region63: #{discriminator_forward.7} parent=51 // pred_region
        %p551 = scmp.lt.s32.totalorder %s25, 1
        %s552 = scalar_select %p551, %s25, 1
        %s553 = smul.addr %s552, 2
        %s554 = smul.addr %s553, 8
        %s555 = scalar_lea.vmem %s5, %s554
      $region64: #{discriminator_forward.7} parent=51 // pred_fallthru
        _
    $region52: #{discriminator_forward.7} parent=5 // pred_fallthru
      _
  $region6: #{discriminator_forward.7} parent=0 // loop_footer
    %s16 = sadd.s32 1, %s12
  $region7: #{discriminator_forward.7} parent=0 // loop_footer_branch
    %11 = sbr.rel target = $region3
  $region8: #{discriminator_forward.7} parent=0 // loop_exit
    _

// kernel: discriminator_forward.8
$region0: #{discriminator_forward.8}
  #allocation0 [shape = 'u32[]', space=smem, size = 0x4, offset = 0x4, fixed_abs, tag = 'smem constant byte address 0x4 - core index']
  #allocation1 [shape = 'u32[144,128]{1,0:T(1,128)}', space=vmem, size = 0x12000, scoped, tag = 'internal scratch']
  %s0 = inlined_call_operand.vmem [shape: bf16[2,16,128], index: 0, kind: input, shape index: {}]
  %s1 = inlined_call_operand.vmem [shape: f32[2,16,1], index: 1, kind: input, shape index: {}]
  %s2 = inlined_call_operand.vmem [shape: f32[2,16,1], index: 2, kind: input, shape index: {}]
  %s3 = inlined_call_operand.vmem [shape: bf16[2,16,128], index: 3, kind: output, shape index: {}]
  %s4 = sld [smem:[#allocation0]]
  $region45: #{discriminator_forward.8} parent=0
    _
  %s6 = ssub.s32 1, %s4
  %s7 = scalar_select 0, %s6, %s4
  loop: start=0, step=1, limit=4
  $region2: #{discriminator_forward.8} parent=0 // loop_pre_header
    _
  $region3: #{discriminator_forward.8} parent=0 // loop_header
    %s9 = sphi 0, %s13
    %p10 = scmp.ge.s32.totalorder %s9, 4
    %s16 = sphi 0, %s28
    %s17 = sphi 0, %s24
    %s18 = sphi 0, %s16
    %s19 = sphi 0, %s17
    %s20 = sphi 0, %s18
    %s21 = sphi 0, %s19
    %s33 = sphi 0, %s35
    %s36 = sphi 0, %s33
    %s37 = sphi 0, %s36
    %s53 = sphi 0, %s37
    %s59 = sphi 0, %s61
    %s62 = sphi 0, %s59
    %s63 = sphi 0, %s62
    %s79 = sphi 0, %s63
    %s85 = sphi 0, %s87
    %s88 = sphi 0, %s85
    %s89 = sphi 0, %s88
    %s105 = sphi 0, %s89
    %s113 = sphi 0, %s115
    %s116 = sphi 0, %s113
    %s117 = sphi 0, %s116
    %s133 = sphi 0, %s117
  $region4: #{discriminator_forward.8} parent=0 // loop_header_branch
    %12 = sbr.rel (%p10) target = $region8
  $region5: #{discriminator_forward.8} parent=0 // loop_body
    %s14 = ssub.s32 %s9, 1
    %s15 = ssub.s32 %s9, 2
    %s22 = sadd.s32 1, %s17
    %p23 = scmp.ge.s32.totalorder %s22, 1
    %s24 = scalar_select %p23, 0, %s22
    %s25 = sadd.s32 1, %s16
    %s26 = scalar_select %p23, %s25, %s16
    %p27 = scmp.ge.s32.totalorder %s26, 2
    %s28 = scalar_select %p27, 0, %s26
    %s29 = ssub.s32 %s16, %s28
    %s30 = ssub.s32 %s17, %s24
    %s31 = sor.u32 %s29, %s30
    %p32 = scmp.eq.s32.totalorder %s31, 0
    %s34 = sadd.s32 %s33, 1
    %s35 = scalar_select %p32, %s33, %s34
    %p38 = pneg %p32
    %p39 = scmp.eq.s32.totalorder %s9, 1
    %p40 = por %p38, %p39
    %p41 = scmp.ne.s32.totalorder %s33, %s36
    %p42 = scmp.eq.s32.totalorder %s9, 0
    %p43 = por %p41, %p42
    %p44 = scmp.ne.s32.totalorder %s33, %s36
    %p45 = scmp.eq.s32.totalorder %s14, 1
    %p46 = por %p44, %p45
    %p47 = scmp.ne.s32.totalorder %s36, %s37
    %p48 = scmp.eq.s32.totalorder %s14, 0
    %p49 = por %p47, %p48
    %p50 = scmp.ne.s32.totalorder %s36, %s37
    %p51 = scmp.eq.s32.totalorder %s15, 1
    %p52 = por %p50, %p51
    %p54 = scmp.ne.s32.totalorder %s37, %s53
    %p55 = scmp.eq.s32.totalorder %s15, 0
    %p56 = por %p54, %p55
    %s57 = ssub.s32 %s16, %s28
    %p58 = scmp.eq.s32.totalorder %s57, 0
    %s60 = sadd.s32 %s59, 1
    %s61 = scalar_select %p58, %s59, %s60
    %p64 = pneg %p58
    %p65 = scmp.eq.s32.totalorder %s9, 1
    %p66 = por %p64, %p65
    %p67 = scmp.ne.s32.totalorder %s59, %s62
    %p68 = scmp.eq.s32.totalorder %s9, 0
    %p69 = por %p67, %p68
    %p70 = scmp.ne.s32.totalorder %s59, %s62
    %p71 = scmp.eq.s32.totalorder %s14, 1
    %p72 = por %p70, %p71
    %p73 = scmp.ne.s32.totalorder %s62, %s63
    %p74 = scmp.eq.s32.totalorder %s14, 0
    %p75 = por %p73, %p74
    %p76 = scmp.ne.s32.totalorder %s62, %s63
    %p77 = scmp.eq.s32.totalorder %s15, 1
    %p78 = por %p76, %p77
    %p80 = scmp.ne.s32.totalorder %s63, %s79
    %p81 = scmp.eq.s32.totalorder %s15, 0
    %p82 = por %p80, %p81
    %s83 = ssub.s32 %s16, %s28
    %p84 = scmp.eq.s32.totalorder %s83, 0
    %s86 = sadd.s32 %s85, 1
    %s87 = scalar_select %p84, %s85, %s86
    %p90 = pneg %p84
    %p91 = scmp.eq.s32.totalorder %s9, 1
    %p92 = por %p90, %p91
    %p93 = scmp.ne.s32.totalorder %s85, %s88
    %p94 = scmp.eq.s32.totalorder %s9, 0
    %p95 = por %p93, %p94
    %p96 = scmp.ne.s32.totalorder %s85, %s88
    %p97 = scmp.eq.s32.totalorder %s14, 1
    %p98 = por %p96, %p97
    %p99 = scmp.ne.s32.totalorder %s88, %s89
    %p100 = scmp.eq.s32.totalorder %s14, 0
    %p101 = por %p99, %p100
    %p102 = scmp.ne.s32.totalorder %s88, %s89
    %p103 = scmp.eq.s32.totalorder %s15, 1
    %p104 = por %p102, %p103
    %p106 = scmp.ne.s32.totalorder %s89, %s105
    %p107 = scmp.eq.s32.totalorder %s15, 0
    %p108 = por %p106, %p107
    %s109 = ssub.s32 %s16, %s28
    %s110 = ssub.s32 %s17, %s24
    %s111 = sor.u32 %s109, %s110
    %p112 = scmp.eq.s32.totalorder %s111, 0
    %s114 = sadd.s32 %s113, 1
    %s115 = scalar_select %p112, %s113, %s114
    %p118 = pneg %p112
    %p119 = scmp.eq.s32.totalorder %s9, 1
    %p120 = por %p118, %p119
    %p121 = scmp.ne.s32.totalorder %s113, %s116
    %p122 = scmp.eq.s32.totalorder %s9, 0
    %p123 = por %p121, %p122
    %p124 = scmp.ne.s32.totalorder %s113, %s116
    %p125 = scmp.eq.s32.totalorder %s14, 1
    %p126 = por %p124, %p125
    %p127 = scmp.ne.s32.totalorder %s116, %s117
    %p128 = scmp.eq.s32.totalorder %s14, 0
    %p129 = por %p127, %p128
    %p130 = scmp.ne.s32.totalorder %s116, %s117
    %p131 = scmp.eq.s32.totalorder %s15, 1
    %p132 = por %p130, %p131
    %p134 = scmp.ne.s32.totalorder %s117, %s133
    %p135 = scmp.eq.s32.totalorder %s15, 0
    %p136 = por %p134, %p135
    %p137 = scmp.le.s32.totalorder 1, %s9
    %p138 = scmp.lt.s32.totalorder %s9, 3
    %p139 = pnand %p137, %p138
    %p140 = pneg %p139
    // Predicated region
    $region9: #{discriminator_forward.8} parent=5 // pred_check
      _
    $region10: #{discriminator_forward.8} parent=5 // pred_check_branch
      %142 = sbr.rel (%p139) target = $region12
    $region11: #{discriminator_forward.8} parent=5 // pred_region
      %s143 = ssub.s32 %s9, 1
    $region12: #{discriminator_forward.8} parent=5 // pred_fallthru
      _
    %p144 = scmp.lt.s32.totalorder %s9, 2
    // Predicated region
    $region13: #{discriminator_forward.8} parent=5 // pred_check
      %p145 = pneg %p144
    $region14: #{discriminator_forward.8} parent=5 // pred_check_branch
      %147 = sbr.rel (%p145) target = $region16
    $region15: #{discriminator_forward.8} parent=5 // pred_region
      // Predicated region
      $region17: #{discriminator_forward.8} parent=15 // pred_check
        %p148 = pneg %p43
      $region18: #{discriminator_forward.8} parent=15 // pred_check_branch
        %150 = sbr.rel (%p148) target = $region20
      $region19: #{discriminator_forward.8} parent=15 // pred_region
        %p151 = scmp.lt.s32.totalorder %s16, 1
        %s152 = scalar_select %p151, %s16, 1
        %p153 = scmp.lt.s32.totalorder %s17, 0
        %s154 = scalar_select %p153, %s17, 0
        %s155 = smul.addr %s152, 2
        %s156 = sadd.s32 %s154, %s155
        %s157 = smul.addr %s156, 4
        %s158 = scalar_lea.vmem %s0, %s157
      $region20: #{discriminator_forward.8} parent=15 // pred_fallthru
        _
      // Predicated region
      $region21: #{discriminator_forward.8} parent=15 // pred_check
        %p159 = pneg %p69
      $region22: #{discriminator_forward.8} parent=15 // pred_check_branch
        %161 = sbr.rel (%p159) target = $region24
      $region23: #{discriminator_forward.8} parent=15 // pred_region
        %p162 = scmp.lt.s32.totalorder %s16, 1
        %s163 = scalar_select %p162, %s16, 1
        %s164 = smul.addr %s163, 2
        %s165 = smul.addr %s164, 8
        %s166 = scalar_lea.vmem %s1, %s165
      $region24: #{discriminator_forward.8} parent=15 // pred_fallthru
        _
      // Predicated region
      $region25: #{discriminator_forward.8} parent=15 // pred_check
        %p167 = pneg %p95
      $region26: #{discriminator_forward.8} parent=15 // pred_check_branch
        %169 = sbr.rel (%p167) target = $region28
      $region27: #{discriminator_forward.8} parent=15 // pred_region
        %p170 = scmp.lt.s32.totalorder %s16, 1
        %s171 = scalar_select %p170, %s16, 1
        %s172 = smul.addr %s171, 2
        %s173 = smul.addr %s172, 8
        %s174 = scalar_lea.vmem %s2, %s173
      $region28: #{discriminator_forward.8} parent=15 // pred_fallthru
        _
    $region16: #{discriminator_forward.8} parent=5 // pred_fallthru
      _
    %p175 = scmp.le.s32.totalorder 1, %s9
    %p176 = scmp.lt.s32.totalorder %s9, 3
    %p177 = pnand %p175, %p176
    %p178 = pneg %p177
    // Predicated region
    $region29: #{discriminator_forward.8} parent=5 // pred_check
      _
    $region30: #{discriminator_forward.8} parent=5 // pred_check_branch
      %180 = sbr.rel (%p177) target = $region32
    $region31: #{discriminator_forward.8} parent=5 // pred_region
      %s181 = ssub.s32 %s9, 1
      %p182 = scmp.lt.s32.totalorder %s18, 1
      %s183 = scalar_select %p182, %s18, 1
      %p184 = scmp.lt.s32.totalorder %s19, 0
      %s185 = scalar_select %p184, %s19, 0
      %s186 = smul.addr %s183, 2
      %s187 = sadd.s32 %s185, %s186
      %s188 = smul.addr %s187, 4
      %s189 = scalar_lea.vmem %s0, %s188
      %p190 = pneg %p49
      %p191 = pneg %p46
      %p192 = scmp.lt.s32.totalorder %s18, 1
      %s193 = scalar_select %p192, %s18, 1
      %s194 = smul.addr %s193, 2
      %s195 = smul.addr %s194, 8
      %s196 = scalar_lea.vmem %s1, %s195
      %p197 = pneg %p75
      %p198 = pneg %p72
      %p199 = scmp.lt.s32.totalorder %s18, 1
      %s200 = scalar_select %p199, %s18, 1
      %s201 = smul.addr %s200, 2
      %s202 = smul.addr %s201, 8
      %s203 = scalar_lea.vmem %s2, %s202
      %p204 = pneg %p101
      %p205 = pneg %p98
      %p206 = pneg %p129
      %p207 = pneg %p126
      %p208 = scmp.lt.s32.totalorder %s18, 1
      %s209 = scalar_select %p208, %s18, 1
      %p210 = scmp.lt.s32.totalorder %s19, 0
      %s211 = scalar_select %p210, %s19, 0
      %s212 = smul.addr %s209, 2
      %s213 = sadd.s32 %s211, %s212
      %s214 = smul.addr %s213, 4
      %s215 = scalar_lea.vmem %s3, %s214
      %p216 = scmp.lt.s32.totalorder %s18, 1
      %s217 = scalar_select %p216, %s18, 1
      %p218 = scmp.lt.s32.totalorder %s19, 0
      %s219 = scalar_select %p218, %s19, 0
      %s220 = smul.addr %s217, 2
      %s221 = sadd.s32 %s219, %s220
      %s222 = smul.addr %s221, 4
      %s223 = scalar_lea.vmem %s0, %s222
      %p224 = scmp.lt.s32.totalorder %s18, 1
      %s225 = scalar_select %p224, %s18, 1
      %s226 = smul.addr %s225, 2
      %s227 = smul.addr %s226, 8
      %s228 = scalar_lea.vmem %s1, %s227
      %p229 = scmp.lt.s32.totalorder %s18, 1
      %s230 = scalar_select %p229, %s18, 1
      %s231 = smul.addr %s230, 2
      %s232 = smul.addr %s231, 8
      %s233 = scalar_lea.vmem %s2, %s232
      %p234 = scmp.lt.s32.totalorder %s18, 1
      %s235 = scalar_select %p234, %s18, 1
      %p236 = scmp.lt.s32.totalorder %s19, 0
      %s237 = scalar_select %p236, %s19, 0
      %s238 = smul.addr %s235, 2
      %s239 = sadd.s32 %s237, %s238
      %s240 = smul.addr %s239, 4
      %s241 = scalar_lea.vmem %s3, %s240
      %v242 = vld [vmem:[%s223] sm:$0xf]
      %v243 = vld [vmem:[%s223 + $0x4] sm:$0xf]
      %v244 = vunpack.c.l.bf16 %v242
      %v245 = vunpack.c.l.bf16 %v243
      %v246 = vld [vmem:[%s228] sm:$0xff]
      %v247 = vld [vmem:[%s228 + $0x8] sm:$0xff]
      %249 = vset.pattern.permute.xlu0 0
      %250 = vperm.xlu0 %249, %v246
      %v251 = vpop.permute.xlu0 %250
      %254 = vset.pattern.permute.xlu0 0
      %255 = vperm.xlu0 %254, %v247
      %v256 = vpop.permute.xlu0 %255
      %v258 = vsub.f32 %v244, %v251
      %v259 = vsub.f32 %v245, %v256
      %v260 = vld [vmem:[%s233] sm:$0xff]
      %v261 = vld [vmem:[%s233 + $0x8] sm:$0xff]
      %263 = vset.pattern.permute.xlu0 0
      %264 = vperm.xlu0 %263, %v260
      %v265 = vpop.permute.xlu0 %264
      %268 = vset.pattern.permute.xlu0 0
      %269 = vperm.xlu0 %268, %v261
      %v270 = vpop.permute.xlu0 %269
      %v272 = vmul.f32 %v258, %v265
      %v273 = vmul.f32 %v259, %v270
      %v274 = vmul.f32 %v272, 0.2
      %v275 = vmul.f32 %v273, 0.2
      %v276 = vmax.f32 %v272, %v274
      %v277 = vmax.f32 %v273, %v275
      %v278 = vpack.c.bf16 %v277, %v276
      %v280 = vunpack.c.l.b16 %v278
      %v281 = vunpack.c.h.b16 %v278
      %v282 = vpack.c.b16 %v280, %v280
      %v283 = vpack.c.b16 %v281, %v281
      %286 = vst [vmem:[%s241] sm:$0xf] %v282
      %287 = vst [vmem:[%s241 + $0x4] sm:$0xf] %v283
      %p288 = scmp.lt.s32.totalorder %s18, 1
      %s289 = scalar_select %p288, %s18, 1
      %p290 = scmp.lt.s32.totalorder %s19, 0
      %s291 = scalar_select %p290, %s19, 0
      %s292 = smul.addr %s289, 2
      %s293 = sadd.s32 %s291, %s292
      %s294 = smul.addr %s293, 4
      %s295 = scalar_lea.vmem %s3, %s294
      // Predicated region
      $region33: #{discriminator_forward.8} parent=31 // pred_check
        %p296 = pneg %p126
      $region34: #{discriminator_forward.8} parent=31 // pred_check_branch
        %298 = sbr.rel (%p296) target = $region36
      $region35: #{discriminator_forward.8} parent=31 // pred_region
        _
      $region36: #{discriminator_forward.8} parent=31 // pred_fallthru
        _
    $region32: #{discriminator_forward.8} parent=5 // pred_fallthru
      _
    %p299 = scmp.le.s32.totalorder 2, %s9
    // Predicated region
    $region37: #{discriminator_forward.8} parent=5 // pred_check
      %p300 = pneg %p299
    $region38: #{discriminator_forward.8} parent=5 // pred_check_branch
      %302 = sbr.rel (%p300) target = $region40
    $region39: #{discriminator_forward.8} parent=5 // pred_region
      %s303 = ssub.s32 %s9, 2
      // Predicated region
      $region41: #{discriminator_forward.8} parent=39 // pred_check
        %p304 = pneg %p132
      $region42: #{discriminator_forward.8} parent=39 // pred_check_branch
        %306 = sbr.rel (%p304) target = $region44
      $region43: #{discriminator_forward.8} parent=39 // pred_region
        %p307 = scmp.lt.s32.totalorder %s20, 1
        %s308 = scalar_select %p307, %s20, 1
        %p309 = scmp.lt.s32.totalorder %s21, 0
        %s310 = scalar_select %p309, %s21, 0
        %s311 = smul.addr %s308, 2
        %s312 = sadd.s32 %s310, %s311
        %s313 = smul.addr %s312, 4
        %s314 = scalar_lea.vmem %s3, %s313
      $region44: #{discriminator_forward.8} parent=39 // pred_fallthru
        _
    $region40: #{discriminator_forward.8} parent=5 // pred_fallthru
      _
  $region6: #{discriminator_forward.8} parent=0 // loop_footer
    %s13 = sadd.s32 1, %s9
  $region7: #{discriminator_forward.8} parent=0 // loop_footer_branch
    %8 = sbr.rel target = $region3
  $region8: #{discriminator_forward.8} parent=0 // loop_exit
    _

// kernel: discriminator_forward.10
$region0: #{discriminator_forward.10}
  #allocation0 [shape = 'u32[]', space=smem, size = 0x4, offset = 0x4, fixed_abs, tag = 'smem constant byte address 0x4 - core index']
  #allocation1 [shape = 'u32[144,128]{1,0:T(1,128)}', space=vmem, size = 0x12000, scoped, tag = 'internal scratch']
  %s0 = inlined_call_operand.vmem [shape: bf16[2,32,128], index: 0, kind: input, shape index: {}]
  %s1 = inlined_call_operand.vmem [shape: f32[2,32,1], index: 1, kind: input, shape index: {}]
  %s2 = inlined_call_operand.vmem [shape: f32[2,32,1], index: 2, kind: input, shape index: {}]
  %s3 = inlined_call_operand.vmem [shape: bf16[2,32,128], index: 3, kind: output, shape index: {}]
  %s4 = sld [smem:[#allocation0]]
  $region45: #{discriminator_forward.10} parent=0
    _
  %s6 = ssub.s32 1, %s4
  %s7 = scalar_select 0, %s6, %s4
  loop: start=0, step=1, limit=4
  $region2: #{discriminator_forward.10} parent=0 // loop_pre_header
    _
  $region3: #{discriminator_forward.10} parent=0 // loop_header
    %s9 = sphi 0, %s13
    %p10 = scmp.ge.s32.totalorder %s9, 4
    %s16 = sphi 0, %s28
    %s17 = sphi 0, %s24
    %s18 = sphi 0, %s16
    %s19 = sphi 0, %s17
    %s20 = sphi 0, %s18
    %s21 = sphi 0, %s19
    %s33 = sphi 0, %s35
    %s36 = sphi 0, %s33
    %s37 = sphi 0, %s36
    %s53 = sphi 0, %s37
    %s59 = sphi 0, %s61
    %s62 = sphi 0, %s59
    %s63 = sphi 0, %s62
    %s79 = sphi 0, %s63
    %s85 = sphi 0, %s87
    %s88 = sphi 0, %s85
    %s89 = sphi 0, %s88
    %s105 = sphi 0, %s89
    %s113 = sphi 0, %s115
    %s116 = sphi 0, %s113
    %s117 = sphi 0, %s116
    %s133 = sphi 0, %s117
  $region4: #{discriminator_forward.10} parent=0 // loop_header_branch
    %12 = sbr.rel (%p10) target = $region8
  $region5: #{discriminator_forward.10} parent=0 // loop_body
    %s14 = ssub.s32 %s9, 1
    %s15 = ssub.s32 %s9, 2
    %s22 = sadd.s32 1, %s17
    %p23 = scmp.ge.s32.totalorder %s22, 1
    %s24 = scalar_select %p23, 0, %s22
    %s25 = sadd.s32 1, %s16
    %s26 = scalar_select %p23, %s25, %s16
    %p27 = scmp.ge.s32.totalorder %s26, 2
    %s28 = scalar_select %p27, 0, %s26
    %s29 = ssub.s32 %s16, %s28
    %s30 = ssub.s32 %s17, %s24
    %s31 = sor.u32 %s29, %s30
    %p32 = scmp.eq.s32.totalorder %s31, 0
    %s34 = sadd.s32 %s33, 1
    %s35 = scalar_select %p32, %s33, %s34
    %p38 = pneg %p32
    %p39 = scmp.eq.s32.totalorder %s9, 1
    %p40 = por %p38, %p39
    %p41 = scmp.ne.s32.totalorder %s33, %s36
    %p42 = scmp.eq.s32.totalorder %s9, 0
    %p43 = por %p41, %p42
    %p44 = scmp.ne.s32.totalorder %s33, %s36
    %p45 = scmp.eq.s32.totalorder %s14, 1
    %p46 = por %p44, %p45
    %p47 = scmp.ne.s32.totalorder %s36, %s37
    %p48 = scmp.eq.s32.totalorder %s14, 0
    %p49 = por %p47, %p48
    %p50 = scmp.ne.s32.totalorder %s36, %s37
    %p51 = scmp.eq.s32.totalorder %s15, 1
    %p52 = por %p50, %p51
    %p54 = scmp.ne.s32.totalorder %s37, %s53
    %p55 = scmp.eq.s32.totalorder %s15, 0
    %p56 = por %p54, %p55
    %s57 = ssub.s32 %s16, %s28
    %p58 = scmp.eq.s32.totalorder %s57, 0
    %s60 = sadd.s32 %s59, 1
    %s61 = scalar_select %p58, %s59, %s60
    %p64 = pneg %p58
    %p65 = scmp.eq.s32.totalorder %s9, 1
    %p66 = por %p64, %p65
    %p67 = scmp.ne.s32.totalorder %s59, %s62
    %p68 = scmp.eq.s32.totalorder %s9, 0
    %p69 = por %p67, %p68
    %p70 = scmp.ne.s32.totalorder %s59, %s62
    %p71 = scmp.eq.s32.totalorder %s14, 1
    %p72 = por %p70, %p71
    %p73 = scmp.ne.s32.totalorder %s62, %s63
    %p74 = scmp.eq.s32.totalorder %s14, 0
    %p75 = por %p73, %p74
    %p76 = scmp.ne.s32.totalorder %s62, %s63
    %p77 = scmp.eq.s32.totalorder %s15, 1
    %p78 = por %p76, %p77
    %p80 = scmp.ne.s32.totalorder %s63, %s79
    %p81 = scmp.eq.s32.totalorder %s15, 0
    %p82 = por %p80, %p81
    %s83 = ssub.s32 %s16, %s28
    %p84 = scmp.eq.s32.totalorder %s83, 0
    %s86 = sadd.s32 %s85, 1
    %s87 = scalar_select %p84, %s85, %s86
    %p90 = pneg %p84
    %p91 = scmp.eq.s32.totalorder %s9, 1
    %p92 = por %p90, %p91
    %p93 = scmp.ne.s32.totalorder %s85, %s88
    %p94 = scmp.eq.s32.totalorder %s9, 0
    %p95 = por %p93, %p94
    %p96 = scmp.ne.s32.totalorder %s85, %s88
    %p97 = scmp.eq.s32.totalorder %s14, 1
    %p98 = por %p96, %p97
    %p99 = scmp.ne.s32.totalorder %s88, %s89
    %p100 = scmp.eq.s32.totalorder %s14, 0
    %p101 = por %p99, %p100
    %p102 = scmp.ne.s32.totalorder %s88, %s89
    %p103 = scmp.eq.s32.totalorder %s15, 1
    %p104 = por %p102, %p103
    %p106 = scmp.ne.s32.totalorder %s89, %s105
    %p107 = scmp.eq.s32.totalorder %s15, 0
    %p108 = por %p106, %p107
    %s109 = ssub.s32 %s16, %s28
    %s110 = ssub.s32 %s17, %s24
    %s111 = sor.u32 %s109, %s110
    %p112 = scmp.eq.s32.totalorder %s111, 0
    %s114 = sadd.s32 %s113, 1
    %s115 = scalar_select %p112, %s113, %s114
    %p118 = pneg %p112
    %p119 = scmp.eq.s32.totalorder %s9, 1
    %p120 = por %p118, %p119
    %p121 = scmp.ne.s32.totalorder %s113, %s116
    %p122 = scmp.eq.s32.totalorder %s9, 0
    %p123 = por %p121, %p122
    %p124 = scmp.ne.s32.totalorder %s113, %s116
    %p125 = scmp.eq.s32.totalorder %s14, 1
    %p126 = por %p124, %p125
    %p127 = scmp.ne.s32.totalorder %s116, %s117
    %p128 = scmp.eq.s32.totalorder %s14, 0
    %p129 = por %p127, %p128
    %p130 = scmp.ne.s32.totalorder %s116, %s117
    %p131 = scmp.eq.s32.totalorder %s15, 1
    %p132 = por %p130, %p131
    %p134 = scmp.ne.s32.totalorder %s117, %s133
    %p135 = scmp.eq.s32.totalorder %s15, 0
    %p136 = por %p134, %p135
    %p137 = scmp.le.s32.totalorder 1, %s9
    %p138 = scmp.lt.s32.totalorder %s9, 3
    %p139 = pnand %p137, %p138
    %p140 = pneg %p139
    // Predicated region
    $region9: #{discriminator_forward.10} parent=5 // pred_check
      _
    $region10: #{discriminator_forward.10} parent=5 // pred_check_branch
      %142 = sbr.rel (%p139) target = $region12
    $region11: #{discriminator_forward.10} parent=5 // pred_region
      %s143 = ssub.s32 %s9, 1
    $region12: #{discriminator_forward.10} parent=5 // pred_fallthru
      _
    %p144 = scmp.lt.s32.totalorder %s9, 2
    // Predicated region
    $region13: #{discriminator_forward.10} parent=5 // pred_check
      %p145 = pneg %p144
    $region14: #{discriminator_forward.10} parent=5 // pred_check_branch
      %147 = sbr.rel (%p145) target = $region16
    $region15: #{discriminator_forward.10} parent=5 // pred_region
      // Predicated region
      $region17: #{discriminator_forward.10} parent=15 // pred_check
        %p148 = pneg %p43
      $region18: #{discriminator_forward.10} parent=15 // pred_check_branch
        %150 = sbr.rel (%p148) target = $region20
      $region19: #{discriminator_forward.10} parent=15 // pred_region
        %p151 = scmp.lt.s32.totalorder %s16, 1
        %s152 = scalar_select %p151, %s16, 1
        %p153 = scmp.lt.s32.totalorder %s17, 0
        %s154 = scalar_select %p153, %s17, 0
        %s155 = smul.addr %s152, 4
        %s156 = sadd.s32 %s154, %s155
        %s157 = smul.addr %s156, 4
        %s158 = scalar_lea.vmem %s0, %s157
      $region20: #{discriminator_forward.10} parent=15 // pred_fallthru
        _
      // Predicated region
      $region21: #{discriminator_forward.10} parent=15 // pred_check
        %p159 = pneg %p69
      $region22: #{discriminator_forward.10} parent=15 // pred_check_branch
        %161 = sbr.rel (%p159) target = $region24
      $region23: #{discriminator_forward.10} parent=15 // pred_region
        %p162 = scmp.lt.s32.totalorder %s16, 1
        %s163 = scalar_select %p162, %s16, 1
        %s164 = smul.addr %s163, 4
        %s165 = smul.addr %s164, 8
        %s166 = scalar_lea.vmem %s1, %s165
      $region24: #{discriminator_forward.10} parent=15 // pred_fallthru
        _
      // Predicated region
      $region25: #{discriminator_forward.10} parent=15 // pred_check
        %p167 = pneg %p95
      $region26: #{discriminator_forward.10} parent=15 // pred_check_branch
        %169 = sbr.rel (%p167) target = $region28
      $region27: #{discriminator_forward.10} parent=15 // pred_region
        %p170 = scmp.lt.s32.totalorder %s16, 1
        %s171 = scalar_select %p170, %s16, 1
        %s172 = smul.addr %s171, 4
        %s173 = smul.addr %s172, 8
        %s174 = scalar_lea.vmem %s2, %s173
      $region28: #{discriminator_forward.10} parent=15 // pred_fallthru
        _
    $region16: #{discriminator_forward.10} parent=5 // pred_fallthru
      _
    %p175 = scmp.le.s32.totalorder 1, %s9
    %p176 = scmp.lt.s32.totalorder %s9, 3
    %p177 = pnand %p175, %p176
    %p178 = pneg %p177
    // Predicated region
    $region29: #{discriminator_forward.10} parent=5 // pred_check
      _
    $region30: #{discriminator_forward.10} parent=5 // pred_check_branch
      %180 = sbr.rel (%p177) target = $region32
    $region31: #{discriminator_forward.10} parent=5 // pred_region
      %s181 = ssub.s32 %s9, 1
      %p182 = scmp.lt.s32.totalorder %s18, 1
      %s183 = scalar_select %p182, %s18, 1
      %p184 = scmp.lt.s32.totalorder %s19, 0
      %s185 = scalar_select %p184, %s19, 0
      %s186 = smul.addr %s183, 4
      %s187 = sadd.s32 %s185, %s186
      %s188 = smul.addr %s187, 4
      %s189 = scalar_lea.vmem %s0, %s188
      %p190 = pneg %p49
      %p191 = pneg %p46
      %p192 = scmp.lt.s32.totalorder %s18, 1
      %s193 = scalar_select %p192, %s18, 1
      %s194 = smul.addr %s193, 4
      %s195 = smul.addr %s194, 8
      %s196 = scalar_lea.vmem %s1, %s195
      %p197 = pneg %p75
      %p198 = pneg %p72
      %p199 = scmp.lt.s32.totalorder %s18, 1
      %s200 = scalar_select %p199, %s18, 1
      %s201 = smul.addr %s200, 4
      %s202 = smul.addr %s201, 8
      %s203 = scalar_lea.vmem %s2, %s202
      %p204 = pneg %p101
      %p205 = pneg %p98
      %p206 = pneg %p129
      %p207 = pneg %p126
      %p208 = scmp.lt.s32.totalorder %s18, 1
      %s209 = scalar_select %p208, %s18, 1
      %p210 = scmp.lt.s32.totalorder %s19, 0
      %s211 = scalar_select %p210, %s19, 0
      %s212 = smul.addr %s209, 4
      %s213 = sadd.s32 %s211, %s212
      %s214 = smul.addr %s213, 4
      %s215 = scalar_lea.vmem %s3, %s214
      %p216 = scmp.lt.s32.totalorder %s18, 1
      %s217 = scalar_select %p216, %s18, 1
      %p218 = scmp.lt.s32.totalorder %s19, 0
      %s219 = scalar_select %p218, %s19, 0
      %s220 = smul.addr %s217, 4
      %s221 = sadd.s32 %s219, %s220
      %s222 = smul.addr %s221, 4
      %s223 = scalar_lea.vmem %s0, %s222
      %p224 = scmp.lt.s32.totalorder %s18, 1
      %s225 = scalar_select %p224, %s18, 1
      %s226 = smul.addr %s225, 4
      %s227 = smul.addr %s226, 8
      %s228 = scalar_lea.vmem %s1, %s227
      %p229 = scmp.lt.s32.totalorder %s18, 1
      %s230 = scalar_select %p229, %s18, 1
      %s231 = smul.addr %s230, 4
      %s232 = smul.addr %s231, 8
      %s233 = scalar_lea.vmem %s2, %s232
      %p234 = scmp.lt.s32.totalorder %s18, 1
      %s235 = scalar_select %p234, %s18, 1
      %p236 = scmp.lt.s32.totalorder %s19, 0
      %s237 = scalar_select %p236, %s19, 0
      %s238 = smul.addr %s235, 4
      %s239 = sadd.s32 %s237, %s238
      %s240 = smul.addr %s239, 4
      %s241 = scalar_lea.vmem %s3, %s240
      %v242 = vld [vmem:[%s223] sm:$0xf]
      %v243 = vld [vmem:[%s223 + $0x4] sm:$0xf]
      %v244 = vld [vmem:[%s223 + $0x8] sm:$0xf]
      %v245 = vld [vmem:[%s223 + $0xc] sm:$0xf]
      %v246 = vunpack.c.l.bf16 %v242
      %v247 = vunpack.c.l.bf16 %v243
      %v248 = vunpack.c.l.bf16 %v244
      %v249 = vunpack.c.l.bf16 %v245
      %v250 = vld [vmem:[%s228] sm:$0xff]
      %v251 = vld [vmem:[%s228 + $0x8] sm:$0xff]
      %v252 = vld [vmem:[%s228 + $0x10] sm:$0xff]
      %v253 = vld [vmem:[%s228 + $0x18] sm:$0xff]
      %255 = vset.pattern.permute.xlu0 0
      %256 = vperm.xlu0 %255, %v250
      %v257 = vpop.permute.xlu0 %256
      %260 = vset.pattern.permute.xlu0 0
      %261 = vperm.xlu0 %260, %v251
      %v262 = vpop.permute.xlu0 %261
      %265 = vset.pattern.permute.xlu0 0
      %266 = vperm.xlu0 %265, %v252
      %v267 = vpop.permute.xlu0 %266
      %270 = vset.pattern.permute.xlu0 0
      %271 = vperm.xlu0 %270, %v253
      %v272 = vpop.permute.xlu0 %271
      %v274 = vsub.f32 %v246, %v257
      %v275 = vsub.f32 %v247, %v262
      %v276 = vsub.f32 %v248, %v267
      %v277 = vsub.f32 %v249, %v272
      %v278 = vld [vmem:[%s233] sm:$0xff]
      %v279 = vld [vmem:[%s233 + $0x8] sm:$0xff]
      %v280 = vld [vmem:[%s233 + $0x10] sm:$0xff]
      %v281 = vld [vmem:[%s233 + $0x18] sm:$0xff]
      %283 = vset.pattern.permute.xlu0 0
      %284 = vperm.xlu0 %283, %v278
      %v285 = vpop.permute.xlu0 %284
      %288 = vset.pattern.permute.xlu0 0
      %289 = vperm.xlu0 %288, %v279
      %v290 = vpop.permute.xlu0 %289
      %293 = vset.pattern.permute.xlu0 0
      %294 = vperm.xlu0 %293, %v280
      %v295 = vpop.permute.xlu0 %294
      %298 = vset.pattern.permute.xlu0 0
      %299 = vperm.xlu0 %298, %v281
      %v300 = vpop.permute.xlu0 %299
      %v302 = vmul.f32 %v274, %v285
      %v303 = vmul.f32 %v275, %v290
      %v304 = vmul.f32 %v276, %v295
      %v305 = vmul.f32 %v277, %v300
      %v306 = vmul.f32 %v302, 0.2
      %v307 = vmul.f32 %v303, 0.2
      %v308 = vmul.f32 %v304, 0.2
      %v309 = vmul.f32 %v305, 0.2
      %v310 = vmax.f32 %v302, %v306
      %v311 = vmax.f32 %v303, %v307
      %v312 = vmax.f32 %v304, %v308
      %v313 = vmax.f32 %v305, %v309
      %v314 = vpack.c.bf16 %v311, %v310
      %v315 = vpack.c.bf16 %v313, %v312
      %v318 = vunpack.c.l.b16 %v314
      %v319 = vunpack.c.h.b16 %v314
      %v320 = vunpack.c.l.b16 %v315
      %v321 = vunpack.c.h.b16 %v315
      %v322 = vpack.c.b16 %v318, %v318
      %v323 = vpack.c.b16 %v319, %v319
      %v324 = vpack.c.b16 %v320, %v320
      %v325 = vpack.c.b16 %v321, %v321
      %330 = vst [vmem:[%s241] sm:$0xf] %v322
      %331 = vst [vmem:[%s241 + $0x4] sm:$0xf] %v323
      %332 = vst [vmem:[%s241 + $0x8] sm:$0xf] %v324
      %333 = vst [vmem:[%s241 + $0xc] sm:$0xf] %v325
      %p334 = scmp.lt.s32.totalorder %s18, 1
      %s335 = scalar_select %p334, %s18, 1
      %p336 = scmp.lt.s32.totalorder %s19, 0
      %s337 = scalar_select %p336, %s19, 0
      %s338 = smul.addr %s335, 4
      %s339 = sadd.s32 %s337, %s338
      %s340 = smul.addr %s339, 4
      %s341 = scalar_lea.vmem %s3, %s340
      // Predicated region
      $region33: #{discriminator_forward.10} parent=31 // pred_check
        %p342 = pneg %p126
      $region34: #{discriminator_forward.10} parent=31 // pred_check_branch
        %344 = sbr.rel (%p342) target = $region36
      $region35: #{discriminator_forward.10} parent=31 // pred_region
        _
      $region36: #{discriminator_forward.10} parent=31 // pred_fallthru
        _
    $region32: #{discriminator_forward.10} parent=5 // pred_fallthru
      _
    %p345 = scmp.le.s32.totalorder 2, %s9
    // Predicated region
    $region37: #{discriminator_forward.10} parent=5 // pred_check
      %p346 = pneg %p345
    $region38: #{discriminator_forward.10} parent=5 // pred_check_branch
      %348 = sbr.rel (%p346) target = $region40
    $region39: #{discriminator_forward.10} parent=5 // pred_region
      %s349 = ssub.s32 %s9, 2
      // Predicated region
      $region41: #{discriminator_forward.10} parent=39 // pred_check
        %p350 = pneg %p132
      $region42: #{discriminator_forward.10} parent=39 // pred_check_branch
        %352 = sbr.rel (%p350) target = $region44
      $region43: #{discriminator_forward.10} parent=39 // pred_region
        %p353 = scmp.lt.s32.totalorder %s20, 1
        %s354 = scalar_select %p353, %s20, 1
        %p355 = scmp.lt.s32.totalorder %s21, 0
        %s356 = scalar_select %p355, %s21, 0
        %s357 = smul.addr %s354, 4
        %s358 = sadd.s32 %s356, %s357
        %s359 = smul.addr %s358, 4
        %s360 = scalar_lea.vmem %s3, %s359
      $region44: #{discriminator_forward.10} parent=39 // pred_fallthru
        _
    $region40: #{discriminator_forward.10} parent=5 // pred_fallthru
      _
  $region6: #{discriminator_forward.10} parent=0 // loop_footer
    %s13 = sadd.s32 1, %s9
  $region7: #{discriminator_forward.10} parent=0 // loop_footer_branch
    %8 = sbr.rel target = $region3
  $region8: #{discriminator_forward.10} parent=0 // loop_exit
    _

// kernel: discriminator_forward.9
$region0: #{discriminator_forward.9}
  #allocation0 [shape = 'u32[]', space=smem, size = 0x4, offset = 0x4, fixed_abs, tag = 'smem constant byte address 0x4 - core index']
  #allocation1 [shape = 'u32[144,128]{1,0:T(1,128)}', space=vmem, size = 0x12000, scoped, tag = 'internal scratch']
  %s0 = inlined_call_operand.vmem [shape: bf16[32,256], index: 0, kind: input, shape index: {}]
  %s1 = inlined_call_operand.vmem [shape: bf16[2,256,128], index: 1, kind: input, shape index: {}]
  %s2 = inlined_call_operand.vmem [shape: f32[32,1], index: 2, kind: input, shape index: {}]
  %s3 = inlined_call_operand.vmem [shape: bf16[2,32,128], index: 3, kind: output, shape index: {0}]
  %s4 = inlined_call_operand.vmem [shape: f32[2,32,1], index: 4, kind: output, shape index: {1}]
  %s5 = inlined_call_operand.vmem [shape: f32[2,32,1], index: 5, kind: output, shape index: {2}]
  %6 = xla_tuple %s3, %s4, %s5
  %s7 = sld [smem:[#allocation0]]
  $region65: #{discriminator_forward.9} parent=0
    _
  %s9 = ssub.s32 1, %s7
  %s10 = scalar_select 0, %s9, %s7
  loop: start=0, step=1, limit=4
  $region2: #{discriminator_forward.9} parent=0 // loop_pre_header
    _
  $region3: #{discriminator_forward.9} parent=0 // loop_header
    %s12 = sphi 0, %s16
    %p13 = scmp.ge.s32.totalorder %s12, 4
    %s19 = sphi 0, %s38
    %s20 = sphi 0, %s34
    %s21 = sphi 0, %s30
    %s22 = sphi 0, %s19
    %s23 = sphi 0, %s20
    %s24 = sphi 0, %s21
    %s25 = sphi 0, %s22
    %s26 = sphi 0, %s23
    %s27 = sphi 0, %s24
    %s41 = sphi 0, %s43
    %s44 = sphi 0, %s41
    %s45 = sphi 0, %s44
    %s61 = sphi 0, %s45
    %s71 = sphi 0, %s73
    %s74 = sphi 0, %s71
    %s75 = sphi 0, %s74
    %s91 = sphi 0, %s75
    %s95 = sphi 0, %s95
    %s97 = sphi 0, %s95
    %s98 = sphi 0, %s97
    %s112 = sphi 0, %s98
    %s120 = sphi 0, %s122
    %s123 = sphi 0, %s120
    %s124 = sphi 0, %s123
    %s140 = sphi 0, %s124
    %s146 = sphi 0, %s148
    %s149 = sphi 0, %s146
    %s150 = sphi 0, %s149
    %s166 = sphi 0, %s150
    %s172 = sphi 0, %s174
    %s175 = sphi 0, %s172
    %s176 = sphi 0, %s175
    %s192 = sphi 0, %s176
  $region4: #{discriminator_forward.9} parent=0 // loop_header_branch
    %15 = sbr.rel (%p13) target = $region8
  $region5: #{discriminator_forward.9} parent=0 // loop_body
    %s17 = ssub.s32 %s12, 1
    %s18 = ssub.s32 %s12, 2
    %s28 = sadd.s32 1, %s21
    %p29 = scmp.ge.s32.totalorder %s28, 1
    %s30 = scalar_select %p29, 0, %s28
    %s31 = sadd.s32 1, %s20
    %s32 = scalar_select %p29, %s31, %s20
    %p33 = scmp.ge.s32.totalorder %s32, 1
    %s34 = scalar_select %p33, 0, %s32
    %s35 = sadd.s32 1, %s19
    %s36 = scalar_select %p33, %s35, %s19
    %p37 = scmp.ge.s32.totalorder %s36, 2
    %s38 = scalar_select %p37, 0, %s36
    %s39 = ssub.s32 %s21, %s30
    %p40 = scmp.eq.s32.totalorder %s39, 0
    %s42 = sadd.s32 %s41, 1
    %s43 = scalar_select %p40, %s41, %s42
    %p46 = pneg %p40
    %p47 = scmp.eq.s32.totalorder %s12, 1
    %p48 = por %p46, %p47
    %p49 = scmp.ne.s32.totalorder %s41, %s44
    %p50 = scmp.eq.s32.totalorder %s12, 0
    %p51 = por %p49, %p50
    %p52 = scmp.ne.s32.totalorder %s41, %s44
    %p53 = scmp.eq.s32.totalorder %s17, 1
    %p54 = por %p52, %p53
    %p55 = scmp.ne.s32.totalorder %s44, %s45
    %p56 = scmp.eq.s32.totalorder %s17, 0
    %p57 = por %p55, %p56
    %p58 = scmp.ne.s32.totalorder %s44, %s45
    %p59 = scmp.eq.s32.totalorder %s18, 1
    %p60 = por %p58, %p59
    %p62 = scmp.ne.s32.totalorder %s45, %s61
    %p63 = scmp.eq.s32.totalorder %s18, 0
    %p64 = por %p62, %p63
    %s65 = ssub.s32 %s19, %s38
    %s66 = ssub.s32 %s21, %s30
    %s67 = sor.u32 %s65, %s66
    %s68 = ssub.s32 %s20, %s34
    %s69 = sor.u32 %s67, %s68
    %p70 = scmp.eq.s32.totalorder %s69, 0
    %s72 = sadd.s32 %s71, 1
    %s73 = scalar_select %p70, %s71, %s72
    %p76 = pneg %p70
    %p77 = scmp.eq.s32.totalorder %s12, 1
    %p78 = por %p76, %p77
    %p79 = scmp.ne.s32.totalorder %s71, %s74
    %p80 = scmp.eq.s32.totalorder %s12, 0
    %p81 = por %p79, %p80
    %p82 = scmp.ne.s32.totalorder %s71, %s74
    %p83 = scmp.eq.s32.totalorder %s17, 1
    %p84 = por %p82, %p83
    %p85 = scmp.ne.s32.totalorder %s74, %s75
    %p86 = scmp.eq.s32.totalorder %s17, 0
    %p87 = por %p85, %p86
    %p88 = scmp.ne.s32.totalorder %s74, %s75
    %p89 = scmp.eq.s32.totalorder %s18, 1
    %p90 = por %p88, %p89
    %p92 = scmp.ne.s32.totalorder %s75, %s91
    %p93 = scmp.eq.s32.totalorder %s18, 0
    %p94 = por %p92, %p93
    %s96 = sadd.s32 %s95, 1
    %p99 = scmp.eq.s32.totalorder %s12, 1
    %p100 = scmp.ne.s32.totalorder %s95, %s97
    %p101 = scmp.eq.s32.totalorder %s12, 0
    %p102 = por %p100, %p101
    %p103 = scmp.ne.s32.totalorder %s95, %s97
    %p104 = scmp.eq.s32.totalorder %s17, 1
    %p105 = por %p103, %p104
    %p106 = scmp.ne.s32.totalorder %s97, %s98
    %p107 = scmp.eq.s32.totalorder %s17, 0
    %p108 = por %p106, %p107
    %p109 = scmp.ne.s32.totalorder %s97, %s98
    %p110 = scmp.eq.s32.totalorder %s18, 1
    %p111 = por %p109, %p110
    %p113 = scmp.ne.s32.totalorder %s98, %s112
    %p114 = scmp.eq.s32.totalorder %s18, 0
    %p115 = por %p113, %p114
    %s116 = ssub.s32 %s19, %s38
    %s117 = ssub.s32 %s20, %s34
    %s118 = sor.u32 %s116, %s117
    %p119 = scmp.eq.s32.totalorder %s118, 0
    %s121 = sadd.s32 %s120, 1
    %s122 = scalar_select %p119, %s120, %s121
    %p125 = pneg %p119
    %p126 = scmp.eq.s32.totalorder %s12, 1
    %p127 = por %p125, %p126
    %p128 = scmp.ne.s32.totalorder %s120, %s123
    %p129 = scmp.eq.s32.totalorder %s12, 0
    %p130 = por %p128, %p129
    %p131 = scmp.ne.s32.totalorder %s120, %s123
    %p132 = scmp.eq.s32.totalorder %s17, 1
    %p133 = por %p131, %p132
    %p134 = scmp.ne.s32.totalorder %s123, %s124
    %p135 = scmp.eq.s32.totalorder %s17, 0
    %p136 = por %p134, %p135
    %p137 = scmp.ne.s32.totalorder %s123, %s124
    %p138 = scmp.eq.s32.totalorder %s18, 1
    %p139 = por %p137, %p138
    %p141 = scmp.ne.s32.totalorder %s124, %s140
    %p142 = scmp.eq.s32.totalorder %s18, 0
    %p143 = por %p141, %p142
    %s144 = ssub.s32 %s19, %s38
    %p145 = scmp.eq.s32.totalorder %s144, 0
    %s147 = sadd.s32 %s146, 1
    %s148 = scalar_select %p145, %s146, %s147
    %p151 = pneg %p145
    %p152 = scmp.eq.s32.totalorder %s12, 1
    %p153 = por %p151, %p152
    %p154 = scmp.ne.s32.totalorder %s146, %s149
    %p155 = scmp.eq.s32.totalorder %s12, 0
    %p156 = por %p154, %p155
    %p157 = scmp.ne.s32.totalorder %s146, %s149
    %p158 = scmp.eq.s32.totalorder %s17, 1
    %p159 = por %p157, %p158
    %p160 = scmp.ne.s32.totalorder %s149, %s150
    %p161 = scmp.eq.s32.totalorder %s17, 0
    %p162 = por %p160, %p161
    %p163 = scmp.ne.s32.totalorder %s149, %s150
    %p164 = scmp.eq.s32.totalorder %s18, 1
    %p165 = por %p163, %p164
    %p167 = scmp.ne.s32.totalorder %s150, %s166
    %p168 = scmp.eq.s32.totalorder %s18, 0
    %p169 = por %p167, %p168
    %s170 = ssub.s32 %s19, %s38
    %p171 = scmp.eq.s32.totalorder %s170, 0
    %s173 = sadd.s32 %s172, 1
    %s174 = scalar_select %p171, %s172, %s173
    %p177 = pneg %p171
    %p178 = scmp.eq.s32.totalorder %s12, 1
    %p179 = por %p177, %p178
    %p180 = scmp.ne.s32.totalorder %s172, %s175
    %p181 = scmp.eq.s32.totalorder %s12, 0
    %p182 = por %p180, %p181
    %p183 = scmp.ne.s32.totalorder %s172, %s175
    %p184 = scmp.eq.s32.totalorder %s17, 1
    %p185 = por %p183, %p184
    %p186 = scmp.ne.s32.totalorder %s175, %s176
    %p187 = scmp.eq.s32.totalorder %s17, 0
    %p188 = por %p186, %p187
    %p189 = scmp.ne.s32.totalorder %s175, %s176
    %p190 = scmp.eq.s32.totalorder %s18, 1
    %p191 = por %p189, %p190
    %p193 = scmp.ne.s32.totalorder %s176, %s192
    %p194 = scmp.eq.s32.totalorder %s18, 0
    %p195 = por %p193, %p194
    %p196 = scmp.le.s32.totalorder 1, %s12
    %p197 = scmp.lt.s32.totalorder %s12, 3
    %p198 = pnand %p196, %p197
    %p199 = pneg %p198
    // Predicated region
    $region9: #{discriminator_forward.9} parent=5 // pred_check
      _
    $region10: #{discriminator_forward.9} parent=5 // pred_check_branch
      %201 = sbr.rel (%p198) target = $region12
    $region11: #{discriminator_forward.9} parent=5 // pred_region
      %s202 = ssub.s32 %s12, 1
      // Predicated region
      $region13: #{discriminator_forward.9} parent=11 // pred_check
        %p203 = pneg %p57
      $region14: #{discriminator_forward.9} parent=11 // pred_check_branch
        %205 = sbr.rel (%p203) target = $region16
      $region15: #{discriminator_forward.9} parent=11 // pred_region
        %s206 = smul.u32 2, %s24
        %p207 = scmp.lt.s32.totalorder %s206, 1
        %s208 = scalar_select %p207, %s206, 1
        %s209 = smul.addr %s208, 4
        %s210 = scalar_lea.vmem %s0, %s209
        %s211 = smul.u32 2, %s24
      $region16: #{discriminator_forward.9} parent=11 // pred_fallthru
        _
      // Predicated region
      $region17: #{discriminator_forward.9} parent=11 // pred_check
        %p212 = pneg %p108
      $region18: #{discriminator_forward.9} parent=11 // pred_check_branch
        %214 = sbr.rel (%p212) target = $region20
      $region19: #{discriminator_forward.9} parent=11 // pred_region
        _
      $region20: #{discriminator_forward.9} parent=11 // pred_fallthru
        _
    $region12: #{discriminator_forward.9} parent=5 // pred_fallthru
      _
    %p215 = scmp.lt.s32.totalorder %s12, 2
    // Predicated region
    $region21: #{discriminator_forward.9} parent=5 // pred_check
      %p216 = pneg %p215
    $region22: #{discriminator_forward.9} parent=5 // pred_check_branch
      %218 = sbr.rel (%p216) target = $region24
    $region23: #{discriminator_forward.9} parent=5 // pred_region
      // Predicated region
      $region25: #{discriminator_forward.9} parent=23 // pred_check
        %p219 = pneg %p81
      $region26: #{discriminator_forward.9} parent=23 // pred_check_branch
        %221 = sbr.rel (%p219) target = $region28
      $region27: #{discriminator_forward.9} parent=23 // pred_region
        %s222 = smul.u32 32, %s21
        %p223 = scmp.lt.s32.totalorder %s19, 1
        %s224 = scalar_select %p223, %s19, 1
        %p225 = scmp.lt.s32.totalorder %s222, 31
        %s226 = scalar_select %p225, %s222, 31
        %p227 = scmp.lt.s32.totalorder %s20, 0
        %s228 = scalar_select %p227, %s20, 0
        %s229 = sadd.s32 %s228, %s226
        %s230 = smul.addr %s224, 32
        %s231 = sadd.s32 %s229, %s230
        %s232 = smul.addr %s231, 4
        %s233 = scalar_lea.vmem %s1, %s232
        %s234 = smul.u32 32, %s21
      $region28: #{discriminator_forward.9} parent=23 // pred_fallthru
        _
    $region24: #{discriminator_forward.9} parent=5 // pred_fallthru
      _
    %p235 = scmp.le.s32.totalorder 1, %s12
    %p236 = scmp.lt.s32.totalorder %s12, 3
    %p237 = pnand %p235, %p236
    %p238 = pneg %p237
    // Predicated region
    $region29: #{discriminator_forward.9} parent=5 // pred_check
      _
    $region30: #{discriminator_forward.9} parent=5 // pred_check_branch
      %240 = sbr.rel (%p237) target = $region32
    $region31: #{discriminator_forward.9} parent=5 // pred_region
      %s241 = ssub.s32 %s12, 1
      %s242 = smul.u32 2, %s24
      %p243 = scmp.lt.s32.totalorder %s242, 1
      %s244 = scalar_select %p243, %s242, 1
      %s245 = smul.addr %s244, 4
      %s246 = scalar_lea.vmem %s0, %s245
      %p247 = pneg %p57
      %p248 = pneg %p54
      %s249 = smul.u32 32, %s24
      %p250 = scmp.lt.s32.totalorder %s22, 1
      %s251 = scalar_select %p250, %s22, 1
      %p252 = scmp.lt.s32.totalorder %s249, 31
      %s253 = scalar_select %p252, %s249, 31
      %p254 = scmp.lt.s32.totalorder %s23, 0
      %s255 = scalar_select %p254, %s23, 0
      %s256 = sadd.s32 %s255, %s253
      %s257 = smul.addr %s251, 32
      %s258 = sadd.s32 %s256, %s257
      %s259 = smul.addr %s258, 4
      %s260 = scalar_lea.vmem %s1, %s259
      %p261 = pneg %p87
      %p262 = pneg %p84
      %p263 = pneg %p108
      %p264 = pneg %p105
      %p265 = pneg %p136
      %p266 = pneg %p133
      %p267 = scmp.lt.s32.totalorder %s22, 1
      %s268 = scalar_select %p267, %s22, 1
      %p269 = scmp.lt.s32.totalorder %s23, 0
      %s270 = scalar_select %p269, %s23, 0
      %s271 = smul.addr %s268, 4
      %s272 = sadd.s32 %s270, %s271
      %s273 = smul.addr %s272, 4
      %s274 = scalar_lea.vmem %s3, %s273
      %p275 = pneg %p162
      %p276 = pneg %p159
      %p277 = scmp.lt.s32.totalorder %s22, 1
      %s278 = scalar_select %p277, %s22, 1
      %s279 = smul.addr %s278, 4
      %s280 = smul.addr %s279, 8
      %s281 = scalar_lea.vmem %s4, %s280
      %p282 = pneg %p188
      %p283 = pneg %p185
      %p284 = scmp.lt.s32.totalorder %s22, 1
      %s285 = scalar_select %p284, %s22, 1
      %s286 = smul.addr %s285, 4
      %s287 = smul.addr %s286, 8
      %s288 = scalar_lea.vmem %s5, %s287
      %s289 = smul.u32 2, %s24
      %p290 = scmp.lt.s32.totalorder %s289, 1
      %s291 = scalar_select %p290, %s289, 1
      %s292 = smul.addr %s291, 4
      %s293 = scalar_lea.vmem %s0, %s292
      %s294 = smul.u32 2, %s24
      %s295 = smul.u32 32, %s24
      %p296 = scmp.lt.s32.totalorder %s22, 1
      %s297 = scalar_select %p296, %s22, 1
      %p298 = scmp.lt.s32.totalorder %s295, 31
      %s299 = scalar_select %p298, %s295, 31
      %p300 = scmp.lt.s32.totalorder %s23, 0
      %s301 = scalar_select %p300, %s23, 0
      %s302 = sadd.s32 %s301, %s299
      %s303 = smul.addr %s297, 32
      %s304 = sadd.s32 %s302, %s303
      %s305 = smul.addr %s304, 4
      %s306 = scalar_lea.vmem %s1, %s305
      %s307 = smul.u32 32, %s24
      %p308 = scmp.lt.s32.totalorder %s22, 1
      %s309 = scalar_select %p308, %s22, 1
      %p310 = scmp.lt.s32.totalorder %s23, 0
      %s311 = scalar_select %p310, %s23, 0
      %s312 = smul.addr %s309, 4
      %s313 = sadd.s32 %s311, %s312
      %s314 = smul.addr %s313, 4
      %s315 = scalar_lea.vmem %s3, %s314
      %p316 = scmp.lt.s32.totalorder %s22, 1
      %s317 = scalar_select %p316, %s22, 1
      %s318 = smul.addr %s317, 4
      %s319 = smul.addr %s318, 8
      %s320 = scalar_lea.vmem %s4, %s319
      %p321 = scmp.lt.s32.totalorder %s22, 1
      %s322 = scalar_select %p321, %s22, 1
      %s323 = smul.addr %s322, 4
      %s324 = smul.addr %s323, 8
      %s325 = scalar_lea.vmem %s5, %s324
      %v327 = vld [vmem:[%s293] sm:$0xff]
      %v328 = vld [vmem:[%s293 + $0x8] sm:$0xff]
      %v329 = vld [vmem:[%s293 + $0x10] sm:$0xff]
      %v330 = vld [vmem:[%s293 + $0x18] sm:$0xff]
      %v331 = vld [vmem:[%s306] sm:$0xf]
      %v332 = vld [vmem:[%s306 + $0x4] sm:$0xf]
      %v333 = vld [vmem:[%s306 + $0x8] sm:$0xf]
      %v334 = vld [vmem:[%s306 + $0xc] sm:$0xf]
      %v335 = vld [vmem:[%s306 + $0x10] sm:$0xf]
      %v336 = vld [vmem:[%s306 + $0x14] sm:$0xf]
      %v337 = vld [vmem:[%s306 + $0x18] sm:$0xf]
      %v338 = vld [vmem:[%s306 + $0x1c] sm:$0xf]
      %v339 = vld [vmem:[%s306 + $0x20] sm:$0xf]
      %v340 = vld [vmem:[%s306 + $0x24] sm:$0xf]
      %v341 = vld [vmem:[%s306 + $0x28] sm:$0xf]
      %v342 = vld [vmem:[%s306 + $0x2c] sm:$0xf]
      %v343 = vld [vmem:[%s306 + $0x30] sm:$0xf]
      %v344 = vld [vmem:[%s306 + $0x34] sm:$0xf]
      %v345 = vld [vmem:[%s306 + $0x38] sm:$0xf]
      %v346 = vld [vmem:[%s306 + $0x3c] sm:$0xf]
      %v347 = vld [vmem:[%s306 + $0x40] sm:$0xf]
      %v348 = vld [vmem:[%s306 + $0x44] sm:$0xf]
      %v349 = vld [vmem:[%s306 + $0x48] sm:$0xf]
      %v350 = vld [vmem:[%s306 + $0x4c] sm:$0xf]
      %v351 = vld [vmem:[%s306 + $0x50] sm:$0xf]
      %v352 = vld [vmem:[%s306 + $0x54] sm:$0xf]
      %v353 = vld [vmem:[%s306 + $0x58] sm:$0xf]
      %v354 = vld [vmem:[%s306 + $0x5c] sm:$0xf]
      %v355 = vld [vmem:[%s306 + $0x60] sm:$0xf]
      %v356 = vld [vmem:[%s306 + $0x64] sm:$0xf]
      %v357 = vld [vmem:[%s306 + $0x68] sm:$0xf]
      %v358 = vld [vmem:[%s306 + $0x6c] sm:$0xf]
      %v359 = vld [vmem:[%s306 + $0x70] sm:$0xf]
      %v360 = vld [vmem:[%s306 + $0x74] sm:$0xf]
      %v361 = vld [vmem:[%s306 + $0x78] sm:$0xf]
      %v362 = vld [vmem:[%s306 + $0x7c] sm:$0xf]
      %v363 = vld [vmem:[%s2] sm:$0xff]
      %v364 = vld [vmem:[%s2 + $0x8] sm:$0xff]
      %v365 = vld [vmem:[%s2 + $0x10] sm:$0xff]
      %v366 = vld [vmem:[%s2 + $0x18] sm:$0xff]
      %368 = vset.pattern.permute.xlu0 0
      %369 = vperm.xlu0 %368, %v363
      %v370 = vpop.permute.xlu0 %369
      %373 = vset.pattern.permute.xlu0 0
      %374 = vperm.xlu0 %373, %v364
      %v375 = vpop.permute.xlu0 %374
      %378 = vset.pattern.permute.xlu0 0
      %379 = vperm.xlu0 %378, %v365
      %v380 = vpop.permute.xlu0 %379
      %383 = vset.pattern.permute.xlu0 0
      %384 = vperm.xlu0 %383, %v366
      %v385 = vpop.permute.xlu0 %384
      %v391 = vunpack.c.l.b16 %v327
      %v392 = vunpack.c.h.b16 %v327
      %v393 = vunpack.c.l.b16 %v328
      %v394 = vunpack.c.h.b16 %v328
      %v395 = vunpack.c.l.b16 %v329
      %v396 = vunpack.c.h.b16 %v329
      %v397 = vunpack.c.l.b16 %v330
      %v398 = vunpack.c.h.b16 %v330
      %v399 = vpack.c.b16 %v393, %v391
      %v400 = vpack.c.b16 %v394, %v392
      %v401 = vpack.c.b16 %v397, %v395
      %v402 = vpack.c.b16 %v398, %v396
      %v439 = vunpack.c.l.b16 %v331
      %v440 = vunpack.c.l.b16 %v332
      %v441 = vunpack.c.l.b16 %v333
      %v442 = vunpack.c.l.b16 %v334
      %v443 = vunpack.c.l.b16 %v335
      %v444 = vunpack.c.l.b16 %v336
      %v445 = vunpack.c.l.b16 %v337
      %v446 = vunpack.c.l.b16 %v338
      %v447 = vunpack.c.l.b16 %v339
      %v448 = vunpack.c.l.b16 %v340
      %v449 = vunpack.c.l.b16 %v341
      %v450 = vunpack.c.l.b16 %v342
      %v451 = vunpack.c.l.b16 %v343
      %v452 = vunpack.c.l.b16 %v344
      %v453 = vunpack.c.l.b16 %v345
      %v454 = vunpack.c.l.b16 %v346
      %v455 = vunpack.c.l.b16 %v347
      %v456 = vunpack.c.l.b16 %v348
      %v457 = vunpack.c.l.b16 %v349
      %v458 = vunpack.c.l.b16 %v350
      %v459 = vunpack.c.l.b16 %v351
      %v460 = vunpack.c.l.b16 %v352
      %v461 = vunpack.c.l.b16 %v353
      %v462 = vunpack.c.l.b16 %v354
      %v463 = vunpack.c.l.b16 %v355
      %v464 = vunpack.c.l.b16 %v356
      %v465 = vunpack.c.l.b16 %v357
      %v466 = vunpack.c.l.b16 %v358
      %v467 = vunpack.c.l.b16 %v359
      %v468 = vunpack.c.l.b16 %v360
      %v469 = vunpack.c.l.b16 %v361
      %v470 = vunpack.c.l.b16 %v362
      %v471 = vpack.c.b16 %v440, %v439
      %v472 = vpack.c.b16 %v442, %v441
      %v473 = vpack.c.b16 %v444, %v443
      %v474 = vpack.c.b16 %v446, %v445
      %v475 = vpack.c.b16 %v448, %v447
      %v476 = vpack.c.b16 %v450, %v449
      %v477 = vpack.c.b16 %v452, %v451
      %v478 = vpack.c.b16 %v454, %v453
      %v479 = vpack.c.b16 %v456, %v455
      %v480 = vpack.c.b16 %v458, %v457
      %v481 = vpack.c.b16 %v460, %v459
      %v482 = vpack.c.b16 %v462, %v461
      %v483 = vpack.c.b16 %v464, %v463
      %v484 = vpack.c.b16 %v466, %v465
      %v485 = vpack.c.b16 %v468, %v467
      %v486 = vpack.c.b16 %v470, %v469
      %503 = vmatprep.subr.bf16.mxu0 0
      %504 = vmatpush1.bf16.msra.mxu0 %v471
      %505 = vmatprep.subr.bf16.mxu0 0
      %506 = vmatpush1.bf16.msra.mxu0 %v472
      %507 = vmatprep.subr.bf16.mxu0 0
      %508 = vmatpush1.bf16.msra.mxu0 %v473
      %509 = vmatprep.subr.bf16.mxu0 0
      %510 = vmatpush1.bf16.msra.mxu0 %v474
      %511 = vmatprep.subr.bf16.mxu0 0
      %512 = vmatpush1.bf16.msra.mxu0 %v475
      %513 = vmatprep.subr.bf16.mxu0 0
      %514 = vmatpush1.bf16.msra.mxu0 %v476
      %515 = vmatprep.subr.bf16.mxu0 0
      %516 = vmatpush1.bf16.msra.mxu0 %v477
      %517 = vmatprep.subr.bf16.mxu0 0
      %518 = vmatpush1.bf16.msra.mxu0 %v478
      %519 = vmatprep.subr.bf16.mxu0 0
      %520 = vmatpush1.bf16.msra.mxu0 %v479
      %521 = vmatprep.subr.bf16.mxu0 0
      %522 = vmatpush1.bf16.msra.mxu0 %v480
      %523 = vmatprep.subr.bf16.mxu0 0
      %524 = vmatpush1.bf16.msra.mxu0 %v481
      %525 = vmatprep.subr.bf16.mxu0 0
      %526 = vmatpush1.bf16.msra.mxu0 %v482
      %527 = vmatprep.subr.bf16.mxu0 0
      %528 = vmatpush1.bf16.msra.mxu0 %v483
      %529 = vmatprep.subr.bf16.mxu0 0
      %530 = vmatpush1.bf16.msra.mxu0 %v484
      %531 = vmatprep.subr.bf16.mxu0 0
      %532 = vmatpush1.bf16.msra.mxu0 %v485
      %533 = vmatprep.subr.bf16.mxu0 0
      %534 = vmatpush1.bf16.msra.mxu0 %v486
      %535 = vmatprep.mubr.bf16.mxu0 %v400
      %536 = vmatmul.mubr.bf16.gmra.mrb[0].mxu0 %v399
      %v537 = vpop.f32.mrb[0].mxu0
      %v538 = vadd.f32 %v370, %v537
      %v539 = vpop.f32.mrb[0].mxu0
      %v540 = vpop.f32.mrb[0].mxu0
      %v541 = vadd.f32 %v375, %v540
      %v542 = vpop.f32.mrb[0].mxu0
      %543 = vmatprep.mubr.bf16.mxu0 %v402
      %544 = vmatmul.mubr.bf16.gmra.mrb[0].mxu0 %v401
      %v545 = vpop.f32.mrb[0].mxu0
      %v546 = vadd.f32 %v380, %v545
      %v547 = vpop.f32.mrb[0].mxu0
      %v548 = vpop.f32.mrb[0].mxu0
      %v549 = vadd.f32 %v385, %v548
      %v550 = vpop.f32.mrb[0].mxu0
      %551 = vdwg.mxu0
      %v552 = vlaneseq
      %v553 = vand.u32 %v552, 127
      %s554 = smul.u32 %s23, 128
      %v555 = vstv %s554
      %v556 = vadd.s32 %v553, %v555
      %vm557 = vcmp.lt.s32.totalorder %v556, 4
      %v558 = vsel %vm557, %v538, 0.0
      %v559 = vsel %vm557, %v541, 0.0
      %v560 = vsel %vm557, %v546, 0.0
      %v561 = vsel %vm557, %v549, 0.0
      %p562 = scmp.eq.s32.totalorder %s23, 0
      // Predicated region
      $region33: #{discriminator_forward.9} parent=31 // pred_check
        %p563 = pneg %p562
      $region34: #{discriminator_forward.9} parent=31 // pred_check_branch
        %565 = sbr.rel (%p563) target = $region36
      $region35: #{discriminator_forward.9} parent=31 // pred_region
        %vm566 = vcmask 7168
        %567 = vst.msk [vmem:[%s320] sm:$0xff] %vm566, 0.0
        %568 = vst.msk [vmem:[%s320 + $0x8] sm:$0xff] %vm566, 0.0
        %569 = vst.msk [vmem:[%s320 + $0x10] sm:$0xff] %vm566, 0.0
        %570 = vst.msk [vmem:[%s320 + $0x18] sm:$0xff] %vm566, 0.0
        %571 = vst.msk [vmem:[%s325] sm:$0xff] %vm566, 0.0
        %572 = vst.msk [vmem:[%s325 + $0x8] sm:$0xff] %vm566, 0.0
        %573 = vst.msk [vmem:[%s325 + $0x10] sm:$0xff] %vm566, 0.0
        %574 = vst.msk [vmem:[%s325 + $0x18] sm:$0xff] %vm566, 0.0
      $region36: #{discriminator_forward.9} parent=31 // pred_fallthru
        _
      %v575 = vld [vmem:[%s320] sm:$0xff]
      %v576 = vld [vmem:[%s320 + $0x8] sm:$0xff]
      %v577 = vld [vmem:[%s320 + $0x10] sm:$0xff]
      %v578 = vld [vmem:[%s320 + $0x18] sm:$0xff]
      %579 = vadd.xlane.f32.xlu0 %v558
      %v580 = vpop.xlane.xlu0 %579
      %581 = vadd.xlane.f32.xlu0 %v559
      %v582 = vpop.xlane.xlu0 %581
      %583 = vadd.xlane.f32.xlu0 %v560
      %v584 = vpop.xlane.xlu0 %583
      %585 = vadd.xlane.f32.xlu0 %v561
      %v586 = vpop.xlane.xlu0 %585
      %v587 = vadd.f32 %v575, %v580
      %v588 = vadd.f32 %v576, %v582
      %v589 = vadd.f32 %v577, %v584
      %v590 = vadd.f32 %v578, %v586
      %vm591 = vcmask 7168
      %592 = vst.msk [vmem:[%s320] sm:$0xff] %vm591, %v587
      %593 = vst.msk [vmem:[%s320 + $0x8] sm:$0xff] %vm591, %v588
      %594 = vst.msk [vmem:[%s320 + $0x10] sm:$0xff] %vm591, %v589
      %595 = vst.msk [vmem:[%s320 + $0x18] sm:$0xff] %vm591, %v590
      %v596 = vld [vmem:[%s325] sm:$0xff]
      %v597 = vld [vmem:[%s325 + $0x8] sm:$0xff]
      %v598 = vld [vmem:[%s325 + $0x10] sm:$0xff]
      %v599 = vld [vmem:[%s325 + $0x18] sm:$0xff]
      %v600 = vmul.f32 %v558, %v558
      %v601 = vmul.f32 %v559, %v559
      %v602 = vmul.f32 %v560, %v560
      %v603 = vmul.f32 %v561, %v561
      %604 = vadd.xlane.f32.xlu0 %v600
      %v605 = vpop.xlane.xlu0 %604
      %606 = vadd.xlane.f32.xlu0 %v601
      %v607 = vpop.xlane.xlu0 %606
      %608 = vadd.xlane.f32.xlu0 %v602
      %v609 = vpop.xlane.xlu0 %608
      %610 = vadd.xlane.f32.xlu0 %v603
      %v611 = vpop.xlane.xlu0 %610
      %v612 = vadd.f32 %v596, %v605
      %v613 = vadd.f32 %v597, %v607
      %v614 = vadd.f32 %v598, %v609
      %v615 = vadd.f32 %v599, %v611
      %616 = vst.msk [vmem:[%s325] sm:$0xff] %vm591, %v612
      %617 = vst.msk [vmem:[%s325 + $0x8] sm:$0xff] %vm591, %v613
      %618 = vst.msk [vmem:[%s325 + $0x10] sm:$0xff] %vm591, %v614
      %619 = vst.msk [vmem:[%s325 + $0x18] sm:$0xff] %vm591, %v615
      %v620 = vpack.c.bf16 %v541, %v538
      %v621 = vpack.c.bf16 %v549, %v546
      %v624 = vunpack.c.l.b16 %v620
      %v625 = vunpack.c.h.b16 %v620
      %v626 = vunpack.c.l.b16 %v621
      %v627 = vunpack.c.h.b16 %v621
      %v628 = vpack.c.b16 %v624, %v624
      %v629 = vpack.c.b16 %v625, %v625
      %v630 = vpack.c.b16 %v626, %v626
      %v631 = vpack.c.b16 %v627, %v627
      %636 = vst [vmem:[%s315] sm:$0xf] %v628
      %637 = vst [vmem:[%s315 + $0x4] sm:$0xf] %v629
      %638 = vst [vmem:[%s315 + $0x8] sm:$0xf] %v630
      %639 = vst [vmem:[%s315 + $0xc] sm:$0xf] %v631
      %p640 = scmp.lt.s32.totalorder %s22, 1
      %s641 = scalar_select %p640, %s22, 1
      %p642 = scmp.lt.s32.totalorder %s23, 0
      %s643 = scalar_select %p642, %s23, 0
      %s644 = smul.addr %s641, 4
      %s645 = sadd.s32 %s643, %s644
      %s646 = smul.addr %s645, 4
      %s647 = scalar_lea.vmem %s3, %s646
      %p648 = scmp.lt.s32.totalorder %s22, 1
      %s649 = scalar_select %p648, %s22, 1
      %s650 = smul.addr %s649, 4
      %s651 = smul.addr %s650, 8
      %s652 = scalar_lea.vmem %s4, %s651
      %p653 = scmp.lt.s32.totalorder %s22, 1
      %s654 = scalar_select %p653, %s22, 1
      %s655 = smul.addr %s654, 4
      %s656 = smul.addr %s655, 8
      %s657 = scalar_lea.vmem %s5, %s656
      // Predicated region
      $region37: #{discriminator_forward.9} parent=31 // pred_check
        %p658 = pneg %p133
      $region38: #{discriminator_forward.9} parent=31 // pred_check_branch
        %660 = sbr.rel (%p658) target = $region40
      $region39: #{discriminator_forward.9} parent=31 // pred_region
        _
      $region40: #{discriminator_forward.9} parent=31 // pred_fallthru
        _
      // Predicated region
      $region41: #{discriminator_forward.9} parent=31 // pred_check
        %p661 = pneg %p159
      $region42: #{discriminator_forward.9} parent=31 // pred_check_branch
        %663 = sbr.rel (%p661) target = $region44
      $region43: #{discriminator_forward.9} parent=31 // pred_region
        _
      $region44: #{discriminator_forward.9} parent=31 // pred_fallthru
        _
      // Predicated region
      $region45: #{discriminator_forward.9} parent=31 // pred_check
        %p664 = pneg %p185
      $region46: #{discriminator_forward.9} parent=31 // pred_check_branch
        %666 = sbr.rel (%p664) target = $region48
      $region47: #{discriminator_forward.9} parent=31 // pred_region
        _
      $region48: #{discriminator_forward.9} parent=31 // pred_fallthru
        _
    $region32: #{discriminator_forward.9} parent=5 // pred_fallthru
      _
    %p667 = scmp.le.s32.totalorder 2, %s12
    // Predicated region
    $region49: #{discriminator_forward.9} parent=5 // pred_check
      %p668 = pneg %p667
    $region50: #{discriminator_forward.9} parent=5 // pred_check_branch
      %670 = sbr.rel (%p668) target = $region52
    $region51: #{discriminator_forward.9} parent=5 // pred_region
      %s671 = ssub.s32 %s12, 2
      // Predicated region
      $region53: #{discriminator_forward.9} parent=51 // pred_check
        %p672 = pneg %p139
      $region54: #{discriminator_forward.9} parent=51 // pred_check_branch
        %674 = sbr.rel (%p672) target = $region56
      $region55: #{discriminator_forward.9} parent=51 // pred_region
        %p675 = scmp.lt.s32.totalorder %s25, 1
        %s676 = scalar_select %p675, %s25, 1
        %p677 = scmp.lt.s32.totalorder %s26, 0
        %s678 = scalar_select %p677, %s26, 0
        %s679 = smul.addr %s676, 4
        %s680 = sadd.s32 %s678, %s679
        %s681 = smul.addr %s680, 4
        %s682 = scalar_lea.vmem %s3, %s681
      $region56: #{discriminator_forward.9} parent=51 // pred_fallthru
        _
      // Predicated region
      $region57: #{discriminator_forward.9} parent=51 // pred_check
        %p683 = pneg %p165
      $region58: #{discriminator_forward.9} parent=51 // pred_check_branch
        %685 = sbr.rel (%p683) target = $region60
      $region59: #{discriminator_forward.9} parent=51 // pred_region
        %p686 = scmp.lt.s32.totalorder %s25, 1
        %s687 = scalar_select %p686, %s25, 1
        %s688 = smul.addr %s687, 4
        %s689 = smul.addr %s688, 8
        %s690 = scalar_lea.vmem %s4, %s689
      $region60: #{discriminator_forward.9} parent=51 // pred_fallthru
        _
      // Predicated region
      $region61: #{discriminator_forward.9} parent=51 // pred_check
        %p691 = pneg %p191
      $region62: #{discriminator_forward.9} parent=51 // pred_check_branch
        %693 = sbr.rel (%p691) target = $region64
      $region63: #{discriminator_forward.9} parent=51 // pred_region
        %p694 = scmp.lt.s32.totalorder %s25, 1
        %s695 = scalar_select %p694, %s25, 1
        %s696 = smul.addr %s695, 4
        %s697 = smul.addr %s696, 8
        %s698 = scalar_lea.vmem %s5, %s697
      $region64: #{discriminator_forward.9} parent=51 // pred_fallthru
        _
    $region52: #{discriminator_forward.9} parent=5 // pred_fallthru
      _
  $region6: #{discriminator_forward.9} parent=0 // loop_footer
    %s16 = sadd.s32 1, %s12
  $region7: #{discriminator_forward.9} parent=0 // loop_footer_branch
    %11 = sbr.rel target = $region3
  $region8: #{discriminator_forward.9} parent=0 // loop_exit
    _

// kernel: discriminator_forward.11
$region0: #{discriminator_forward.11}
  #allocation0 [shape = 'u32[]', space=smem, size = 0x4, offset = 0x4, fixed_abs, tag = 'smem constant byte address 0x4 - core index']
  #allocation1 [shape = 'u32[144,128]{1,0:T(1,128)}', space=vmem, size = 0x12000, scoped, tag = 'internal scratch']
  %s0 = inlined_call_operand.vmem [shape: bf16[8,512], index: 0, kind: input, shape index: {}]
  %s1 = inlined_call_operand.vmem [shape: bf16[2,512,128], index: 1, kind: input, shape index: {}]
  %s2 = inlined_call_operand.vmem [shape: f32[8,1], index: 2, kind: input, shape index: {}]
  %s3 = inlined_call_operand.vmem [shape: f32[2,8,128], index: 3, kind: output, shape index: {}]
  %s4 = sld [smem:[#allocation0]]
  $region45: #{discriminator_forward.11} parent=0
    _
  %s6 = ssub.s32 1, %s4
  %s7 = scalar_select 0, %s6, %s4
  loop: start=0, step=1, limit=4
  $region2: #{discriminator_forward.11} parent=0 // loop_pre_header
    _
  $region3: #{discriminator_forward.11} parent=0 // loop_header
    %s9 = sphi 0, %s13
    %p10 = scmp.ge.s32.totalorder %s9, 4
    %s16 = sphi 0, %s35
    %s17 = sphi 0, %s31
    %s18 = sphi 0, %s27
    %s19 = sphi 0, %s16
    %s20 = sphi 0, %s17
    %s21 = sphi 0, %s18
    %s22 = sphi 0, %s19
    %s23 = sphi 0, %s20
    %s24 = sphi 0, %s21
    %s38 = sphi 0, %s40
    %s41 = sphi 0, %s38
    %s42 = sphi 0, %s41
    %s58 = sphi 0, %s42
    %s68 = sphi 0, %s70
    %s71 = sphi 0, %s68
    %s72 = sphi 0, %s71
    %s88 = sphi 0, %s72
    %s92 = sphi 0, %s92
    %s94 = sphi 0, %s92
    %s95 = sphi 0, %s94
    %s109 = sphi 0, %s95
    %s117 = sphi 0, %s119
    %s120 = sphi 0, %s117
    %s121 = sphi 0, %s120
    %s137 = sphi 0, %s121
  $region4: #{discriminator_forward.11} parent=0 // loop_header_branch
    %12 = sbr.rel (%p10) target = $region8
  $region5: #{discriminator_forward.11} parent=0 // loop_body
    %s14 = ssub.s32 %s9, 1
    %s15 = ssub.s32 %s9, 2
    %s25 = sadd.s32 1, %s18
    %p26 = scmp.ge.s32.totalorder %s25, 1
    %s27 = scalar_select %p26, 0, %s25
    %s28 = sadd.s32 1, %s17
    %s29 = scalar_select %p26, %s28, %s17
    %p30 = scmp.ge.s32.totalorder %s29, 1
    %s31 = scalar_select %p30, 0, %s29
    %s32 = sadd.s32 1, %s16
    %s33 = scalar_select %p30, %s32, %s16
    %p34 = scmp.ge.s32.totalorder %s33, 2
    %s35 = scalar_select %p34, 0, %s33
    %s36 = ssub.s32 %s18, %s27
    %p37 = scmp.eq.s32.totalorder %s36, 0
    %s39 = sadd.s32 %s38, 1
    %s40 = scalar_select %p37, %s38, %s39
    %p43 = pneg %p37
    %p44 = scmp.eq.s32.totalorder %s9, 1
    %p45 = por %p43, %p44
    %p46 = scmp.ne.s32.totalorder %s38, %s41
    %p47 = scmp.eq.s32.totalorder %s9, 0
    %p48 = por %p46, %p47
    %p49 = scmp.ne.s32.totalorder %s38, %s41
    %p50 = scmp.eq.s32.totalorder %s14, 1
    %p51 = por %p49, %p50
    %p52 = scmp.ne.s32.totalorder %s41, %s42
    %p53 = scmp.eq.s32.totalorder %s14, 0
    %p54 = por %p52, %p53
    %p55 = scmp.ne.s32.totalorder %s41, %s42
    %p56 = scmp.eq.s32.totalorder %s15, 1
    %p57 = por %p55, %p56
    %p59 = scmp.ne.s32.totalorder %s42, %s58
    %p60 = scmp.eq.s32.totalorder %s15, 0
    %p61 = por %p59, %p60
    %s62 = ssub.s32 %s16, %s35
    %s63 = ssub.s32 %s18, %s27
    %s64 = sor.u32 %s62, %s63
    %s65 = ssub.s32 %s17, %s31
    %s66 = sor.u32 %s64, %s65
    %p67 = scmp.eq.s32.totalorder %s66, 0
    %s69 = sadd.s32 %s68, 1
    %s70 = scalar_select %p67, %s68, %s69
    %p73 = pneg %p67
    %p74 = scmp.eq.s32.totalorder %s9, 1
    %p75 = por %p73, %p74
    %p76 = scmp.ne.s32.totalorder %s68, %s71
    %p77 = scmp.eq.s32.totalorder %s9, 0
    %p78 = por %p76, %p77
    %p79 = scmp.ne.s32.totalorder %s68, %s71
    %p80 = scmp.eq.s32.totalorder %s14, 1
    %p81 = por %p79, %p80
    %p82 = scmp.ne.s32.totalorder %s71, %s72
    %p83 = scmp.eq.s32.totalorder %s14, 0
    %p84 = por %p82, %p83
    %p85 = scmp.ne.s32.totalorder %s71, %s72
    %p86 = scmp.eq.s32.totalorder %s15, 1
    %p87 = por %p85, %p86
    %p89 = scmp.ne.s32.totalorder %s72, %s88
    %p90 = scmp.eq.s32.totalorder %s15, 0
    %p91 = por %p89, %p90
    %s93 = sadd.s32 %s92, 1
    %p96 = scmp.eq.s32.totalorder %s9, 1
    %p97 = scmp.ne.s32.totalorder %s92, %s94
    %p98 = scmp.eq.s32.totalorder %s9, 0
    %p99 = por %p97, %p98
    %p100 = scmp.ne.s32.totalorder %s92, %s94
    %p101 = scmp.eq.s32.totalorder %s14, 1
    %p102 = por %p100, %p101
    %p103 = scmp.ne.s32.totalorder %s94, %s95
    %p104 = scmp.eq.s32.totalorder %s14, 0
    %p105 = por %p103, %p104
    %p106 = scmp.ne.s32.totalorder %s94, %s95
    %p107 = scmp.eq.s32.totalorder %s15, 1
    %p108 = por %p106, %p107
    %p110 = scmp.ne.s32.totalorder %s95, %s109
    %p111 = scmp.eq.s32.totalorder %s15, 0
    %p112 = por %p110, %p111
    %s113 = ssub.s32 %s16, %s35
    %s114 = ssub.s32 %s17, %s31
    %s115 = sor.u32 %s113, %s114
    %p116 = scmp.eq.s32.totalorder %s115, 0
    %s118 = sadd.s32 %s117, 1
    %s119 = scalar_select %p116, %s117, %s118
    %p122 = pneg %p116
    %p123 = scmp.eq.s32.totalorder %s9, 1
    %p124 = por %p122, %p123
    %p125 = scmp.ne.s32.totalorder %s117, %s120
    %p126 = scmp.eq.s32.totalorder %s9, 0
    %p127 = por %p125, %p126
    %p128 = scmp.ne.s32.totalorder %s117, %s120
    %p129 = scmp.eq.s32.totalorder %s14, 1
    %p130 = por %p128, %p129
    %p131 = scmp.ne.s32.totalorder %s120, %s121
    %p132 = scmp.eq.s32.totalorder %s14, 0
    %p133 = por %p131, %p132
    %p134 = scmp.ne.s32.totalorder %s120, %s121
    %p135 = scmp.eq.s32.totalorder %s15, 1
    %p136 = por %p134, %p135
    %p138 = scmp.ne.s32.totalorder %s121, %s137
    %p139 = scmp.eq.s32.totalorder %s15, 0
    %p140 = por %p138, %p139
    %p141 = scmp.le.s32.totalorder 1, %s9
    %p142 = scmp.lt.s32.totalorder %s9, 3
    %p143 = pnand %p141, %p142
    %p144 = pneg %p143
    // Predicated region
    $region9: #{discriminator_forward.11} parent=5 // pred_check
      _
    $region10: #{discriminator_forward.11} parent=5 // pred_check_branch
      %146 = sbr.rel (%p143) target = $region12
    $region11: #{discriminator_forward.11} parent=5 // pred_region
      %s147 = ssub.s32 %s9, 1
      // Predicated region
      $region13: #{discriminator_forward.11} parent=11 // pred_check
        %p148 = pneg %p54
      $region14: #{discriminator_forward.11} parent=11 // pred_check_branch
        %150 = sbr.rel (%p148) target = $region16
      $region15: #{discriminator_forward.11} parent=11 // pred_region
        %s151 = smul.u32 4, %s21
        %p152 = scmp.lt.s32.totalorder %s151, 3
        %s153 = scalar_select %p152, %s151, 3
        %s154 = smul.addr %s153, 4
        %s155 = scalar_lea.vmem %s0, %s154
        %s156 = smul.u32 4, %s21
      $region16: #{discriminator_forward.11} parent=11 // pred_fallthru
        _
      // Predicated region
      $region17: #{discriminator_forward.11} parent=11 // pred_check
        %p157 = pneg %p105
      $region18: #{discriminator_forward.11} parent=11 // pred_check_branch
        %159 = sbr.rel (%p157) target = $region20
      $region19: #{discriminator_forward.11} parent=11 // pred_region
        _
      $region20: #{discriminator_forward.11} parent=11 // pred_fallthru
        _
    $region12: #{discriminator_forward.11} parent=5 // pred_fallthru
      _
    %p160 = scmp.lt.s32.totalorder %s9, 2
    // Predicated region
    $region21: #{discriminator_forward.11} parent=5 // pred_check
      %p161 = pneg %p160
    $region22: #{discriminator_forward.11} parent=5 // pred_check_branch
      %163 = sbr.rel (%p161) target = $region24
    $region23: #{discriminator_forward.11} parent=5 // pred_region
      // Predicated region
      $region25: #{discriminator_forward.11} parent=23 // pred_check
        %p164 = pneg %p78
      $region26: #{discriminator_forward.11} parent=23 // pred_check_branch
        %166 = sbr.rel (%p164) target = $region28
      $region27: #{discriminator_forward.11} parent=23 // pred_region
        %s167 = smul.u32 64, %s18
        %p168 = scmp.lt.s32.totalorder %s16, 1
        %s169 = scalar_select %p168, %s16, 1
        %p170 = scmp.lt.s32.totalorder %s167, 63
        %s171 = scalar_select %p170, %s167, 63
        %p172 = scmp.lt.s32.totalorder %s17, 0
        %s173 = scalar_select %p172, %s17, 0
        %s174 = sadd.s32 %s173, %s171
        %s175 = smul.addr %s169, 64
        %s176 = sadd.s32 %s174, %s175
        %s177 = smul.addr %s176, 4
        %s178 = scalar_lea.vmem %s1, %s177
        %s179 = smul.u32 64, %s18
      $region28: #{discriminator_forward.11} parent=23 // pred_fallthru
        _
    $region24: #{discriminator_forward.11} parent=5 // pred_fallthru
      _
    %p180 = scmp.le.s32.totalorder 1, %s9
    %p181 = scmp.lt.s32.totalorder %s9, 3
    %p182 = pnand %p180, %p181
    %p183 = pneg %p182
    // Predicated region
    $region29: #{discriminator_forward.11} parent=5 // pred_check
      _
    $region30: #{discriminator_forward.11} parent=5 // pred_check_branch
      %185 = sbr.rel (%p182) target = $region32
    $region31: #{discriminator_forward.11} parent=5 // pred_region
      %s186 = ssub.s32 %s9, 1
      %s187 = smul.u32 4, %s21
      %p188 = scmp.lt.s32.totalorder %s187, 3
      %s189 = scalar_select %p188, %s187, 3
      %s190 = smul.addr %s189, 4
      %s191 = scalar_lea.vmem %s0, %s190
      %p192 = pneg %p54
      %p193 = pneg %p51
      %s194 = smul.u32 64, %s21
      %p195 = scmp.lt.s32.totalorder %s19, 1
      %s196 = scalar_select %p195, %s19, 1
      %p197 = scmp.lt.s32.totalorder %s194, 63
      %s198 = scalar_select %p197, %s194, 63
      %p199 = scmp.lt.s32.totalorder %s20, 0
      %s200 = scalar_select %p199, %s20, 0
      %s201 = sadd.s32 %s200, %s198
      %s202 = smul.addr %s196, 64
      %s203 = sadd.s32 %s201, %s202
      %s204 = smul.addr %s203, 4
      %s205 = scalar_lea.vmem %s1, %s204
      %p206 = pneg %p84
      %p207 = pneg %p81
      %p208 = pneg %p105
      %p209 = pneg %p102
      %p210 = pneg %p133
      %p211 = pneg %p130
      %p212 = scmp.lt.s32.totalorder %s19, 1
      %s213 = scalar_select %p212, %s19, 1
      %p214 = scmp.lt.s32.totalorder %s20, 0
      %s215 = scalar_select %p214, %s20, 0
      %s216 = sadd.s32 %s215, %s213
      %s217 = smul.addr %s216, 8
      %s218 = scalar_lea.vmem %s3, %s217
      %s219 = smul.u32 4, %s21
      %p220 = scmp.lt.s32.totalorder %s219, 3
      %s221 = scalar_select %p220, %s219, 3
      %s222 = smul.addr %s221, 4
      %s223 = scalar_lea.vmem %s0, %s222
      %s224 = smul.u32 4, %s21
      %s225 = smul.u32 64, %s21
      %p226 = scmp.lt.s32.totalorder %s19, 1
      %s227 = scalar_select %p226, %s19, 1
      %p228 = scmp.lt.s32.totalorder %s225, 63
      %s229 = scalar_select %p228, %s225, 63
      %p230 = scmp.lt.s32.totalorder %s20, 0
      %s231 = scalar_select %p230, %s20, 0
      %s232 = sadd.s32 %s231, %s229
      %s233 = smul.addr %s227, 64
      %s234 = sadd.s32 %s232, %s233
      %s235 = smul.addr %s234, 4
      %s236 = scalar_lea.vmem %s1, %s235
      %s237 = smul.u32 64, %s21
      %p238 = scmp.lt.s32.totalorder %s19, 1
      %s239 = scalar_select %p238, %s19, 1
      %p240 = scmp.lt.s32.totalorder %s20, 0
      %s241 = scalar_select %p240, %s20, 0
      %s242 = sadd.s32 %s241, %s239
      %s243 = smul.addr %s242, 8
      %s244 = scalar_lea.vmem %s3, %s243
      %v246 = vld [vmem:[%s223] sm:$0xff]
      %v247 = vld [vmem:[%s223 + $0x8] sm:$0xff]
      %v248 = vld [vmem:[%s236] sm:$0xf]
      %v249 = vld [vmem:[%s236 + $0x4] sm:$0xf]
      %v250 = vld [vmem:[%s236 + $0x8] sm:$0xf]
      %v251 = vld [vmem:[%s236 + $0xc] sm:$0xf]
      %v252 = vld [vmem:[%s236 + $0x10] sm:$0xf]
      %v253 = vld [vmem:[%s236 + $0x14] sm:$0xf]
      %v254 = vld [vmem:[%s236 + $0x18] sm:$0xf]
      %v255 = vld [vmem:[%s236 + $0x1c] sm:$0xf]
      %v256 = vld [vmem:[%s236 + $0x20] sm:$0xf]
      %v257 = vld [vmem:[%s236 + $0x24] sm:$0xf]
      %v258 = vld [vmem:[%s236 + $0x28] sm:$0xf]
      %v259 = vld [vmem:[%s236 + $0x2c] sm:$0xf]
      %v260 = vld [vmem:[%s236 + $0x30] sm:$0xf]
      %v261 = vld [vmem:[%s236 + $0x34] sm:$0xf]
      %v262 = vld [vmem:[%s236 + $0x38] sm:$0xf]
      %v263 = vld [vmem:[%s236 + $0x3c] sm:$0xf]
      %v264 = vld [vmem:[%s236 + $0x40] sm:$0xf]
      %v265 = vld [vmem:[%s236 + $0x44] sm:$0xf]
      %v266 = vld [vmem:[%s236 + $0x48] sm:$0xf]
      %v267 = vld [vmem:[%s236 + $0x4c] sm:$0xf]
      %v268 = vld [vmem:[%s236 + $0x50] sm:$0xf]
      %v269 = vld [vmem:[%s236 + $0x54] sm:$0xf]
      %v270 = vld [vmem:[%s236 + $0x58] sm:$0xf]
      %v271 = vld [vmem:[%s236 + $0x5c] sm:$0xf]
      %v272 = vld [vmem:[%s236 + $0x60] sm:$0xf]
      %v273 = vld [vmem:[%s236 + $0x64] sm:$0xf]
      %v274 = vld [vmem:[%s236 + $0x68] sm:$0xf]
      %v275 = vld [vmem:[%s236 + $0x6c] sm:$0xf]
      %v276 = vld [vmem:[%s236 + $0x70] sm:$0xf]
      %v277 = vld [vmem:[%s236 + $0x74] sm:$0xf]
      %v278 = vld [vmem:[%s236 + $0x78] sm:$0xf]
      %v279 = vld [vmem:[%s236 + $0x7c] sm:$0xf]
      %v280 = vld [vmem:[%s236 + $0x80] sm:$0xf]
      %v281 = vld [vmem:[%s236 + $0x84] sm:$0xf]
      %v282 = vld [vmem:[%s236 + $0x88] sm:$0xf]
      %v283 = vld [vmem:[%s236 + $0x8c] sm:$0xf]
      %v284 = vld [vmem:[%s236 + $0x90] sm:$0xf]
      %v285 = vld [vmem:[%s236 + $0x94] sm:$0xf]
      %v286 = vld [vmem:[%s236 + $0x98] sm:$0xf]
      %v287 = vld [vmem:[%s236 + $0x9c] sm:$0xf]
      %v288 = vld [vmem:[%s236 + $0xa0] sm:$0xf]
      %v289 = vld [vmem:[%s236 + $0xa4] sm:$0xf]
      %v290 = vld [vmem:[%s236 + $0xa8] sm:$0xf]
      %v291 = vld [vmem:[%s236 + $0xac] sm:$0xf]
      %v292 = vld [vmem:[%s236 + $0xb0] sm:$0xf]
      %v293 = vld [vmem:[%s236 + $0xb4] sm:$0xf]
      %v294 = vld [vmem:[%s236 + $0xb8] sm:$0xf]
      %v295 = vld [vmem:[%s236 + $0xbc] sm:$0xf]
      %v296 = vld [vmem:[%s236 + $0xc0] sm:$0xf]
      %v297 = vld [vmem:[%s236 + $0xc4] sm:$0xf]
      %v298 = vld [vmem:[%s236 + $0xc8] sm:$0xf]
      %v299 = vld [vmem:[%s236 + $0xcc] sm:$0xf]
      %v300 = vld [vmem:[%s236 + $0xd0] sm:$0xf]
      %v301 = vld [vmem:[%s236 + $0xd4] sm:$0xf]
      %v302 = vld [vmem:[%s236 + $0xd8] sm:$0xf]
      %v303 = vld [vmem:[%s236 + $0xdc] sm:$0xf]
      %v304 = vld [vmem:[%s236 + $0xe0] sm:$0xf]
      %v305 = vld [vmem:[%s236 + $0xe4] sm:$0xf]
      %v306 = vld [vmem:[%s236 + $0xe8] sm:$0xf]
      %v307 = vld [vmem:[%s236 + $0xec] sm:$0xf]
      %v308 = vld [vmem:[%s236 + $0xf0] sm:$0xf]
      %v309 = vld [vmem:[%s236 + $0xf4] sm:$0xf]
      %v310 = vld [vmem:[%s236 + $0xf8] sm:$0xf]
      %v311 = vld [vmem:[%s236 + $0xfc] sm:$0xf]
      %v312 = vld [vmem:[%s2] sm:$0xff]
      %314 = vset.pattern.permute.xlu0 0
      %315 = vperm.xlu0 %314, %v312
      %v316 = vpop.permute.xlu0 %315
      %v320 = vunpack.c.l.b16 %v246
      %v321 = vunpack.c.h.b16 %v246
      %v322 = vunpack.c.l.b16 %v247
      %v323 = vunpack.c.h.b16 %v247
      %v324 = vpack.c.b16 %v320, %v320
      %v325 = vpack.c.b16 %v321, %v321
      %v326 = vpack.c.b16 %v322, %v322
      %v327 = vpack.c.b16 %v323, %v323
      %v396 = vunpack.c.l.b16 %v248
      %v397 = vunpack.c.l.b16 %v249
      %v398 = vunpack.c.l.b16 %v250
      %v399 = vunpack.c.l.b16 %v251
      %v400 = vunpack.c.l.b16 %v252
      %v401 = vunpack.c.l.b16 %v253
      %v402 = vunpack.c.l.b16 %v254
      %v403 = vunpack.c.l.b16 %v255
      %v404 = vunpack.c.l.b16 %v256
      %v405 = vunpack.c.l.b16 %v257
      %v406 = vunpack.c.l.b16 %v258
      %v407 = vunpack.c.l.b16 %v259
      %v408 = vunpack.c.l.b16 %v260
      %v409 = vunpack.c.l.b16 %v261
      %v410 = vunpack.c.l.b16 %v262
      %v411 = vunpack.c.l.b16 %v263
      %v412 = vunpack.c.l.b16 %v264
      %v413 = vunpack.c.l.b16 %v265
      %v414 = vunpack.c.l.b16 %v266
      %v415 = vunpack.c.l.b16 %v267
      %v416 = vunpack.c.l.b16 %v268
      %v417 = vunpack.c.l.b16 %v269
      %v418 = vunpack.c.l.b16 %v270
      %v419 = vunpack.c.l.b16 %v271
      %v420 = vunpack.c.l.b16 %v272
      %v421 = vunpack.c.l.b16 %v273
      %v422 = vunpack.c.l.b16 %v274
      %v423 = vunpack.c.l.b16 %v275
      %v424 = vunpack.c.l.b16 %v276
      %v425 = vunpack.c.l.b16 %v277
      %v426 = vunpack.c.l.b16 %v278
      %v427 = vunpack.c.l.b16 %v279
      %v428 = vunpack.c.l.b16 %v280
      %v429 = vunpack.c.l.b16 %v281
      %v430 = vunpack.c.l.b16 %v282
      %v431 = vunpack.c.l.b16 %v283
      %v432 = vunpack.c.l.b16 %v284
      %v433 = vunpack.c.l.b16 %v285
      %v434 = vunpack.c.l.b16 %v286
      %v435 = vunpack.c.l.b16 %v287
      %v436 = vunpack.c.l.b16 %v288
      %v437 = vunpack.c.l.b16 %v289
      %v438 = vunpack.c.l.b16 %v290
      %v439 = vunpack.c.l.b16 %v291
      %v440 = vunpack.c.l.b16 %v292
      %v441 = vunpack.c.l.b16 %v293
      %v442 = vunpack.c.l.b16 %v294
      %v443 = vunpack.c.l.b16 %v295
      %v444 = vunpack.c.l.b16 %v296
      %v445 = vunpack.c.l.b16 %v297
      %v446 = vunpack.c.l.b16 %v298
      %v447 = vunpack.c.l.b16 %v299
      %v448 = vunpack.c.l.b16 %v300
      %v449 = vunpack.c.l.b16 %v301
      %v450 = vunpack.c.l.b16 %v302
      %v451 = vunpack.c.l.b16 %v303
      %v452 = vunpack.c.l.b16 %v304
      %v453 = vunpack.c.l.b16 %v305
      %v454 = vunpack.c.l.b16 %v306
      %v455 = vunpack.c.l.b16 %v307
      %v456 = vunpack.c.l.b16 %v308
      %v457 = vunpack.c.l.b16 %v309
      %v458 = vunpack.c.l.b16 %v310
      %v459 = vunpack.c.l.b16 %v311
      %v460 = vpack.c.b16 %v397, %v396
      %v461 = vpack.c.b16 %v399, %v398
      %v462 = vpack.c.b16 %v401, %v400
      %v463 = vpack.c.b16 %v403, %v402
      %v464 = vpack.c.b16 %v405, %v404
      %v465 = vpack.c.b16 %v407, %v406
      %v466 = vpack.c.b16 %v409, %v408
      %v467 = vpack.c.b16 %v411, %v410
      %v468 = vpack.c.b16 %v413, %v412
      %v469 = vpack.c.b16 %v415, %v414
      %v470 = vpack.c.b16 %v417, %v416
      %v471 = vpack.c.b16 %v419, %v418
      %v472 = vpack.c.b16 %v421, %v420
      %v473 = vpack.c.b16 %v423, %v422
      %v474 = vpack.c.b16 %v425, %v424
      %v475 = vpack.c.b16 %v427, %v426
      %v476 = vpack.c.b16 %v429, %v428
      %v477 = vpack.c.b16 %v431, %v430
      %v478 = vpack.c.b16 %v433, %v432
      %v479 = vpack.c.b16 %v435, %v434
      %v480 = vpack.c.b16 %v437, %v436
      %v481 = vpack.c.b16 %v439, %v438
      %v482 = vpack.c.b16 %v441, %v440
      %v483 = vpack.c.b16 %v443, %v442
      %v484 = vpack.c.b16 %v445, %v444
      %v485 = vpack.c.b16 %v447, %v446
      %v486 = vpack.c.b16 %v449, %v448
      %v487 = vpack.c.b16 %v451, %v450
      %v488 = vpack.c.b16 %v453, %v452
      %v489 = vpack.c.b16 %v455, %v454
      %v490 = vpack.c.b16 %v457, %v456
      %v491 = vpack.c.b16 %v459, %v458
      %524 = vmatprep.subr.bf16.mxu0 0
      %525 = vmatpush1.bf16.msra.mxu0 %v460
      %526 = vmatprep.subr.bf16.mxu0 0
      %527 = vmatpush1.bf16.msra.mxu0 %v461
      %528 = vmatprep.subr.bf16.mxu0 0
      %529 = vmatpush1.bf16.msra.mxu0 %v462
      %530 = vmatprep.subr.bf16.mxu0 0
      %531 = vmatpush1.bf16.msra.mxu0 %v463
      %532 = vmatprep.subr.bf16.mxu0 0
      %533 = vmatpush1.bf16.msra.mxu0 %v464
      %534 = vmatprep.subr.bf16.mxu0 0
      %535 = vmatpush1.bf16.msra.mxu0 %v465
      %536 = vmatprep.subr.bf16.mxu0 0
      %537 = vmatpush1.bf16.msra.mxu0 %v466
      %538 = vmatprep.subr.bf16.mxu0 0
      %539 = vmatpush1.bf16.msra.mxu0 %v467
      %540 = vmatprep.subr.bf16.mxu0 0
      %541 = vmatpush1.bf16.msra.mxu0 %v468
      %542 = vmatprep.subr.bf16.mxu0 0
      %543 = vmatpush1.bf16.msra.mxu0 %v469
      %544 = vmatprep.subr.bf16.mxu0 0
      %545 = vmatpush1.bf16.msra.mxu0 %v470
      %546 = vmatprep.subr.bf16.mxu0 0
      %547 = vmatpush1.bf16.msra.mxu0 %v471
      %548 = vmatprep.subr.bf16.mxu0 0
      %549 = vmatpush1.bf16.msra.mxu0 %v472
      %550 = vmatprep.subr.bf16.mxu0 0
      %551 = vmatpush1.bf16.msra.mxu0 %v473
      %552 = vmatprep.subr.bf16.mxu0 0
      %553 = vmatpush1.bf16.msra.mxu0 %v474
      %554 = vmatprep.subr.bf16.mxu0 0
      %555 = vmatpush1.bf16.msra.mxu0 %v475
      %556 = vmatprep.mubr.bf16.mxu0 %v325
      %557 = vmatmul.mubr.bf16.gmra.mrb[0].mxu0 %v324
      %v558 = vpop.f32.mrb[0].mxu0
      %v559 = vadd.f32 %v316, %v558
      %v560 = vpop.f32.mrb[0].mxu0
      %v561 = vpop.f32.mrb[0].mxu0
      %v562 = vpop.f32.mrb[0].mxu0
      %563 = vdwg.mxu0
      %564 = vmatprep.subr.bf16.mxu0 0
      %565 = vmatpush1.bf16.msra.mxu0 %v476
      %566 = vmatprep.subr.bf16.mxu0 0
      %567 = vmatpush1.bf16.msra.mxu0 %v477
      %568 = vmatprep.subr.bf16.mxu0 0
      %569 = vmatpush1.bf16.msra.mxu0 %v478
      %570 = vmatprep.subr.bf16.mxu0 0
      %571 = vmatpush1.bf16.msra.mxu0 %v479
      %572 = vmatprep.subr.bf16.mxu0 0
      %573 = vmatpush1.bf16.msra.mxu0 %v480
      %574 = vmatprep.subr.bf16.mxu0 0
      %575 = vmatpush1.bf16.msra.mxu0 %v481
      %576 = vmatprep.subr.bf16.mxu0 0
      %577 = vmatpush1.bf16.msra.mxu0 %v482
      %578 = vmatprep.subr.bf16.mxu0 0
      %579 = vmatpush1.bf16.msra.mxu0 %v483
      %580 = vmatprep.subr.bf16.mxu0 0
      %581 = vmatpush1.bf16.msra.mxu0 %v484
      %582 = vmatprep.subr.bf16.mxu0 0
      %583 = vmatpush1.bf16.msra.mxu0 %v485
      %584 = vmatprep.subr.bf16.mxu0 0
      %585 = vmatpush1.bf16.msra.mxu0 %v486
      %586 = vmatprep.subr.bf16.mxu0 0
      %587 = vmatpush1.bf16.msra.mxu0 %v487
      %588 = vmatprep.subr.bf16.mxu0 0
      %589 = vmatpush1.bf16.msra.mxu0 %v488
      %590 = vmatprep.subr.bf16.mxu0 0
      %591 = vmatpush1.bf16.msra.mxu0 %v489
      %592 = vmatprep.subr.bf16.mxu0 0
      %593 = vmatpush1.bf16.msra.mxu0 %v490
      %594 = vmatprep.subr.bf16.mxu0 0
      %595 = vmatpush1.bf16.msra.mxu0 %v491
      %596 = vmatprep.mubr.bf16.mxu0 %v327
      %597 = vmatmul.mubr.bf16.gmra.mrb[0].mxu0 %v326
      %v598 = vpop.f32.mrb[0].mxu0
      %v599 = vadd.f32 %v559, %v598
      %v600 = vpop.f32.mrb[0].mxu0
      %v601 = vpop.f32.mrb[0].mxu0
      %v602 = vpop.f32.mrb[0].mxu0
      %603 = vdwg.mxu0
      %604 = vst [vmem:[%s244] sm:$0xff] %v599
      %p605 = scmp.lt.s32.totalorder %s19, 1
      %s606 = scalar_select %p605, %s19, 1
      %p607 = scmp.lt.s32.totalorder %s20, 0
      %s608 = scalar_select %p607, %s20, 0
      %s609 = sadd.s32 %s608, %s606
      %s610 = smul.addr %s609, 8
      %s611 = scalar_lea.vmem %s3, %s610
      // Predicated region
      $region33: #{discriminator_forward.11} parent=31 // pred_check
        %p612 = pneg %p130
      $region34: #{discriminator_forward.11} parent=31 // pred_check_branch
        %614 = sbr.rel (%p612) target = $region36
      $region35: #{discriminator_forward.11} parent=31 // pred_region
        _
      $region36: #{discriminator_forward.11} parent=31 // pred_fallthru
        _
    $region32: #{discriminator_forward.11} parent=5 // pred_fallthru
      _
    %p615 = scmp.le.s32.totalorder 2, %s9
    // Predicated region
    $region37: #{discriminator_forward.11} parent=5 // pred_check
      %p616 = pneg %p615
    $region38: #{discriminator_forward.11} parent=5 // pred_check_branch
      %618 = sbr.rel (%p616) target = $region40
    $region39: #{discriminator_forward.11} parent=5 // pred_region
      %s619 = ssub.s32 %s9, 2
      // Predicated region
      $region41: #{discriminator_forward.11} parent=39 // pred_check
        %p620 = pneg %p136
      $region42: #{discriminator_forward.11} parent=39 // pred_check_branch
        %622 = sbr.rel (%p620) target = $region44
      $region43: #{discriminator_forward.11} parent=39 // pred_region
        %p623 = scmp.lt.s32.totalorder %s22, 1
        %s624 = scalar_select %p623, %s22, 1
        %p625 = scmp.lt.s32.totalorder %s23, 0
        %s626 = scalar_select %p625, %s23, 0
        %s627 = sadd.s32 %s626, %s624
        %s628 = smul.addr %s627, 8
        %s629 = scalar_lea.vmem %s3, %s628
      $region44: #{discriminator_forward.11} parent=39 // pred_fallthru
        _
    $region40: #{discriminator_forward.11} parent=5 // pred_fallthru
      _
  $region6: #{discriminator_forward.11} parent=0 // loop_footer
    %s13 = sadd.s32 1, %s9
  $region7: #{discriminator_forward.11} parent=0 // loop_footer_branch
    %8 = sbr.rel target = $region3
  $region8: #{discriminator_forward.11} parent=0 // loop_exit
    _

</llo_original>
